<compile_context>
chip_gen: v7x
topology: tpu7x:2x2x1
jax: 0.10.0
libtpu: 0.0.40
codegen_flags: <defaults>
</compile_context>

<pallas_src>
import math

import jax
import jax.numpy as jnp
from jax.experimental import pallas as pl
from jax.experimental.pallas import tpu as pltpu

# ----------------------------- small config ---------------------------------
B = 2            # batch
S = 8            # sequence length
H = 32           # hidden size (scaled down from 768)
NH = 4           # attention heads
DH = H // NH     # head dim
FF = 64          # feed-forward size
V = 100          # vocab size
NSEG = 2         # token type vocab
C = 8            # num_classes (as in the module)
NLAYERS = 2
BS = B * S
NEG_INF = -1e9
LANE = 128       # lane-aligned segment width inside packed slabs

# --- packed-slab layout (all segment offsets are 128-lane aligned) -----------
# wh   : [NLAYERS, H, 3*LANE]   lanes [0:3H]=Wqkv, [128:128+H]=Wo, [256:256+FF]=W1
WQKV_OFF = 0 * LANE
WO_OFF = 1 * LANE
W1_OFF = 2 * LANE
WH_WIDTH = 3 * LANE
# w2   : [NLAYERS, FF, H]       FF-down projection
# lvec : [NLAYERS, 8, LANE]     one bias / LN vector per row
R_BQKV, R_BO, R_LN1G, R_LN1B, R_B1, R_B2, R_LN2G, R_LN2B = range(8)
# headw: [H, 2*LANE]            lanes [0:H]=pooler W, [128:128+C]=classifier W
POOLW_OFF = 0 * LANE
CLSW_OFF = 1 * LANE
HEADW_WIDTH = 2 * LANE
# gvec : [4, LANE]              emb LN gain/bias, pooler bias, classifier bias
G_EMBG, G_EMBB, G_POOLB, G_CLSB = range(4)


# ------------------------------ fused kernel ---------------------------------
def _layernorm(x, g, b):
    mu = jnp.mean(x, axis=-1, keepdims=True)
    var = jnp.mean(jnp.square(x - mu), axis=-1, keepdims=True)
    return (x - mu) * jax.lax.rsqrt(var + 1e-12) * g + b


def bert_fused_kernel(emb_ref, bias_ref, wh_ref, w2_ref, lvec_ref,
                      headw_ref, gvec_ref, out_ref):
    scale = 1.0 / math.sqrt(DH)

    # Embedding LayerNorm on the flattened [B*S, H] activation slab.
    x = _layernorm(emb_ref[...],
                   gvec_ref[G_EMBG:G_EMBG + 1, :H],
                   gvec_ref[G_EMBB:G_EMBB + 1, :H])                    # [BS, H]

    # Additive attention bias over the flattened token axis (block-diagonal
    # across batch + key-padding from valid_length). Hoisted out of the loop.
    att_bias = bias_ref[...][None, :, :]                               # [1, BS, BS]

    for l in range(NLAYERS):                    # static unroll (tiny model)
        wqkv = wh_ref[l, :, WQKV_OFF:WQKV_OFF + 3 * H]                 # [H, 3H]
        wo = wh_ref[l, :, WO_OFF:WO_OFF + H]                           # [H, H]
        w1 = wh_ref[l, :, W1_OFF:W1_OFF + FF]                          # [H, FF]
        w2 = w2_ref[l]                                                 # [FF, H]

        # Fused QKV projection: one plain 2-D matmul, lane-dense output.
        qkv = jnp.dot(x, wqkv, preferred_element_type=jnp.float32)
        qkv = qkv + lvec_ref[l, R_BQKV:R_BQKV + 1, :3 * H]             # [BS, 3H]

        # Gather heads into a leading batch axis (leading-dim stack only: no
        # transpose, no sublane shuffles), then ONE batched score / context
        # contraction for all NH heads and both batch elements.
        q3 = jnp.stack([qkv[:, h * DH:(h + 1) * DH]
                        for h in range(NH)], axis=0)                   # [NH, BS, DH]
        k3 = jnp.stack([qkv[:, H + h * DH:H + (h + 1) * DH]
                        for h in range(NH)], axis=0)
        v3 = jnp.stack([qkv[:, 2 * H + h * DH:2 * H + (h + 1) * DH]
                        for h in range(NH)], axis=0)

        sc = jnp.einsum('hsd,htd->hst', q3, k3,
                        preferred_element_type=jnp.float32) * scale    # [NH, BS, BS]
        sc = sc + att_bias
        sc = sc - jnp.max(sc, axis=-1, keepdims=True)
        p = jnp.exp(sc)
        p = p * pl.reciprocal(jnp.sum(p, axis=-1, keepdims=True), approx=True)
        ctx = jnp.einsum('hst,htd->hsd', p, v3,
                         preferred_element_type=jnp.float32)           # [NH, BS, DH]

        # Output projection accumulated per head in registers (no VMEM scratch,
        # no masked 8-lane stores).
        attn = jnp.dot(ctx[0], wo[0:DH, :], preferred_element_type=jnp.float32)
        for h in range(1, NH):
            attn = attn + jnp.dot(ctx[h], wo[h * DH:(h + 1) * DH, :],
                                  preferred_element_type=jnp.float32)
        attn = attn + lvec_ref[l, R_BO:R_BO + 1, :H]

        x = _layernorm(x + attn,
                       lvec_ref[l, R_LN1G:R_LN1G + 1, :H],
                       lvec_ref[l, R_LN1B:R_LN1B + 1, :H])

        # Feed-forward (tanh-approx GELU).
        h1 = jax.nn.gelu(jnp.dot(x, w1, preferred_element_type=jnp.float32)
                         + lvec_ref[l, R_B1:R_B1 + 1, :FF],
                         approximate=True)                              # [BS, FF]
        ff = jnp.dot(h1, w2, preferred_element_type=jnp.float32)
        ff = ff + lvec_ref[l, R_B2:R_B2 + 1, :H]
        x = _layernorm(x + ff,
                       lvec_ref[l, R_LN2G:R_LN2G + 1, :H],
                       lvec_ref[l, R_LN2B:R_LN2B + 1, :H])

    # Pooler + dropout(eval)=identity + classifier, computed for all rows
    # (FLOPs are negligible); classifier weights are padded to 128 output
    # lanes, so the single output store is unmasked and lane-dense.
    pooled = jnp.tanh(jnp.dot(x, headw_ref[:, POOLW_OFF:POOLW_OFF + H],
                              preferred_element_type=jnp.float32)
                      + gvec_ref[G_POOLB:G_POOLB + 1, :H])             # [BS, H]
    out_ref[...] = (jnp.dot(pooled, headw_ref[:, CLSW_OFF:CLSW_OFF + LANE],
                            preferred_element_type=jnp.float32)
                    + gvec_ref[G_CLSB:G_CLSB + 1, :])                  # [BS, 128]


# ------------------------------ wrapper --------------------------------------
def bert_classifier_forward(token_ids, valid_length, segment_ids, p):
    # Embedding gathers + mask construction stay in XLA glue (fused, no extra
    # kernel launch; no clean Pallas gather at this size).
    pos_ids = jnp.arange(S)
    emb = (p['tok_emb'][token_ids]
           + p['seg_emb'][segment_ids]
           + p['pos_emb'][pos_ids][None, :, :]).astype(jnp.float32)     # [B, S, H]
    emb2d = emb.reshape(BS, H)

    # Additive attention bias over the flattened (B*S) token axis:
    # keys must belong to the SAME batch element AND be within valid_length.
    tok_batch = jnp.repeat(jnp.arange(B, dtype=jnp.int32), S)           # [BS]
    tok_pos = jnp.tile(jnp.arange(S, dtype=jnp.int32), B)               # [BS]
    key_valid = tok_pos < valid_length.astype(jnp.int32)[tok_batch]     # [BS]
    same_batch = tok_batch[:, None] == tok_batch[None, :]               # [BS, BS]
    bias = jnp.where(same_batch & key_valid[None, :], 0.0, NEG_INF)
    bias = bias.astype(jnp.float32)

    logits_pad = pl.pallas_call(
        bert_fused_kernel,
        out_shape=jax.ShapeDtypeStruct((BS, LANE), jnp.float32),
        compiler_params=pltpu.CompilerParams(vmem_limit_bytes=16 * 1024 * 1024),
    )(emb2d, bias, p['wh'], p['w2'], p['lvec'], p['headw'], p['gvec'])

    # CLS token of each sequence, first C (real) classifier columns.
    return logits_pad.reshape(B, S, LANE)[:, 0, :C]                     # [B, C]


# ------------------------------ parameter init -------------------------------
def init_params(key):
    keys = iter(jax.random.split(key, 32))

    def nrm(shape):
        return (0.02 * jax.random.normal(next(keys), shape)).astype(jnp.float32)

    # Per-layer weight slab (Wqkv | Wo | W1), each segment 128-lane aligned.
    wh = jnp.zeros((NLAYERS, H, WH_WIDTH), jnp.float32)
    wh = wh.at[:, :, WQKV_OFF:WQKV_OFF + 3 * H].set(nrm((NLAYERS, H, 3 * H)))
    wh = wh.at[:, :, WO_OFF:WO_OFF + H].set(nrm((NLAYERS, H, H)))
    wh = wh.at[:, :, W1_OFF:W1_OFF + FF].set(nrm((NLAYERS, H, FF)))

    # FF-down projection.
    w2 = nrm((NLAYERS, FF, H))

    # Per-layer bias / LayerNorm vector slab (one vector per row, lane-padded).
    lvec = jnp.zeros((NLAYERS, 8, LANE), jnp.float32)
    lvec = lvec.at[:, R_LN1G, :H].set(1.0)
    lvec = lvec.at[:, R_LN2G, :H].set(1.0)
    # bqkv / bo / b1 / b2 / LN biases stay zero-initialised.

    # Pooler + classifier weight slab (classifier padded to 128 output lanes).
    headw = jnp.zeros((H, HEADW_WIDTH), jnp.float32)
    headw = headw.at[:, POOLW_OFF:POOLW_OFF + H].set(nrm((H, H)))
    headw = headw.at[:, CLSW_OFF:CLSW_OFF + C].set(nrm((H, C)))

    # Globals: embedding LN gain/bias, pooler bias, classifier bias.
    gvec = jnp.zeros((4, LANE), jnp.float32)
    gvec = gvec.at[G_EMBG, :H].set(1.0)

    return {
        'tok_emb': nrm((V, H)),
        'seg_emb': nrm((NSEG, H)),
        'pos_emb': nrm((S, H)),
        'wh': wh,
        'w2': w2,
        'lvec': lvec,
        'headw': headw,
        'gvec': gvec,
    }


# ---------------------------------- main --------------------------------------
if __name__ == "__main__":
    key = jax.random.PRNGKey(0)
    k_tok, k_seg, k_par = jax.random.split(key, 3)

    token_ids = jax.random.randint(k_tok, (B, S), 0, V, dtype=jnp.int32)
    segment_ids = jax.random.randint(k_seg, (B, S), 0, NSEG, dtype=jnp.int32)
    valid_length = jnp.array([5, 8], dtype=jnp.int32)

    params = init_params(k_par)

    fwd = jax.jit(bert_classifier_forward)
    logits = jax.block_until_ready(fwd(token_ids, valid_length, segment_ids, params))

    assert logits.shape == (B, C) and logits.dtype == jnp.float32
    assert bool(jnp.all(jnp.isfinite(logits)))
    print("KERNEL_OK")
</pallas_src>

<mosaic_0001>
module attributes {stable_mosaic.version = 11 : i64} {
  func.func @bert_fused_kernel(%arg0: memref<16x32xf32, #tpu.memory_space<vmem>>, %arg1: memref<16x16xf32, #tpu.memory_space<vmem>>, %arg2: memref<2x32x384xf32, #tpu.memory_space<vmem>>, %arg3: memref<2x64x32xf32, #tpu.memory_space<vmem>>, %arg4: memref<2x8x128xf32, #tpu.memory_space<vmem>>, %arg5: memref<32x256xf32, #tpu.memory_space<vmem>>, %arg6: memref<4x128xf32, #tpu.memory_space<vmem>>, %arg7: memref<16x128xf32, #tpu.memory_space<vmem>>) attributes {dimension_semantics = [], scalar_prefetch = 0 : i64, scratch_operands = 0 : i64, tpu.core_type = #tpu.core_type<tc>} {
    %c0 = arith.constant 0 : index
    %c0_0 = arith.constant 0 : index
    %0 = vector.load %arg0[%c0, %c0_0] : memref<16x32xf32, #tpu.memory_space<vmem>>, vector<16x32xf32>
    %c0_1 = arith.constant 0 : index
    %c0_2 = arith.constant 0 : index
    %1 = vector.load %arg6[%c0_1, %c0_2] : memref<4x128xf32, #tpu.memory_space<vmem>>, vector<1x32xf32>
    %c1 = arith.constant 1 : index
    %c0_3 = arith.constant 0 : index
    %2 = vector.load %arg6[%c1, %c0_3] : memref<4x128xf32, #tpu.memory_space<vmem>>, vector<1x32xf32>
    %cst = arith.constant dense<0.000000e+00> : vector<16xf32>
    %3 = vector.multi_reduction <add>, %0, %cst [1] : vector<16x32xf32> to vector<16xf32>
    %4 = vector.shape_cast %3 : vector<16xf32> to vector<16x1xf32>
    %cst_4 = arith.constant 3.200000e+01 : f32
    %5 = vector.broadcast %cst_4 : f32 to vector<16x1xf32>
    %6 = arith.divf %4, %5 : vector<16x1xf32>
    %7 = vector.broadcast %6 : vector<16x1xf32> to vector<16x32xf32>
    %8 = arith.subf %0, %7 : vector<16x32xf32>
    %9 = arith.mulf %8, %8 : vector<16x32xf32>
    %cst_5 = arith.constant dense<0.000000e+00> : vector<16xf32>
    %10 = vector.multi_reduction <add>, %9, %cst_5 [1] : vector<16x32xf32> to vector<16xf32>
    %11 = vector.shape_cast %10 : vector<16xf32> to vector<16x1xf32>
    %cst_6 = arith.constant 3.200000e+01 : f32
    %12 = vector.broadcast %cst_6 : f32 to vector<16x1xf32>
    %13 = arith.divf %11, %12 : vector<16x1xf32>
    %14 = vector.broadcast %6 : vector<16x1xf32> to vector<16x32xf32>
    %15 = arith.subf %0, %14 : vector<16x32xf32>
    %cst_7 = arith.constant 9.99999996E-13 : f32
    %16 = vector.broadcast %cst_7 : f32 to vector<16x1xf32>
    %17 = arith.addf %13, %16 : vector<16x1xf32>
    %18 = math.rsqrt %17 : vector<16x1xf32>
    %19 = vector.broadcast %18 : vector<16x1xf32> to vector<16x32xf32>
    %20 = arith.mulf %15, %19 : vector<16x32xf32>
    %21 = vector.broadcast %1 : vector<1x32xf32> to vector<16x32xf32>
    %22 = arith.mulf %20, %21 : vector<16x32xf32>
    %23 = vector.broadcast %2 : vector<1x32xf32> to vector<16x32xf32>
    %24 = arith.addf %22, %23 : vector<16x32xf32>
    %c0_8 = arith.constant 0 : index
    %c0_9 = arith.constant 0 : index
    %25 = vector.load %arg1[%c0_8, %c0_9] : memref<16x16xf32, #tpu.memory_space<vmem>>, vector<16x16xf32>
    %26 = vector.shape_cast %25 : vector<16x16xf32> to vector<1x16x16xf32>
    %c0_10 = arith.constant 0 : index
    %c0_11 = arith.constant 0 : index
    %c0_12 = arith.constant 0 : index
    %27 = vector.load %arg2[%c0_10, %c0_11, %c0_12] : memref<2x32x384xf32, #tpu.memory_space<vmem>>, vector<1x32x96xf32>
    %28 = vector.shape_cast %27 : vector<1x32x96xf32> to vector<32x96xf32>
    %c0_13 = arith.constant 0 : index
    %c0_14 = arith.constant 0 : index
    %c128 = arith.constant 128 : index
    %29 = vector.load %arg2[%c0_13, %c0_14, %c128] : memref<2x32x384xf32, #tpu.memory_space<vmem>>, vector<1x32x32xf32>
    %30 = vector.shape_cast %29 : vector<1x32x32xf32> to vector<32x32xf32>
    %c0_15 = arith.constant 0 : index
    %c0_16 = arith.constant 0 : index
    %c256 = arith.constant 256 : index
    %31 = vector.load %arg2[%c0_15, %c0_16, %c256] : memref<2x32x384xf32, #tpu.memory_space<vmem>>, vector<1x32x64xf32>
    %32 = vector.shape_cast %31 : vector<1x32x64xf32> to vector<32x64xf32>
    %c0_17 = arith.constant 0 : index
    %c0_18 = arith.constant 0 : index
    %c0_19 = arith.constant 0 : index
    %33 = vector.load %arg3[%c0_17, %c0_18, %c0_19] : memref<2x64x32xf32, #tpu.memory_space<vmem>>, vector<1x64x32xf32>
    %34 = vector.shape_cast %33 : vector<1x64x32xf32> to vector<64x32xf32>
    %cst_20 = arith.constant dense<0.000000e+00> : vector<16x96xf32>
    %35 = tpu.matmul %24, %28, %cst_20 {dimension_numbers = #tpu.dot_dimension_numbers<[1], [0], [0], [1], [0, 0, 1, 1], [], []>} : vector<16x32xf32>, vector<32x96xf32>, vector<16x96xf32> -> vector<16x96xf32>
    %c0_21 = arith.constant 0 : index
    %c0_22 = arith.constant 0 : index
    %c0_23 = arith.constant 0 : index
    %36 = vector.load %arg4[%c0_21, %c0_22, %c0_23] : memref<2x8x128xf32, #tpu.memory_space<vmem>>, vector<1x1x96xf32>
    %37 = vector.shape_cast %36 : vector<1x1x96xf32> to vector<1x96xf32>
    %38 = vector.broadcast %37 : vector<1x96xf32> to vector<16x96xf32>
    %39 = arith.addf %35, %38 : vector<16x96xf32>
    %40 = vector.extract_strided_slice %39 {offsets = [0, 0], sizes = [16, 8], strides = [1, 1]} : vector<16x96xf32> to vector<16x8xf32>
    %41 = vector.extract_strided_slice %39 {offsets = [0, 8], sizes = [16, 8], strides = [1, 1]} : vector<16x96xf32> to vector<16x8xf32>
    %42 = vector.extract_strided_slice %39 {offsets = [0, 16], sizes = [16, 8], strides = [1, 1]} : vector<16x96xf32> to vector<16x8xf32>
    %43 = vector.extract_strided_slice %39 {offsets = [0, 24], sizes = [16, 8], strides = [1, 1]} : vector<16x96xf32> to vector<16x8xf32>
    %44 = vector.shape_cast %40 : vector<16x8xf32> to vector<1x16x8xf32>
    %45 = vector.shape_cast %41 : vector<16x8xf32> to vector<1x16x8xf32>
    %46 = vector.shape_cast %42 : vector<16x8xf32> to vector<1x16x8xf32>
    %47 = vector.shape_cast %43 : vector<16x8xf32> to vector<1x16x8xf32>
    %48 = tpu.concatenate %44, %45, %46, %47 in 0 : vector<1x16x8xf32>, vector<1x16x8xf32>, vector<1x16x8xf32>, vector<1x16x8xf32> -> vector<4x16x8xf32>
    %49 = vector.extract_strided_slice %39 {offsets = [0, 32], sizes = [16, 8], strides = [1, 1]} : vector<16x96xf32> to vector<16x8xf32>
    %50 = vector.extract_strided_slice %39 {offsets = [0, 40], sizes = [16, 8], strides = [1, 1]} : vector<16x96xf32> to vector<16x8xf32>
    %51 = vector.extract_strided_slice %39 {offsets = [0, 48], sizes = [16, 8], strides = [1, 1]} : vector<16x96xf32> to vector<16x8xf32>
    %52 = vector.extract_strided_slice %39 {offsets = [0, 56], sizes = [16, 8], strides = [1, 1]} : vector<16x96xf32> to vector<16x8xf32>
    %53 = vector.shape_cast %49 : vector<16x8xf32> to vector<1x16x8xf32>
    %54 = vector.shape_cast %50 : vector<16x8xf32> to vector<1x16x8xf32>
    %55 = vector.shape_cast %51 : vector<16x8xf32> to vector<1x16x8xf32>
    %56 = vector.shape_cast %52 : vector<16x8xf32> to vector<1x16x8xf32>
    %57 = tpu.concatenate %53, %54, %55, %56 in 0 : vector<1x16x8xf32>, vector<1x16x8xf32>, vector<1x16x8xf32>, vector<1x16x8xf32> -> vector<4x16x8xf32>
    %58 = vector.extract_strided_slice %39 {offsets = [0, 64], sizes = [16, 8], strides = [1, 1]} : vector<16x96xf32> to vector<16x8xf32>
    %59 = vector.extract_strided_slice %39 {offsets = [0, 72], sizes = [16, 8], strides = [1, 1]} : vector<16x96xf32> to vector<16x8xf32>
    %60 = vector.extract_strided_slice %39 {offsets = [0, 80], sizes = [16, 8], strides = [1, 1]} : vector<16x96xf32> to vector<16x8xf32>
    %61 = vector.extract_strided_slice %39 {offsets = [0, 88], sizes = [16, 8], strides = [1, 1]} : vector<16x96xf32> to vector<16x8xf32>
    %62 = vector.shape_cast %58 : vector<16x8xf32> to vector<1x16x8xf32>
    %63 = vector.shape_cast %59 : vector<16x8xf32> to vector<1x16x8xf32>
    %64 = vector.shape_cast %60 : vector<16x8xf32> to vector<1x16x8xf32>
    %65 = vector.shape_cast %61 : vector<16x8xf32> to vector<1x16x8xf32>
    %66 = tpu.concatenate %62, %63, %64, %65 in 0 : vector<1x16x8xf32>, vector<1x16x8xf32>, vector<1x16x8xf32>, vector<1x16x8xf32> -> vector<4x16x8xf32>
    "tpu.trace_start"() <{level = 10 : i32, message = "hsd,htd->hst"}> : () -> ()
    %cst_24 = arith.constant dense<0.000000e+00> : vector<4x16x16xf32>
    %67 = tpu.matmul %48, %57, %cst_24 {dimension_numbers = #tpu.dot_dimension_numbers<[2], [2], [1], [1], [0, 0, 0, 1, 1, 1], [0], [0]>} : vector<4x16x8xf32>, vector<4x16x8xf32>, vector<4x16x16xf32> -> vector<4x16x16xf32>
    "tpu.trace_stop"() : () -> ()
    %cst_25 = arith.constant 0.353553385 : f32
    %68 = vector.broadcast %cst_25 : f32 to vector<4x16x16xf32>
    %69 = arith.mulf %67, %68 : vector<4x16x16xf32>
    %70 = vector.broadcast %26 : vector<1x16x16xf32> to vector<4x16x16xf32>
    %71 = arith.addf %69, %70 : vector<4x16x16xf32>
    %cst_26 = arith.constant dense<0xFF800000> : vector<4x16xf32>
    %72 = vector.multi_reduction <maximumf>, %71, %cst_26 [2] : vector<4x16x16xf32> to vector<4x16xf32>
    %73 = vector.shape_cast %72 : vector<4x16xf32> to vector<4x16x1xf32>
    %74 = vector.broadcast %73 : vector<4x16x1xf32> to vector<4x16x16xf32>
    %75 = arith.subf %71, %74 : vector<4x16x16xf32>
    %76 = math.exp %75 : vector<4x16x16xf32>
    %cst_27 = arith.constant dense<0.000000e+00> : vector<4x16xf32>
    %77 = vector.multi_reduction <add>, %76, %cst_27 [2] : vector<4x16x16xf32> to vector<4x16xf32>
    %78 = vector.shape_cast %77 : vector<4x16xf32> to vector<4x16x1xf32>
    %79 = tpu.reciprocal %78 {approx = true} : vector<4x16x1xf32> -> vector<4x16x1xf32>
    %80 = vector.broadcast %79 : vector<4x16x1xf32> to vector<4x16x16xf32>
    %81 = arith.mulf %76, %80 : vector<4x16x16xf32>
    "tpu.trace_start"() <{level = 10 : i32, message = "hst,htd->hsd"}> : () -> ()
    %cst_28 = arith.constant dense<0.000000e+00> : vector<4x16x8xf32>
    %82 = tpu.matmul %81, %66, %cst_28 {dimension_numbers = #tpu.dot_dimension_numbers<[2], [1], [1], [2], [0, 0, 0, 1, 1, 2], [0], [0]>} : vector<4x16x16xf32>, vector<4x16x8xf32>, vector<4x16x8xf32> -> vector<4x16x8xf32>
    "tpu.trace_stop"() : () -> ()
    %83 = vector.extract_strided_slice %82 {offsets = [0, 0, 0], sizes = [1, 16, 8], strides = [1, 1, 1]} : vector<4x16x8xf32> to vector<1x16x8xf32>
    %84 = vector.shape_cast %83 : vector<1x16x8xf32> to vector<16x8xf32>
    %85 = vector.extract_strided_slice %30 {offsets = [0, 0], sizes = [8, 32], strides = [1, 1]} : vector<32x32xf32> to vector<8x32xf32>
    %cst_29 = arith.constant dense<0.000000e+00> : vector<16x32xf32>
    %86 = tpu.matmul %84, %85, %cst_29 {dimension_numbers = #tpu.dot_dimension_numbers<[1], [0], [0], [1], [0, 0, 1, 1], [], []>} : vector<16x8xf32>, vector<8x32xf32>, vector<16x32xf32> -> vector<16x32xf32>
    %87 = vector.extract_strided_slice %82 {offsets = [1, 0, 0], sizes = [1, 16, 8], strides = [1, 1, 1]} : vector<4x16x8xf32> to vector<1x16x8xf32>
    %88 = vector.shape_cast %87 : vector<1x16x8xf32> to vector<16x8xf32>
    %89 = vector.extract_strided_slice %30 {offsets = [8, 0], sizes = [8, 32], strides = [1, 1]} : vector<32x32xf32> to vector<8x32xf32>
    %cst_30 = arith.constant dense<0.000000e+00> : vector<16x32xf32>
    %90 = tpu.matmul %88, %89, %cst_30 {dimension_numbers = #tpu.dot_dimension_numbers<[1], [0], [0], [1], [0, 0, 1, 1], [], []>} : vector<16x8xf32>, vector<8x32xf32>, vector<16x32xf32> -> vector<16x32xf32>
    %91 = arith.addf %86, %90 : vector<16x32xf32>
    %92 = vector.extract_strided_slice %82 {offsets = [2, 0, 0], sizes = [1, 16, 8], strides = [1, 1, 1]} : vector<4x16x8xf32> to vector<1x16x8xf32>
    %93 = vector.shape_cast %92 : vector<1x16x8xf32> to vector<16x8xf32>
    %94 = vector.extract_strided_slice %30 {offsets = [16, 0], sizes = [8, 32], strides = [1, 1]} : vector<32x32xf32> to vector<8x32xf32>
    %cst_31 = arith.constant dense<0.000000e+00> : vector<16x32xf32>
    %95 = tpu.matmul %93, %94, %cst_31 {dimension_numbers = #tpu.dot_dimension_numbers<[1], [0], [0], [1], [0, 0, 1, 1], [], []>} : vector<16x8xf32>, vector<8x32xf32>, vector<16x32xf32> -> vector<16x32xf32>
    %96 = arith.addf %91, %95 : vector<16x32xf32>
    %97 = vector.extract_strided_slice %82 {offsets = [3, 0, 0], sizes = [1, 16, 8], strides = [1, 1, 1]} : vector<4x16x8xf32> to vector<1x16x8xf32>
    %98 = vector.shape_cast %97 : vector<1x16x8xf32> to vector<16x8xf32>
    %99 = vector.extract_strided_slice %30 {offsets = [24, 0], sizes = [8, 32], strides = [1, 1]} : vector<32x32xf32> to vector<8x32xf32>
    %cst_32 = arith.constant dense<0.000000e+00> : vector<16x32xf32>
    %100 = tpu.matmul %98, %99, %cst_32 {dimension_numbers = #tpu.dot_dimension_numbers<[1], [0], [0], [1], [0, 0, 1, 1], [], []>} : vector<16x8xf32>, vector<8x32xf32>, vector<16x32xf32> -> vector<16x32xf32>
    %101 = arith.addf %96, %100 : vector<16x32xf32>
    %c0_33 = arith.constant 0 : index
    %c1_34 = arith.constant 1 : index
    %c0_35 = arith.constant 0 : index
    %102 = vector.load %arg4[%c0_33, %c1_34, %c0_35] : memref<2x8x128xf32, #tpu.memory_space<vmem>>, vector<1x1x32xf32>
    %103 = vector.shape_cast %102 : vector<1x1x32xf32> to vector<1x32xf32>
    %104 = vector.broadcast %103 : vector<1x32xf32> to vector<16x32xf32>
    %105 = arith.addf %101, %104 : vector<16x32xf32>
    %106 = arith.addf %24, %105 : vector<16x32xf32>
    %c0_36 = arith.constant 0 : index
    %c2 = arith.constant 2 : index
    %c0_37 = arith.constant 0 : index
    %107 = vector.load %arg4[%c0_36, %c2, %c0_37] : memref<2x8x128xf32, #tpu.memory_space<vmem>>, vector<1x1x32xf32>
    %108 = vector.shape_cast %107 : vector<1x1x32xf32> to vector<1x32xf32>
    %c0_38 = arith.constant 0 : index
    %c3 = arith.constant 3 : index
    %c0_39 = arith.constant 0 : index
    %109 = vector.load %arg4[%c0_38, %c3, %c0_39] : memref<2x8x128xf32, #tpu.memory_space<vmem>>, vector<1x1x32xf32>
    %110 = vector.shape_cast %109 : vector<1x1x32xf32> to vector<1x32xf32>
    %cst_40 = arith.constant dense<0.000000e+00> : vector<16xf32>
    %111 = vector.multi_reduction <add>, %106, %cst_40 [1] : vector<16x32xf32> to vector<16xf32>
    %112 = vector.shape_cast %111 : vector<16xf32> to vector<16x1xf32>
    %cst_41 = arith.constant 3.200000e+01 : f32
    %113 = vector.broadcast %cst_41 : f32 to vector<16x1xf32>
    %114 = arith.divf %112, %113 : vector<16x1xf32>
    %115 = vector.broadcast %114 : vector<16x1xf32> to vector<16x32xf32>
    %116 = arith.subf %106, %115 : vector<16x32xf32>
    %117 = arith.mulf %116, %116 : vector<16x32xf32>
    %cst_42 = arith.constant dense<0.000000e+00> : vector<16xf32>
    %118 = vector.multi_reduction <add>, %117, %cst_42 [1] : vector<16x32xf32> to vector<16xf32>
    %119 = vector.shape_cast %118 : vector<16xf32> to vector<16x1xf32>
    %cst_43 = arith.constant 3.200000e+01 : f32
    %120 = vector.broadcast %cst_43 : f32 to vector<16x1xf32>
    %121 = arith.divf %119, %120 : vector<16x1xf32>
    %122 = vector.broadcast %114 : vector<16x1xf32> to vector<16x32xf32>
    %123 = arith.subf %106, %122 : vector<16x32xf32>
    %cst_44 = arith.constant 9.99999996E-13 : f32
    %124 = vector.broadcast %cst_44 : f32 to vector<16x1xf32>
    %125 = arith.addf %121, %124 : vector<16x1xf32>
    %126 = math.rsqrt %125 : vector<16x1xf32>
    %127 = vector.broadcast %126 : vector<16x1xf32> to vector<16x32xf32>
    %128 = arith.mulf %123, %127 : vector<16x32xf32>
    %129 = vector.broadcast %108 : vector<1x32xf32> to vector<16x32xf32>
    %130 = arith.mulf %128, %129 : vector<16x32xf32>
    %131 = vector.broadcast %110 : vector<1x32xf32> to vector<16x32xf32>
    %132 = arith.addf %130, %131 : vector<16x32xf32>
    %cst_45 = arith.constant dense<0.000000e+00> : vector<16x64xf32>
    %133 = tpu.matmul %132, %32, %cst_45 {dimension_numbers = #tpu.dot_dimension_numbers<[1], [0], [0], [1], [0, 0, 1, 1], [], []>} : vector<16x32xf32>, vector<32x64xf32>, vector<16x64xf32> -> vector<16x64xf32>
    %c0_46 = arith.constant 0 : index
    %c4 = arith.constant 4 : index
    %c0_47 = arith.constant 0 : index
    %134 = vector.load %arg4[%c0_46, %c4, %c0_47] : memref<2x8x128xf32, #tpu.memory_space<vmem>>, vector<1x1x64xf32>
    %135 = vector.shape_cast %134 : vector<1x1x64xf32> to vector<1x64xf32>
    %136 = vector.broadcast %135 : vector<1x64xf32> to vector<16x64xf32>
    %137 = arith.addf %133, %136 : vector<16x64xf32>
    %138 = arith.mulf %137, %137 : vector<16x64xf32>
    %139 = arith.mulf %137, %138 : vector<16x64xf32>
    %cst_48 = arith.constant 4.471500e-02 : f32
    %140 = vector.broadcast %cst_48 : f32 to vector<16x64xf32>
    %141 = arith.mulf %140, %139 : vector<16x64xf32>
    %142 = arith.addf %137, %141 : vector<16x64xf32>
    %cst_49 = arith.constant 0.797884583 : f32
    %143 = vector.broadcast %cst_49 : f32 to vector<16x64xf32>
    %144 = arith.mulf %143, %142 : vector<16x64xf32>
    %145 = math.tanh %144 : vector<16x64xf32>
    %cst_50 = arith.constant 1.000000e+00 : f32
    %146 = vector.broadcast %cst_50 : f32 to vector<16x64xf32>
    %147 = arith.addf %146, %145 : vector<16x64xf32>
    %cst_51 = arith.constant 5.000000e-01 : f32
    %148 = vector.broadcast %cst_51 : f32 to vector<16x64xf32>
    %149 = arith.mulf %148, %147 : vector<16x64xf32>
    %150 = arith.mulf %137, %149 : vector<16x64xf32>
    %cst_52 = arith.constant dense<0.000000e+00> : vector<16x32xf32>
    %151 = tpu.matmul %150, %34, %cst_52 {dimension_numbers = #tpu.dot_dimension_numbers<[1], [0], [0], [1], [0, 0, 1, 1], [], []>} : vector<16x64xf32>, vector<64x32xf32>, vector<16x32xf32> -> vector<16x32xf32>
    %c0_53 = arith.constant 0 : index
    %c5 = arith.constant 5 : index
    %c0_54 = arith.constant 0 : index
    %152 = vector.load %arg4[%c0_53, %c5, %c0_54] : memref<2x8x128xf32, #tpu.memory_space<vmem>>, vector<1x1x32xf32>
    %153 = vector.shape_cast %152 : vector<1x1x32xf32> to vector<1x32xf32>
    %154 = vector.broadcast %153 : vector<1x32xf32> to vector<16x32xf32>
    %155 = arith.addf %151, %154 : vector<16x32xf32>
    %156 = arith.addf %132, %155 : vector<16x32xf32>
    %c0_55 = arith.constant 0 : index
    %c6 = arith.constant 6 : index
    %c0_56 = arith.constant 0 : index
    %157 = vector.load %arg4[%c0_55, %c6, %c0_56] : memref<2x8x128xf32, #tpu.memory_space<vmem>>, vector<1x1x32xf32>
    %158 = vector.shape_cast %157 : vector<1x1x32xf32> to vector<1x32xf32>
    %c0_57 = arith.constant 0 : index
    %c7 = arith.constant 7 : index
    %c0_58 = arith.constant 0 : index
    %159 = vector.load %arg4[%c0_57, %c7, %c0_58] : memref<2x8x128xf32, #tpu.memory_space<vmem>>, vector<1x1x32xf32>
    %160 = vector.shape_cast %159 : vector<1x1x32xf32> to vector<1x32xf32>
    %cst_59 = arith.constant dense<0.000000e+00> : vector<16xf32>
    %161 = vector.multi_reduction <add>, %156, %cst_59 [1] : vector<16x32xf32> to vector<16xf32>
    %162 = vector.shape_cast %161 : vector<16xf32> to vector<16x1xf32>
    %cst_60 = arith.constant 3.200000e+01 : f32
    %163 = vector.broadcast %cst_60 : f32 to vector<16x1xf32>
    %164 = arith.divf %162, %163 : vector<16x1xf32>
    %165 = vector.broadcast %164 : vector<16x1xf32> to vector<16x32xf32>
    %166 = arith.subf %156, %165 : vector<16x32xf32>
    %167 = arith.mulf %166, %166 : vector<16x32xf32>
    %cst_61 = arith.constant dense<0.000000e+00> : vector<16xf32>
    %168 = vector.multi_reduction <add>, %167, %cst_61 [1] : vector<16x32xf32> to vector<16xf32>
    %169 = vector.shape_cast %168 : vector<16xf32> to vector<16x1xf32>
    %cst_62 = arith.constant 3.200000e+01 : f32
    %170 = vector.broadcast %cst_62 : f32 to vector<16x1xf32>
    %171 = arith.divf %169, %170 : vector<16x1xf32>
    %172 = vector.broadcast %164 : vector<16x1xf32> to vector<16x32xf32>
    %173 = arith.subf %156, %172 : vector<16x32xf32>
    %cst_63 = arith.constant 9.99999996E-13 : f32
    %174 = vector.broadcast %cst_63 : f32 to vector<16x1xf32>
    %175 = arith.addf %171, %174 : vector<16x1xf32>
    %176 = math.rsqrt %175 : vector<16x1xf32>
    %177 = vector.broadcast %176 : vector<16x1xf32> to vector<16x32xf32>
    %178 = arith.mulf %173, %177 : vector<16x32xf32>
    %179 = vector.broadcast %158 : vector<1x32xf32> to vector<16x32xf32>
    %180 = arith.mulf %178, %179 : vector<16x32xf32>
    %181 = vector.broadcast %160 : vector<1x32xf32> to vector<16x32xf32>
    %182 = arith.addf %180, %181 : vector<16x32xf32>
    %c1_64 = arith.constant 1 : index
    %c0_65 = arith.constant 0 : index
    %c0_66 = arith.constant 0 : index
    %183 = vector.load %arg2[%c1_64, %c0_65, %c0_66] : memref<2x32x384xf32, #tpu.memory_space<vmem>>, vector<1x32x96xf32>
    %184 = vector.shape_cast %183 : vector<1x32x96xf32> to vector<32x96xf32>
    %c1_67 = arith.constant 1 : index
    %c0_68 = arith.constant 0 : index
    %c128_69 = arith.constant 128 : index
    %185 = vector.load %arg2[%c1_67, %c0_68, %c128_69] : memref<2x32x384xf32, #tpu.memory_space<vmem>>, vector<1x32x32xf32>
    %186 = vector.shape_cast %185 : vector<1x32x32xf32> to vector<32x32xf32>
    %c1_70 = arith.constant 1 : index
    %c0_71 = arith.constant 0 : index
    %c256_72 = arith.constant 256 : index
    %187 = vector.load %arg2[%c1_70, %c0_71, %c256_72] : memref<2x32x384xf32, #tpu.memory_space<vmem>>, vector<1x32x64xf32>
    %188 = vector.shape_cast %187 : vector<1x32x64xf32> to vector<32x64xf32>
    %c1_73 = arith.constant 1 : index
    %c0_74 = arith.constant 0 : index
    %c0_75 = arith.constant 0 : index
    %189 = vector.load %arg3[%c1_73, %c0_74, %c0_75] : memref<2x64x32xf32, #tpu.memory_space<vmem>>, vector<1x64x32xf32>
    %190 = vector.shape_cast %189 : vector<1x64x32xf32> to vector<64x32xf32>
    %cst_76 = arith.constant dense<0.000000e+00> : vector<16x96xf32>
    %191 = tpu.matmul %182, %184, %cst_76 {dimension_numbers = #tpu.dot_dimension_numbers<[1], [0], [0], [1], [0, 0, 1, 1], [], []>} : vector<16x32xf32>, vector<32x96xf32>, vector<16x96xf32> -> vector<16x96xf32>
    %c1_77 = arith.constant 1 : index
    %c0_78 = arith.constant 0 : index
    %c0_79 = arith.constant 0 : index
    %192 = vector.load %arg4[%c1_77, %c0_78, %c0_79] : memref<2x8x128xf32, #tpu.memory_space<vmem>>, vector<1x1x96xf32>
    %193 = vector.shape_cast %192 : vector<1x1x96xf32> to vector<1x96xf32>
    %194 = vector.broadcast %193 : vector<1x96xf32> to vector<16x96xf32>
    %195 = arith.addf %191, %194 : vector<16x96xf32>
    %196 = vector.extract_strided_slice %195 {offsets = [0, 0], sizes = [16, 8], strides = [1, 1]} : vector<16x96xf32> to vector<16x8xf32>
    %197 = vector.extract_strided_slice %195 {offsets = [0, 8], sizes = [16, 8], strides = [1, 1]} : vector<16x96xf32> to vector<16x8xf32>
    %198 = vector.extract_strided_slice %195 {offsets = [0, 16], sizes = [16, 8], strides = [1, 1]} : vector<16x96xf32> to vector<16x8xf32>
    %199 = vector.extract_strided_slice %195 {offsets = [0, 24], sizes = [16, 8], strides = [1, 1]} : vector<16x96xf32> to vector<16x8xf32>
    %200 = vector.shape_cast %196 : vector<16x8xf32> to vector<1x16x8xf32>
    %201 = vector.shape_cast %197 : vector<16x8xf32> to vector<1x16x8xf32>
    %202 = vector.shape_cast %198 : vector<16x8xf32> to vector<1x16x8xf32>
    %203 = vector.shape_cast %199 : vector<16x8xf32> to vector<1x16x8xf32>
    %204 = tpu.concatenate %200, %201, %202, %203 in 0 : vector<1x16x8xf32>, vector<1x16x8xf32>, vector<1x16x8xf32>, vector<1x16x8xf32> -> vector<4x16x8xf32>
    %205 = vector.extract_strided_slice %195 {offsets = [0, 32], sizes = [16, 8], strides = [1, 1]} : vector<16x96xf32> to vector<16x8xf32>
    %206 = vector.extract_strided_slice %195 {offsets = [0, 40], sizes = [16, 8], strides = [1, 1]} : vector<16x96xf32> to vector<16x8xf32>
    %207 = vector.extract_strided_slice %195 {offsets = [0, 48], sizes = [16, 8], strides = [1, 1]} : vector<16x96xf32> to vector<16x8xf32>
    %208 = vector.extract_strided_slice %195 {offsets = [0, 56], sizes = [16, 8], strides = [1, 1]} : vector<16x96xf32> to vector<16x8xf32>
    %209 = vector.shape_cast %205 : vector<16x8xf32> to vector<1x16x8xf32>
    %210 = vector.shape_cast %206 : vector<16x8xf32> to vector<1x16x8xf32>
    %211 = vector.shape_cast %207 : vector<16x8xf32> to vector<1x16x8xf32>
    %212 = vector.shape_cast %208 : vector<16x8xf32> to vector<1x16x8xf32>
    %213 = tpu.concatenate %209, %210, %211, %212 in 0 : vector<1x16x8xf32>, vector<1x16x8xf32>, vector<1x16x8xf32>, vector<1x16x8xf32> -> vector<4x16x8xf32>
    %214 = vector.extract_strided_slice %195 {offsets = [0, 64], sizes = [16, 8], strides = [1, 1]} : vector<16x96xf32> to vector<16x8xf32>
    %215 = vector.extract_strided_slice %195 {offsets = [0, 72], sizes = [16, 8], strides = [1, 1]} : vector<16x96xf32> to vector<16x8xf32>
    %216 = vector.extract_strided_slice %195 {offsets = [0, 80], sizes = [16, 8], strides = [1, 1]} : vector<16x96xf32> to vector<16x8xf32>
    %217 = vector.extract_strided_slice %195 {offsets = [0, 88], sizes = [16, 8], strides = [1, 1]} : vector<16x96xf32> to vector<16x8xf32>
    %218 = vector.shape_cast %214 : vector<16x8xf32> to vector<1x16x8xf32>
    %219 = vector.shape_cast %215 : vector<16x8xf32> to vector<1x16x8xf32>
    %220 = vector.shape_cast %216 : vector<16x8xf32> to vector<1x16x8xf32>
    %221 = vector.shape_cast %217 : vector<16x8xf32> to vector<1x16x8xf32>
    %222 = tpu.concatenate %218, %219, %220, %221 in 0 : vector<1x16x8xf32>, vector<1x16x8xf32>, vector<1x16x8xf32>, vector<1x16x8xf32> -> vector<4x16x8xf32>
    "tpu.trace_start"() <{level = 10 : i32, message = "hsd,htd->hst"}> : () -> ()
    %cst_80 = arith.constant dense<0.000000e+00> : vector<4x16x16xf32>
    %223 = tpu.matmul %204, %213, %cst_80 {dimension_numbers = #tpu.dot_dimension_numbers<[2], [2], [1], [1], [0, 0, 0, 1, 1, 1], [0], [0]>} : vector<4x16x8xf32>, vector<4x16x8xf32>, vector<4x16x16xf32> -> vector<4x16x16xf32>
    "tpu.trace_stop"() : () -> ()
    %cst_81 = arith.constant 0.353553385 : f32
    %224 = vector.broadcast %cst_81 : f32 to vector<4x16x16xf32>
    %225 = arith.mulf %223, %224 : vector<4x16x16xf32>
    %226 = vector.broadcast %26 : vector<1x16x16xf32> to vector<4x16x16xf32>
    %227 = arith.addf %225, %226 : vector<4x16x16xf32>
    %cst_82 = arith.constant dense<0xFF800000> : vector<4x16xf32>
    %228 = vector.multi_reduction <maximumf>, %227, %cst_82 [2] : vector<4x16x16xf32> to vector<4x16xf32>
    %229 = vector.shape_cast %228 : vector<4x16xf32> to vector<4x16x1xf32>
    %230 = vector.broadcast %229 : vector<4x16x1xf32> to vector<4x16x16xf32>
    %231 = arith.subf %227, %230 : vector<4x16x16xf32>
    %232 = math.exp %231 : vector<4x16x16xf32>
    %cst_83 = arith.constant dense<0.000000e+00> : vector<4x16xf32>
    %233 = vector.multi_reduction <add>, %232, %cst_83 [2] : vector<4x16x16xf32> to vector<4x16xf32>
    %234 = vector.shape_cast %233 : vector<4x16xf32> to vector<4x16x1xf32>
    %235 = tpu.reciprocal %234 {approx = true} : vector<4x16x1xf32> -> vector<4x16x1xf32>
    %236 = vector.broadcast %235 : vector<4x16x1xf32> to vector<4x16x16xf32>
    %237 = arith.mulf %232, %236 : vector<4x16x16xf32>
    "tpu.trace_start"() <{level = 10 : i32, message = "hst,htd->hsd"}> : () -> ()
    %cst_84 = arith.constant dense<0.000000e+00> : vector<4x16x8xf32>
    %238 = tpu.matmul %237, %222, %cst_84 {dimension_numbers = #tpu.dot_dimension_numbers<[2], [1], [1], [2], [0, 0, 0, 1, 1, 2], [0], [0]>} : vector<4x16x16xf32>, vector<4x16x8xf32>, vector<4x16x8xf32> -> vector<4x16x8xf32>
    "tpu.trace_stop"() : () -> ()
    %239 = vector.extract_strided_slice %238 {offsets = [0, 0, 0], sizes = [1, 16, 8], strides = [1, 1, 1]} : vector<4x16x8xf32> to vector<1x16x8xf32>
    %240 = vector.shape_cast %239 : vector<1x16x8xf32> to vector<16x8xf32>
    %241 = vector.extract_strided_slice %186 {offsets = [0, 0], sizes = [8, 32], strides = [1, 1]} : vector<32x32xf32> to vector<8x32xf32>
    %cst_85 = arith.constant dense<0.000000e+00> : vector<16x32xf32>
    %242 = tpu.matmul %240, %241, %cst_85 {dimension_numbers = #tpu.dot_dimension_numbers<[1], [0], [0], [1], [0, 0, 1, 1], [], []>} : vector<16x8xf32>, vector<8x32xf32>, vector<16x32xf32> -> vector<16x32xf32>
    %243 = vector.extract_strided_slice %238 {offsets = [1, 0, 0], sizes = [1, 16, 8], strides = [1, 1, 1]} : vector<4x16x8xf32> to vector<1x16x8xf32>
    %244 = vector.shape_cast %243 : vector<1x16x8xf32> to vector<16x8xf32>
    %245 = vector.extract_strided_slice %186 {offsets = [8, 0], sizes = [8, 32], strides = [1, 1]} : vector<32x32xf32> to vector<8x32xf32>
    %cst_86 = arith.constant dense<0.000000e+00> : vector<16x32xf32>
    %246 = tpu.matmul %244, %245, %cst_86 {dimension_numbers = #tpu.dot_dimension_numbers<[1], [0], [0], [1], [0, 0, 1, 1], [], []>} : vector<16x8xf32>, vector<8x32xf32>, vector<16x32xf32> -> vector<16x32xf32>
    %247 = arith.addf %242, %246 : vector<16x32xf32>
    %248 = vector.extract_strided_slice %238 {offsets = [2, 0, 0], sizes = [1, 16, 8], strides = [1, 1, 1]} : vector<4x16x8xf32> to vector<1x16x8xf32>
    %249 = vector.shape_cast %248 : vector<1x16x8xf32> to vector<16x8xf32>
    %250 = vector.extract_strided_slice %186 {offsets = [16, 0], sizes = [8, 32], strides = [1, 1]} : vector<32x32xf32> to vector<8x32xf32>
    %cst_87 = arith.constant dense<0.000000e+00> : vector<16x32xf32>
    %251 = tpu.matmul %249, %250, %cst_87 {dimension_numbers = #tpu.dot_dimension_numbers<[1], [0], [0], [1], [0, 0, 1, 1], [], []>} : vector<16x8xf32>, vector<8x32xf32>, vector<16x32xf32> -> vector<16x32xf32>
    %252 = arith.addf %247, %251 : vector<16x32xf32>
    %253 = vector.extract_strided_slice %238 {offsets = [3, 0, 0], sizes = [1, 16, 8], strides = [1, 1, 1]} : vector<4x16x8xf32> to vector<1x16x8xf32>
    %254 = vector.shape_cast %253 : vector<1x16x8xf32> to vector<16x8xf32>
    %255 = vector.extract_strided_slice %186 {offsets = [24, 0], sizes = [8, 32], strides = [1, 1]} : vector<32x32xf32> to vector<8x32xf32>
    %cst_88 = arith.constant dense<0.000000e+00> : vector<16x32xf32>
    %256 = tpu.matmul %254, %255, %cst_88 {dimension_numbers = #tpu.dot_dimension_numbers<[1], [0], [0], [1], [0, 0, 1, 1], [], []>} : vector<16x8xf32>, vector<8x32xf32>, vector<16x32xf32> -> vector<16x32xf32>
    %257 = arith.addf %252, %256 : vector<16x32xf32>
    %c1_89 = arith.constant 1 : index
    %c1_90 = arith.constant 1 : index
    %c0_91 = arith.constant 0 : index
    %258 = vector.load %arg4[%c1_89, %c1_90, %c0_91] : memref<2x8x128xf32, #tpu.memory_space<vmem>>, vector<1x1x32xf32>
    %259 = vector.shape_cast %258 : vector<1x1x32xf32> to vector<1x32xf32>
    %260 = vector.broadcast %259 : vector<1x32xf32> to vector<16x32xf32>
    %261 = arith.addf %257, %260 : vector<16x32xf32>
    %262 = arith.addf %182, %261 : vector<16x32xf32>
    %c1_92 = arith.constant 1 : index
    %c2_93 = arith.constant 2 : index
    %c0_94 = arith.constant 0 : index
    %263 = vector.load %arg4[%c1_92, %c2_93, %c0_94] : memref<2x8x128xf32, #tpu.memory_space<vmem>>, vector<1x1x32xf32>
    %264 = vector.shape_cast %263 : vector<1x1x32xf32> to vector<1x32xf32>
    %c1_95 = arith.constant 1 : index
    %c3_96 = arith.constant 3 : index
    %c0_97 = arith.constant 0 : index
    %265 = vector.load %arg4[%c1_95, %c3_96, %c0_97] : memref<2x8x128xf32, #tpu.memory_space<vmem>>, vector<1x1x32xf32>
    %266 = vector.shape_cast %265 : vector<1x1x32xf32> to vector<1x32xf32>
    %cst_98 = arith.constant dense<0.000000e+00> : vector<16xf32>
    %267 = vector.multi_reduction <add>, %262, %cst_98 [1] : vector<16x32xf32> to vector<16xf32>
    %268 = vector.shape_cast %267 : vector<16xf32> to vector<16x1xf32>
    %cst_99 = arith.constant 3.200000e+01 : f32
    %269 = vector.broadcast %cst_99 : f32 to vector<16x1xf32>
    %270 = arith.divf %268, %269 : vector<16x1xf32>
    %271 = vector.broadcast %270 : vector<16x1xf32> to vector<16x32xf32>
    %272 = arith.subf %262, %271 : vector<16x32xf32>
    %273 = arith.mulf %272, %272 : vector<16x32xf32>
    %cst_100 = arith.constant dense<0.000000e+00> : vector<16xf32>
    %274 = vector.multi_reduction <add>, %273, %cst_100 [1] : vector<16x32xf32> to vector<16xf32>
    %275 = vector.shape_cast %274 : vector<16xf32> to vector<16x1xf32>
    %cst_101 = arith.constant 3.200000e+01 : f32
    %276 = vector.broadcast %cst_101 : f32 to vector<16x1xf32>
    %277 = arith.divf %275, %276 : vector<16x1xf32>
    %278 = vector.broadcast %270 : vector<16x1xf32> to vector<16x32xf32>
    %279 = arith.subf %262, %278 : vector<16x32xf32>
    %cst_102 = arith.constant 9.99999996E-13 : f32
    %280 = vector.broadcast %cst_102 : f32 to vector<16x1xf32>
    %281 = arith.addf %277, %280 : vector<16x1xf32>
    %282 = math.rsqrt %281 : vector<16x1xf32>
    %283 = vector.broadcast %282 : vector<16x1xf32> to vector<16x32xf32>
    %284 = arith.mulf %279, %283 : vector<16x32xf32>
    %285 = vector.broadcast %264 : vector<1x32xf32> to vector<16x32xf32>
    %286 = arith.mulf %284, %285 : vector<16x32xf32>
    %287 = vector.broadcast %266 : vector<1x32xf32> to vector<16x32xf32>
    %288 = arith.addf %286, %287 : vector<16x32xf32>
    %cst_103 = arith.constant dense<0.000000e+00> : vector<16x64xf32>
    %289 = tpu.matmul %288, %188, %cst_103 {dimension_numbers = #tpu.dot_dimension_numbers<[1], [0], [0], [1], [0, 0, 1, 1], [], []>} : vector<16x32xf32>, vector<32x64xf32>, vector<16x64xf32> -> vector<16x64xf32>
    %c1_104 = arith.constant 1 : index
    %c4_105 = arith.constant 4 : index
    %c0_106 = arith.constant 0 : index
    %290 = vector.load %arg4[%c1_104, %c4_105, %c0_106] : memref<2x8x128xf32, #tpu.memory_space<vmem>>, vector<1x1x64xf32>
    %291 = vector.shape_cast %290 : vector<1x1x64xf32> to vector<1x64xf32>
    %292 = vector.broadcast %291 : vector<1x64xf32> to vector<16x64xf32>
    %293 = arith.addf %289, %292 : vector<16x64xf32>
    %294 = arith.mulf %293, %293 : vector<16x64xf32>
    %295 = arith.mulf %293, %294 : vector<16x64xf32>
    %cst_107 = arith.constant 4.471500e-02 : f32
    %296 = vector.broadcast %cst_107 : f32 to vector<16x64xf32>
    %297 = arith.mulf %296, %295 : vector<16x64xf32>
    %298 = arith.addf %293, %297 : vector<16x64xf32>
    %cst_108 = arith.constant 0.797884583 : f32
    %299 = vector.broadcast %cst_108 : f32 to vector<16x64xf32>
    %300 = arith.mulf %299, %298 : vector<16x64xf32>
    %301 = math.tanh %300 : vector<16x64xf32>
    %cst_109 = arith.constant 1.000000e+00 : f32
    %302 = vector.broadcast %cst_109 : f32 to vector<16x64xf32>
    %303 = arith.addf %302, %301 : vector<16x64xf32>
    %cst_110 = arith.constant 5.000000e-01 : f32
    %304 = vector.broadcast %cst_110 : f32 to vector<16x64xf32>
    %305 = arith.mulf %304, %303 : vector<16x64xf32>
    %306 = arith.mulf %293, %305 : vector<16x64xf32>
    %cst_111 = arith.constant dense<0.000000e+00> : vector<16x32xf32>
    %307 = tpu.matmul %306, %190, %cst_111 {dimension_numbers = #tpu.dot_dimension_numbers<[1], [0], [0], [1], [0, 0, 1, 1], [], []>} : vector<16x64xf32>, vector<64x32xf32>, vector<16x32xf32> -> vector<16x32xf32>
    %c1_112 = arith.constant 1 : index
    %c5_113 = arith.constant 5 : index
    %c0_114 = arith.constant 0 : index
    %308 = vector.load %arg4[%c1_112, %c5_113, %c0_114] : memref<2x8x128xf32, #tpu.memory_space<vmem>>, vector<1x1x32xf32>
    %309 = vector.shape_cast %308 : vector<1x1x32xf32> to vector<1x32xf32>
    %310 = vector.broadcast %309 : vector<1x32xf32> to vector<16x32xf32>
    %311 = arith.addf %307, %310 : vector<16x32xf32>
    %312 = arith.addf %288, %311 : vector<16x32xf32>
    %c1_115 = arith.constant 1 : index
    %c6_116 = arith.constant 6 : index
    %c0_117 = arith.constant 0 : index
    %313 = vector.load %arg4[%c1_115, %c6_116, %c0_117] : memref<2x8x128xf32, #tpu.memory_space<vmem>>, vector<1x1x32xf32>
    %314 = vector.shape_cast %313 : vector<1x1x32xf32> to vector<1x32xf32>
    %c1_118 = arith.constant 1 : index
    %c7_119 = arith.constant 7 : index
    %c0_120 = arith.constant 0 : index
    %315 = vector.load %arg4[%c1_118, %c7_119, %c0_120] : memref<2x8x128xf32, #tpu.memory_space<vmem>>, vector<1x1x32xf32>
    %316 = vector.shape_cast %315 : vector<1x1x32xf32> to vector<1x32xf32>
    %cst_121 = arith.constant dense<0.000000e+00> : vector<16xf32>
    %317 = vector.multi_reduction <add>, %312, %cst_121 [1] : vector<16x32xf32> to vector<16xf32>
    %318 = vector.shape_cast %317 : vector<16xf32> to vector<16x1xf32>
    %cst_122 = arith.constant 3.200000e+01 : f32
    %319 = vector.broadcast %cst_122 : f32 to vector<16x1xf32>
    %320 = arith.divf %318, %319 : vector<16x1xf32>
    %321 = vector.broadcast %320 : vector<16x1xf32> to vector<16x32xf32>
    %322 = arith.subf %312, %321 : vector<16x32xf32>
    %323 = arith.mulf %322, %322 : vector<16x32xf32>
    %cst_123 = arith.constant dense<0.000000e+00> : vector<16xf32>
    %324 = vector.multi_reduction <add>, %323, %cst_123 [1] : vector<16x32xf32> to vector<16xf32>
    %325 = vector.shape_cast %324 : vector<16xf32> to vector<16x1xf32>
    %cst_124 = arith.constant 3.200000e+01 : f32
    %326 = vector.broadcast %cst_124 : f32 to vector<16x1xf32>
    %327 = arith.divf %325, %326 : vector<16x1xf32>
    %328 = vector.broadcast %320 : vector<16x1xf32> to vector<16x32xf32>
    %329 = arith.subf %312, %328 : vector<16x32xf32>
    %cst_125 = arith.constant 9.99999996E-13 : f32
    %330 = vector.broadcast %cst_125 : f32 to vector<16x1xf32>
    %331 = arith.addf %327, %330 : vector<16x1xf32>
    %332 = math.rsqrt %331 : vector<16x1xf32>
    %333 = vector.broadcast %332 : vector<16x1xf32> to vector<16x32xf32>
    %334 = arith.mulf %329, %333 : vector<16x32xf32>
    %335 = vector.broadcast %314 : vector<1x32xf32> to vector<16x32xf32>
    %336 = arith.mulf %334, %335 : vector<16x32xf32>
    %337 = vector.broadcast %316 : vector<1x32xf32> to vector<16x32xf32>
    %338 = arith.addf %336, %337 : vector<16x32xf32>
    %c0_126 = arith.constant 0 : index
    %c0_127 = arith.constant 0 : index
    %339 = vector.load %arg5[%c0_126, %c0_127] : memref<32x256xf32, #tpu.memory_space<vmem>>, vector<32x32xf32>
    %cst_128 = arith.constant dense<0.000000e+00> : vector<16x32xf32>
    %340 = tpu.matmul %338, %339, %cst_128 {dimension_numbers = #tpu.dot_dimension_numbers<[1], [0], [0], [1], [0, 0, 1, 1], [], []>} : vector<16x32xf32>, vector<32x32xf32>, vector<16x32xf32> -> vector<16x32xf32>
    %c2_129 = arith.constant 2 : index
    %c0_130 = arith.constant 0 : index
    %341 = vector.load %arg6[%c2_129, %c0_130] : memref<4x128xf32, #tpu.memory_space<vmem>>, vector<1x32xf32>
    %342 = vector.broadcast %341 : vector<1x32xf32> to vector<16x32xf32>
    %343 = arith.addf %340, %342 : vector<16x32xf32>
    %344 = math.tanh %343 : vector<16x32xf32>
    %c0_131 = arith.constant 0 : index
    %c128_132 = arith.constant 128 : index
    %345 = vector.load %arg5[%c0_131, %c128_132] : memref<32x256xf32, #tpu.memory_space<vmem>>, vector<32x128xf32>
    %cst_133 = arith.constant dense<0.000000e+00> : vector<16x128xf32>
    %346 = tpu.matmul %344, %345, %cst_133 {dimension_numbers = #tpu.dot_dimension_numbers<[1], [0], [0], [1], [0, 0, 1, 1], [], []>} : vector<16x32xf32>, vector<32x128xf32>, vector<16x128xf32> -> vector<16x128xf32>
    %c3_134 = arith.constant 3 : index
    %c0_135 = arith.constant 0 : index
    %347 = vector.load %arg6[%c3_134, %c0_135] : memref<4x128xf32, #tpu.memory_space<vmem>>, vector<1x128xf32>
    %348 = vector.broadcast %347 : vector<1x128xf32> to vector<16x128xf32>
    %349 = arith.addf %346, %348 : vector<16x128xf32>
    %c0_136 = arith.constant 0 : index
    %c0_137 = arith.constant 0 : index
    %350 = vector.load %arg7[%c0_136, %c0_137] : memref<16x128xf32, #tpu.memory_space<vmem>>, vector<16x128xf32>
    tpu.vector_store %arg7[%c0_136, %c0_137], %349 {strides = array<i32>} : memref<16x128xf32, #tpu.memory_space<vmem>>, vector<16x128xf32>,
    return
  }
}

</mosaic_0001>

<llo_original>
// kernel: eq.8
$region0: #{eq.8}
  %s0 = inlined_call_operand.vmem [shape: s32[2,8], index: 0, kind: input, shape index: {}]
  %s1 = inlined_call_operand.vmem [shape: s32[16], index: 1, kind: output, shape index: {}]
  $region1: #{eq.8} parent=0
    #allocation0 [shape = 'u8[4096]{0}', space=vmem, size = 0x1000, scoped, tag = 'scoped mem for output reshape']
    #allocation1 [shape = 'u8[4096]{0}', space=vmem, size = 0x1000, scoped, tag = 'scoped mem for input reshape']
    %s3 = sshllo.u32 0, 2
    %v4 = vld [vmem:[%s0] sm:%s3]
    %5 = vst [vmem:[#allocation1] sm:%s3] %v4
    %v6 = vld [vmem:[#allocation1] sm:$0x1]
    %vm7 = vcmask 64512
    %8 = vst.msk [vmem:[#allocation0] sm:$0x1] %vm7, %v6
    %s9 = scalar_lea.vmem [#allocation1], 1
    %v10 = vld [vmem:[%s9] sm:$0x1]
    %11 = vrot.lane.b32.xlu0 %v10, 8
    %v12 = vpop.permute.xlu0 %11
    %vm13 = vcmask 130112
    %14 = vst.msk [vmem:[#allocation0] sm:$0x1] %vm13, %v12
    %s16 = sshllo.u32 0, 1
    %v18 = vld [vmem:[#allocation0] sm:%s16]
    %s19 = sshllo.u32 0, 1
    %20 = vst [vmem:[%s1] sm:%s19] %v18

// kernel: bert_classifier_forward.1
$region0: #{bert_classifier_forward.1}
  #allocation0 [shape = 'u32[]', space=smem, size = 0x4, offset = 0x4, fixed_abs, tag = 'smem constant byte address 0x4 - core index']
  #allocation1 [shape = 'u32[144,128]{1,0:T(1,128)}', space=vmem, size = 0x12000, scoped, tag = 'internal scratch']
  %s0 = inlined_call_operand.vmem [shape: f32[16,32], index: 0, kind: input, shape index: {}]
  %s1 = inlined_call_operand.vmem [shape: f32[16,16], index: 1, kind: input, shape index: {}]
  %s2 = inlined_call_operand.vmem [shape: f32[2,32,384], index: 2, kind: input, shape index: {}]
  %s3 = inlined_call_operand.vmem [shape: f32[2,64,32], index: 3, kind: input, shape index: {}]
  %s4 = inlined_call_operand.vmem [shape: f32[2,8,128], index: 4, kind: input, shape index: {}]
  %s5 = inlined_call_operand.vmem [shape: f32[32,256], index: 5, kind: input, shape index: {}]
  %s6 = inlined_call_operand.vmem [shape: f32[4,128], index: 6, kind: input, shape index: {}]
  %s7 = inlined_call_operand.vmem [shape: f32[16,128], index: 7, kind: output, shape index: {}]
  %s8 = sld [smem:[#allocation0]]
  $region38: #{bert_classifier_forward.1} parent=0
    _
  %s10 = ssub.s32 1, %s8
  %s11 = scalar_select 0, %s10, %s8
  // Predicated region
  $region2: #{bert_classifier_forward.1} parent=0 // pred_check
    _
  $region3: #{bert_classifier_forward.1} parent=0 // pred_check_branch
    %13 = sbr.rel (0) target = $region5
  $region4: #{bert_classifier_forward.1} parent=0 // pred_region
    _
  $region5: #{bert_classifier_forward.1} parent=0 // pred_fallthru
    _
  // Predicated region
  $region6: #{bert_classifier_forward.1} parent=0 // pred_check
    _
  $region7: #{bert_classifier_forward.1} parent=0 // pred_check_branch
    %15 = sbr.rel (0) target = $region9
  $region8: #{bert_classifier_forward.1} parent=0 // pred_region
    _
  $region9: #{bert_classifier_forward.1} parent=0 // pred_fallthru
    _
  // Predicated region
  $region10: #{bert_classifier_forward.1} parent=0 // pred_check
    _
  $region11: #{bert_classifier_forward.1} parent=0 // pred_check_branch
    %17 = sbr.rel (0) target = $region13
  $region12: #{bert_classifier_forward.1} parent=0 // pred_region
    _
  $region13: #{bert_classifier_forward.1} parent=0 // pred_fallthru
    _
  // Predicated region
  $region14: #{bert_classifier_forward.1} parent=0 // pred_check
    _
  $region15: #{bert_classifier_forward.1} parent=0 // pred_check_branch
    %19 = sbr.rel (0) target = $region17
  $region16: #{bert_classifier_forward.1} parent=0 // pred_region
    _
  $region17: #{bert_classifier_forward.1} parent=0 // pred_fallthru
    _
  // Predicated region
  $region18: #{bert_classifier_forward.1} parent=0 // pred_check
    _
  $region19: #{bert_classifier_forward.1} parent=0 // pred_check_branch
    %21 = sbr.rel (0) target = $region21
  $region20: #{bert_classifier_forward.1} parent=0 // pred_region
    _
  $region21: #{bert_classifier_forward.1} parent=0 // pred_fallthru
    _
  // Predicated region
  $region22: #{bert_classifier_forward.1} parent=0 // pred_check
    _
  $region23: #{bert_classifier_forward.1} parent=0 // pred_check_branch
    %23 = sbr.rel (0) target = $region25
  $region24: #{bert_classifier_forward.1} parent=0 // pred_region
    _
  $region25: #{bert_classifier_forward.1} parent=0 // pred_fallthru
    _
  // Predicated region
  $region26: #{bert_classifier_forward.1} parent=0 // pred_check
    _
  $region27: #{bert_classifier_forward.1} parent=0 // pred_check_branch
    %25 = sbr.rel (0) target = $region29
  $region28: #{bert_classifier_forward.1} parent=0 // pred_region
    _
  $region29: #{bert_classifier_forward.1} parent=0 // pred_fallthru
    _
  %v26 = vld [vmem:[%s0] sm:$0xff]
  %v27 = vld [vmem:[%s0 + $0x8] sm:$0xff]
  %v28 = vld [vmem:[%s6] sm:$0x1]
  %v29 = vld [vmem:[%s6 + $0x1] sm:$0x1]
  %vm30 = vcmask 261120
  %v31 = vsel %vm30, %v26, 0.0
  %32 = vadd.xlane.f32.xlu0 %v31
  %v33 = vpop.xlane.xlu0 %32
  %v34 = vsel %vm30, %v27, 0.0
  %35 = vadd.xlane.f32.xlu0 %v34
  %v36 = vpop.xlane.xlu0 %35
  %v37 = vrcp.pop 32.0
  %v38 = vmul.f32 %v33, %v37
  %v39 = vmul.f32 %v36, %v37
  %v40 = vsub.f32 %v26, %v38
  %v41 = vsub.f32 %v27, %v39
  %v42 = vmul.f32 %v40, %v40
  %v43 = vmul.f32 %v41, %v41
  %v44 = vsel %vm30, %v42, 0.0
  %45 = vadd.xlane.f32.xlu0 %v44
  %v46 = vpop.xlane.xlu0 %45
  %v47 = vsel %vm30, %v43, 0.0
  %48 = vadd.xlane.f32.xlu0 %v47
  %v49 = vpop.xlane.xlu0 %48
  %v50 = vmul.f32 %v46, %v37
  %v51 = vmul.f32 %v49, %v37
  %v52 = vadd.f32 %v50, 1e-12
  %v53 = vadd.f32 %v51, 1e-12
  %v54 = vrsqrt.pop %v52
  %v55 = vrsqrt.pop %v53
  %v56 = vmul.f32 %v40, %v54
  %v57 = vmul.f32 %v41, %v55
  %v58 = vlaneseq
  %v59 = vshrl.u32 %v58, 7
  %v60 = vsub.s32 0, %v59
  %v61 = vrot.slane %v28, %v60
  %v62 = vmul.f32 %v56, %v61
  %v63 = vmul.f32 %v57, %v61
  %v64 = vlaneseq
  %v65 = vshrl.u32 %v64, 7
  %v66 = vsub.s32 0, %v65
  %v67 = vrot.slane %v29, %v66
  %v68 = vadd.f32 %v62, %v67
  %v69 = vadd.f32 %v63, %v67
  %v70 = vld [vmem:[%s1] sm:$0xff]
  %v71 = vld [vmem:[%s1 + $0x8] sm:$0xff]
  %v72 = vld [vmem:[%s2] sm:$0xff]
  %v73 = vld [vmem:[%s2 + $0x18] sm:$0xff]
  %v74 = vld [vmem:[%s2 + $0x30] sm:$0xff]
  %v75 = vld [vmem:[%s2 + $0x48] sm:$0xff]
  %v76 = vld [vmem:[%s2 + $0x8] sm:$0xff]
  %v77 = vld [vmem:[%s2 + $0x20] sm:$0xff]
  %v78 = vld [vmem:[%s2 + $0x38] sm:$0xff]
  %v79 = vld [vmem:[%s2 + $0x50] sm:$0xff]
  %v80 = vld [vmem:[%s2 + $0x10] sm:$0xff]
  %v81 = vld [vmem:[%s2 + $0x28] sm:$0xff]
  %v82 = vld [vmem:[%s2 + $0x40] sm:$0xff]
  %v83 = vld [vmem:[%s2 + $0x58] sm:$0xff]
  %v84 = vld [vmem:[%s3] sm:$0xff]
  %v85 = vld [vmem:[%s3 + $0x8] sm:$0xff]
  %v86 = vld [vmem:[%s3 + $0x10] sm:$0xff]
  %v87 = vld [vmem:[%s3 + $0x18] sm:$0xff]
  %v88 = vld [vmem:[%s3 + $0x20] sm:$0xff]
  %v89 = vld [vmem:[%s3 + $0x28] sm:$0xff]
  %v90 = vld [vmem:[%s3 + $0x30] sm:$0xff]
  %v91 = vld [vmem:[%s3 + $0x38] sm:$0xff]
  %v92 = vld [vmem:[%s4] sm:$0x1]
  %v93 = vlaneseq
  %v94 = vshrl.u32 %v93, 7
  %v95 = vsub.s32 0, %v94
  %v96 = vrot.slane %v92, %v95
  %v98 = vsel %vm30, %v68, 0
  %v101 = vsel %vm30, %v69, 0
  %103 = vmatprep.subr.mxu0 0.0
  %104 = vmatpush1.msra.mxu0 %v72
  %105 = vmatprep.subr.mxu0 0.0
  %106 = vmatpush1.msra.mxu0 %v73
  %107 = vmatprep.subr.mxu0 0.0
  %108 = vmatpush1.msra.mxu0 %v74
  %109 = vmatprep.subr.mxu0 0.0
  %110 = vmatpush1.msra.mxu0 %v75
  %111 = vmatprep.subr.mxu0 0.0
  %112 = vmatpush1.msra.mxu0 0.0
  %113 = vmatprep.subr.mxu0 0.0
  %114 = vmatpush1.msra.mxu0 0.0
  %115 = vmatprep.subr.mxu0 0.0
  %116 = vmatpush1.msra.mxu0 0.0
  %117 = vmatprep.subr.mxu0 0.0
  %118 = vmatpush1.msra.mxu0 0.0
  %119 = vmatprep.subr.mxu0 0.0
  %120 = vmatpush1.msra.mxu0 0.0
  %121 = vmatprep.subr.mxu0 0.0
  %122 = vmatpush1.msra.mxu0 0.0
  %123 = vmatprep.subr.mxu0 0.0
  %124 = vmatpush1.msra.mxu0 0.0
  %125 = vmatprep.subr.mxu0 0.0
  %126 = vmatpush1.msra.mxu0 0.0
  %127 = vmatprep.subr.mxu0 0.0
  %128 = vmatpush1.msra.mxu0 0.0
  %129 = vmatprep.subr.mxu0 0.0
  %130 = vmatpush1.msra.mxu0 0.0
  %131 = vmatprep.subr.mxu0 0.0
  %132 = vmatpush1.msra.mxu0 0.0
  %133 = vmatprep.subr.mxu0 0.0
  %134 = vmatpush1.msra.mxu0 0.0
  %135 = vmatprep.subr.mxu0 0.0
  %136 = vmatpush1.msra.mxu0 0.0
  %137 = vmatprep.subr.mxu0 0.0
  %138 = vmatpush1.msra.mxu0 0.0
  %139 = vmatprep.subr.mxu0 0.0
  %140 = vmatpush1.msra.mxu0 0.0
  %141 = vmatprep.subr.mxu0 0.0
  %142 = vmatpush1.msra.mxu0 0.0
  %143 = vmatprep.subr.mxu0 0.0
  %144 = vmatpush1.msra.mxu0 0.0
  %145 = vmatprep.subr.mxu0 0.0
  %146 = vmatpush1.msra.mxu0 0.0
  %147 = vmatprep.subr.mxu0 0.0
  %148 = vmatpush1.msra.mxu0 0.0
  %149 = vmatprep.subr.mxu0 0.0
  %150 = vmatpush1.msra.mxu0 0.0
  %151 = vmatprep.subr.mxu0 0.0
  %152 = vmatpush1.msra.mxu0 0.0
  %153 = vmatprep.subr.mxu0 0.0
  %154 = vmatpush1.msra.mxu0 0.0
  %155 = vmatprep.subr.mxu0 0.0
  %156 = vmatpush1.msra.mxu0 0.0
  %157 = vmatprep.subr.mxu0 0.0
  %158 = vmatpush1.msra.mxu0 0.0
  %159 = vmatprep.subr.mxu0 0.0
  %160 = vmatpush1.msra.mxu0 0.0
  %161 = vmatprep.subr.mxu0 0.0
  %162 = vmatpush1.msra.mxu0 0.0
  %163 = vmatprep.subr.mxu0 0.0
  %164 = vmatpush1.msra.mxu0 0.0
  %165 = vmatprep.subr.mxu0 0.0
  %166 = vmatpush1.msra.mxu0 0.0
  %167 = vmatprep.mubr.f32.mxu0 0.0
  %168 = vmatmul.mubr.f32.gmra.mrb[0].mxu0 %v98
  %v169 = vpop.f32.mrb[0].mxu0
  %v170 = vadd.f32 %v96, %v169
  %v171 = vpop.f32.mrb[0].mxu0
  %172 = vmatprep.mubr.f32.mxu0 0.0
  %173 = vmatmul.mubr.f32.gmra.mrb[0].mxu0 %v101
  %v174 = vpop.f32.mrb[0].mxu0
  %v175 = vadd.f32 %v96, %v174
  %v176 = vpop.f32.mrb[0].mxu0
  %177 = vdwg.mxu0
  %180 = vrot.lane.b32.xlu0 %v170, 120
  %v181 = vpop.permute.xlu0 %180
  %182 = vrot.lane.b32.xlu0 %v175, 120
  %v183 = vpop.permute.xlu0 %182
  %184 = vrot.lane.b32.xlu0 %v170, 112
  %v185 = vpop.permute.xlu0 %184
  %186 = vrot.lane.b32.xlu0 %v175, 112
  %v187 = vpop.permute.xlu0 %186
  %188 = vrot.lane.b32.xlu0 %v170, 104
  %v189 = vpop.permute.xlu0 %188
  %190 = vrot.lane.b32.xlu0 %v175, 104
  %v191 = vpop.permute.xlu0 %190
  %192 = vrot.lane.b32.xlu0 %v170, 96
  %v193 = vpop.permute.xlu0 %192
  %194 = vrot.lane.b32.xlu0 %v175, 96
  %v195 = vpop.permute.xlu0 %194
  %vm196 = vcmask 64512
  %v197 = vsel %vm196, %v170, 0
  %v199 = vsel %vm196, %v175, 0
  %v201 = vsel %vm196, %v193, 0
  %v203 = vsel %vm196, %v195, 0
  %205 = vmatprep.subr.mxu0 0.0
  %206 = vmatpush1.xpose.msra.mxu0 %v201
  %207 = vmatprep.subr.mxu0 0.0
  %208 = vmatpush1.xpose.msra.mxu0 %v203
  %209 = vmatprep.subr.mxu0 0.0
  %210 = vmatpush1.xpose.msra.mxu0 0.0
  %211 = vmatprep.subr.mxu0 0.0
  %212 = vmatpush1.xpose.msra.mxu0 0.0
  %213 = vmatprep.subr.mxu0 0.0
  %214 = vmatpush1.xpose.msra.mxu0 0.0
  %215 = vmatprep.subr.mxu0 0.0
  %216 = vmatpush1.xpose.msra.mxu0 0.0
  %217 = vmatprep.subr.mxu0 0.0
  %218 = vmatpush1.xpose.msra.mxu0 0.0
  %219 = vmatprep.subr.mxu0 0.0
  %220 = vmatpush1.xpose.msra.mxu0 0.0
  %221 = vmatprep.subr.mxu0 0.0
  %222 = vmatpush1.xpose.msra.mxu0 0.0
  %223 = vmatprep.subr.mxu0 0.0
  %224 = vmatpush1.xpose.msra.mxu0 0.0
  %225 = vmatprep.subr.mxu0 0.0
  %226 = vmatpush1.xpose.msra.mxu0 0.0
  %227 = vmatprep.subr.mxu0 0.0
  %228 = vmatpush1.xpose.msra.mxu0 0.0
  %229 = vmatprep.subr.mxu0 0.0
  %230 = vmatpush1.xpose.msra.mxu0 0.0
  %231 = vmatprep.subr.mxu0 0.0
  %232 = vmatpush1.xpose.msra.mxu0 0.0
  %233 = vmatprep.subr.mxu0 0.0
  %234 = vmatpush1.xpose.msra.mxu0 0.0
  %235 = vmatprep.subr.mxu0 0.0
  %236 = vmatpush1.xpose.msra.mxu0 0.0
  %237 = vmatprep.subr.mxu0 0.0
  %238 = vmatpush1.xpose.msra.mxu0 0.0
  %239 = vmatprep.subr.mxu0 0.0
  %240 = vmatpush1.xpose.msra.mxu0 0.0
  %241 = vmatprep.subr.mxu0 0.0
  %242 = vmatpush1.xpose.msra.mxu0 0.0
  %243 = vmatprep.subr.mxu0 0.0
  %244 = vmatpush1.xpose.msra.mxu0 0.0
  %245 = vmatprep.subr.mxu0 0.0
  %246 = vmatpush1.xpose.msra.mxu0 0.0
  %247 = vmatprep.subr.mxu0 0.0
  %248 = vmatpush1.xpose.msra.mxu0 0.0
  %249 = vmatprep.subr.mxu0 0.0
  %250 = vmatpush1.xpose.msra.mxu0 0.0
  %251 = vmatprep.subr.mxu0 0.0
  %252 = vmatpush1.xpose.msra.mxu0 0.0
  %253 = vmatprep.subr.mxu0 0.0
  %254 = vmatpush1.xpose.msra.mxu0 0.0
  %255 = vmatprep.subr.mxu0 0.0
  %256 = vmatpush1.xpose.msra.mxu0 0.0
  %257 = vmatprep.subr.mxu0 0.0
  %258 = vmatpush1.xpose.msra.mxu0 0.0
  %259 = vmatprep.subr.mxu0 0.0
  %260 = vmatpush1.xpose.msra.mxu0 0.0
  %261 = vmatprep.subr.mxu0 0.0
  %262 = vmatpush1.xpose.msra.mxu0 0.0
  %263 = vmatprep.subr.mxu0 0.0
  %264 = vmatpush1.xpose.msra.mxu0 0.0
  %265 = vmatprep.subr.mxu0 0.0
  %266 = vmatpush1.xpose.msra.mxu0 0.0
  %267 = vmatprep.subr.mxu0 0.0
  %268 = vmatpush1.xpose.msra.mxu0 0.0
  %269 = vmatprep.mubr.f32.mxu0 0.0
  %270 = vmatmul.mubr.f32.gmra.mrb[0].mxu0 %v197
  %v271 = vpop.f32.mrb[0].mxu0
  %v272 = vadd.f32 0.0, %v271
  %v273 = vpop.f32.mrb[0].mxu0
  %274 = vmatprep.mubr.f32.mxu0 0.0
  %275 = vmatmul.mubr.f32.gmra.mrb[0].mxu0 %v199
  %v276 = vpop.f32.mrb[0].mxu0
  %v277 = vadd.f32 0.0, %v276
  %v278 = vpop.f32.mrb[0].mxu0
  %279 = vdwg.mxu0
  %280 = vrot.lane.b32.xlu0 %v181, 96
  %v281 = vpop.permute.xlu0 %280
  %282 = vrot.lane.b32.xlu0 %v183, 96
  %v283 = vpop.permute.xlu0 %282
  %v284 = vsel %vm196, %v181, 0
  %v286 = vsel %vm196, %v183, 0
  %v288 = vsel %vm196, %v281, 0
  %v290 = vsel %vm196, %v283, 0
  %292 = vmatprep.subr.mxu0 0.0
  %293 = vmatpush1.xpose.msra.mxu0 %v288
  %294 = vmatprep.subr.mxu0 0.0
  %295 = vmatpush1.xpose.msra.mxu0 %v290
  %296 = vmatprep.subr.mxu0 0.0
  %297 = vmatpush1.xpose.msra.mxu0 0.0
  %298 = vmatprep.subr.mxu0 0.0
  %299 = vmatpush1.xpose.msra.mxu0 0.0
  %300 = vmatprep.subr.mxu0 0.0
  %301 = vmatpush1.xpose.msra.mxu0 0.0
  %302 = vmatprep.subr.mxu0 0.0
  %303 = vmatpush1.xpose.msra.mxu0 0.0
  %304 = vmatprep.subr.mxu0 0.0
  %305 = vmatpush1.xpose.msra.mxu0 0.0
  %306 = vmatprep.subr.mxu0 0.0
  %307 = vmatpush1.xpose.msra.mxu0 0.0
  %308 = vmatprep.subr.mxu0 0.0
  %309 = vmatpush1.xpose.msra.mxu0 0.0
  %310 = vmatprep.subr.mxu0 0.0
  %311 = vmatpush1.xpose.msra.mxu0 0.0
  %312 = vmatprep.subr.mxu0 0.0
  %313 = vmatpush1.xpose.msra.mxu0 0.0
  %314 = vmatprep.subr.mxu0 0.0
  %315 = vmatpush1.xpose.msra.mxu0 0.0
  %316 = vmatprep.subr.mxu0 0.0
  %317 = vmatpush1.xpose.msra.mxu0 0.0
  %318 = vmatprep.subr.mxu0 0.0
  %319 = vmatpush1.xpose.msra.mxu0 0.0
  %320 = vmatprep.subr.mxu0 0.0
  %321 = vmatpush1.xpose.msra.mxu0 0.0
  %322 = vmatprep.subr.mxu0 0.0
  %323 = vmatpush1.xpose.msra.mxu0 0.0
  %324 = vmatprep.subr.mxu0 0.0
  %325 = vmatpush1.xpose.msra.mxu0 0.0
  %326 = vmatprep.subr.mxu0 0.0
  %327 = vmatpush1.xpose.msra.mxu0 0.0
  %328 = vmatprep.subr.mxu0 0.0
  %329 = vmatpush1.xpose.msra.mxu0 0.0
  %330 = vmatprep.subr.mxu0 0.0
  %331 = vmatpush1.xpose.msra.mxu0 0.0
  %332 = vmatprep.subr.mxu0 0.0
  %333 = vmatpush1.xpose.msra.mxu0 0.0
  %334 = vmatprep.subr.mxu0 0.0
  %335 = vmatpush1.xpose.msra.mxu0 0.0
  %336 = vmatprep.subr.mxu0 0.0
  %337 = vmatpush1.xpose.msra.mxu0 0.0
  %338 = vmatprep.subr.mxu0 0.0
  %339 = vmatpush1.xpose.msra.mxu0 0.0
  %340 = vmatprep.subr.mxu0 0.0
  %341 = vmatpush1.xpose.msra.mxu0 0.0
  %342 = vmatprep.subr.mxu0 0.0
  %343 = vmatpush1.xpose.msra.mxu0 0.0
  %344 = vmatprep.subr.mxu0 0.0
  %345 = vmatpush1.xpose.msra.mxu0 0.0
  %346 = vmatprep.subr.mxu0 0.0
  %347 = vmatpush1.xpose.msra.mxu0 0.0
  %348 = vmatprep.subr.mxu0 0.0
  %349 = vmatpush1.xpose.msra.mxu0 0.0
  %350 = vmatprep.subr.mxu0 0.0
  %351 = vmatpush1.xpose.msra.mxu0 0.0
  %352 = vmatprep.subr.mxu0 0.0
  %353 = vmatpush1.xpose.msra.mxu0 0.0
  %354 = vmatprep.subr.mxu0 0.0
  %355 = vmatpush1.xpose.msra.mxu0 0.0
  %356 = vmatprep.mubr.f32.mxu0 0.0
  %357 = vmatmul.mubr.f32.gmra.mrb[0].mxu0 %v284
  %v358 = vpop.f32.mrb[0].mxu0
  %v359 = vadd.f32 0.0, %v358
  %v360 = vpop.f32.mrb[0].mxu0
  %361 = vmatprep.mubr.f32.mxu0 0.0
  %362 = vmatmul.mubr.f32.gmra.mrb[0].mxu0 %v286
  %v363 = vpop.f32.mrb[0].mxu0
  %v364 = vadd.f32 0.0, %v363
  %v365 = vpop.f32.mrb[0].mxu0
  %366 = vdwg.mxu0
  %367 = vrot.lane.b32.xlu0 %v185, 96
  %v368 = vpop.permute.xlu0 %367
  %369 = vrot.lane.b32.xlu0 %v187, 96
  %v370 = vpop.permute.xlu0 %369
  %v371 = vsel %vm196, %v185, 0
  %v373 = vsel %vm196, %v187, 0
  %v375 = vsel %vm196, %v368, 0
  %v377 = vsel %vm196, %v370, 0
  %379 = vmatprep.subr.mxu0 0.0
  %380 = vmatpush1.xpose.msra.mxu0 %v375
  %381 = vmatprep.subr.mxu0 0.0
  %382 = vmatpush1.xpose.msra.mxu0 %v377
  %383 = vmatprep.subr.mxu0 0.0
  %384 = vmatpush1.xpose.msra.mxu0 0.0
  %385 = vmatprep.subr.mxu0 0.0
  %386 = vmatpush1.xpose.msra.mxu0 0.0
  %387 = vmatprep.subr.mxu0 0.0
  %388 = vmatpush1.xpose.msra.mxu0 0.0
  %389 = vmatprep.subr.mxu0 0.0
  %390 = vmatpush1.xpose.msra.mxu0 0.0
  %391 = vmatprep.subr.mxu0 0.0
  %392 = vmatpush1.xpose.msra.mxu0 0.0
  %393 = vmatprep.subr.mxu0 0.0
  %394 = vmatpush1.xpose.msra.mxu0 0.0
  %395 = vmatprep.subr.mxu0 0.0
  %396 = vmatpush1.xpose.msra.mxu0 0.0
  %397 = vmatprep.subr.mxu0 0.0
  %398 = vmatpush1.xpose.msra.mxu0 0.0
  %399 = vmatprep.subr.mxu0 0.0
  %400 = vmatpush1.xpose.msra.mxu0 0.0
  %401 = vmatprep.subr.mxu0 0.0
  %402 = vmatpush1.xpose.msra.mxu0 0.0
  %403 = vmatprep.subr.mxu0 0.0
  %404 = vmatpush1.xpose.msra.mxu0 0.0
  %405 = vmatprep.subr.mxu0 0.0
  %406 = vmatpush1.xpose.msra.mxu0 0.0
  %407 = vmatprep.subr.mxu0 0.0
  %408 = vmatpush1.xpose.msra.mxu0 0.0
  %409 = vmatprep.subr.mxu0 0.0
  %410 = vmatpush1.xpose.msra.mxu0 0.0
  %411 = vmatprep.subr.mxu0 0.0
  %412 = vmatpush1.xpose.msra.mxu0 0.0
  %413 = vmatprep.subr.mxu0 0.0
  %414 = vmatpush1.xpose.msra.mxu0 0.0
  %415 = vmatprep.subr.mxu0 0.0
  %416 = vmatpush1.xpose.msra.mxu0 0.0
  %417 = vmatprep.subr.mxu0 0.0
  %418 = vmatpush1.xpose.msra.mxu0 0.0
  %419 = vmatprep.subr.mxu0 0.0
  %420 = vmatpush1.xpose.msra.mxu0 0.0
  %421 = vmatprep.subr.mxu0 0.0
  %422 = vmatpush1.xpose.msra.mxu0 0.0
  %423 = vmatprep.subr.mxu0 0.0
  %424 = vmatpush1.xpose.msra.mxu0 0.0
  %425 = vmatprep.subr.mxu0 0.0
  %426 = vmatpush1.xpose.msra.mxu0 0.0
  %427 = vmatprep.subr.mxu0 0.0
  %428 = vmatpush1.xpose.msra.mxu0 0.0
  %429 = vmatprep.subr.mxu0 0.0
  %430 = vmatpush1.xpose.msra.mxu0 0.0
  %431 = vmatprep.subr.mxu0 0.0
  %432 = vmatpush1.xpose.msra.mxu0 0.0
  %433 = vmatprep.subr.mxu0 0.0
  %434 = vmatpush1.xpose.msra.mxu0 0.0
  %435 = vmatprep.subr.mxu0 0.0
  %436 = vmatpush1.xpose.msra.mxu0 0.0
  %437 = vmatprep.subr.mxu0 0.0
  %438 = vmatpush1.xpose.msra.mxu0 0.0
  %439 = vmatprep.subr.mxu0 0.0
  %440 = vmatpush1.xpose.msra.mxu0 0.0
  %441 = vmatprep.subr.mxu0 0.0
  %442 = vmatpush1.xpose.msra.mxu0 0.0
  %443 = vmatprep.mubr.f32.mxu0 0.0
  %444 = vmatmul.mubr.f32.gmra.mrb[0].mxu0 %v371
  %v445 = vpop.f32.mrb[0].mxu0
  %v446 = vadd.f32 0.0, %v445
  %v447 = vpop.f32.mrb[0].mxu0
  %448 = vmatprep.mubr.f32.mxu0 0.0
  %449 = vmatmul.mubr.f32.gmra.mrb[0].mxu0 %v373
  %v450 = vpop.f32.mrb[0].mxu0
  %v451 = vadd.f32 0.0, %v450
  %v452 = vpop.f32.mrb[0].mxu0
  %453 = vdwg.mxu0
  %454 = vrot.lane.b32.xlu0 %v189, 96
  %v455 = vpop.permute.xlu0 %454
  %456 = vrot.lane.b32.xlu0 %v191, 96
  %v457 = vpop.permute.xlu0 %456
  %v458 = vsel %vm196, %v189, 0
  %v460 = vsel %vm196, %v191, 0
  %v462 = vsel %vm196, %v455, 0
  %v464 = vsel %vm196, %v457, 0
  %466 = vmatprep.subr.mxu0 0.0
  %467 = vmatpush1.xpose.msra.mxu0 %v462
  %468 = vmatprep.subr.mxu0 0.0
  %469 = vmatpush1.xpose.msra.mxu0 %v464
  %470 = vmatprep.subr.mxu0 0.0
  %471 = vmatpush1.xpose.msra.mxu0 0.0
  %472 = vmatprep.subr.mxu0 0.0
  %473 = vmatpush1.xpose.msra.mxu0 0.0
  %474 = vmatprep.subr.mxu0 0.0
  %475 = vmatpush1.xpose.msra.mxu0 0.0
  %476 = vmatprep.subr.mxu0 0.0
  %477 = vmatpush1.xpose.msra.mxu0 0.0
  %478 = vmatprep.subr.mxu0 0.0
  %479 = vmatpush1.xpose.msra.mxu0 0.0
  %480 = vmatprep.subr.mxu0 0.0
  %481 = vmatpush1.xpose.msra.mxu0 0.0
  %482 = vmatprep.subr.mxu0 0.0
  %483 = vmatpush1.xpose.msra.mxu0 0.0
  %484 = vmatprep.subr.mxu0 0.0
  %485 = vmatpush1.xpose.msra.mxu0 0.0
  %486 = vmatprep.subr.mxu0 0.0
  %487 = vmatpush1.xpose.msra.mxu0 0.0
  %488 = vmatprep.subr.mxu0 0.0
  %489 = vmatpush1.xpose.msra.mxu0 0.0
  %490 = vmatprep.subr.mxu0 0.0
  %491 = vmatpush1.xpose.msra.mxu0 0.0
  %492 = vmatprep.subr.mxu0 0.0
  %493 = vmatpush1.xpose.msra.mxu0 0.0
  %494 = vmatprep.subr.mxu0 0.0
  %495 = vmatpush1.xpose.msra.mxu0 0.0
  %496 = vmatprep.subr.mxu0 0.0
  %497 = vmatpush1.xpose.msra.mxu0 0.0
  %498 = vmatprep.subr.mxu0 0.0
  %499 = vmatpush1.xpose.msra.mxu0 0.0
  %500 = vmatprep.subr.mxu0 0.0
  %501 = vmatpush1.xpose.msra.mxu0 0.0
  %502 = vmatprep.subr.mxu0 0.0
  %503 = vmatpush1.xpose.msra.mxu0 0.0
  %504 = vmatprep.subr.mxu0 0.0
  %505 = vmatpush1.xpose.msra.mxu0 0.0
  %506 = vmatprep.subr.mxu0 0.0
  %507 = vmatpush1.xpose.msra.mxu0 0.0
  %508 = vmatprep.subr.mxu0 0.0
  %509 = vmatpush1.xpose.msra.mxu0 0.0
  %510 = vmatprep.subr.mxu0 0.0
  %511 = vmatpush1.xpose.msra.mxu0 0.0
  %512 = vmatprep.subr.mxu0 0.0
  %513 = vmatpush1.xpose.msra.mxu0 0.0
  %514 = vmatprep.subr.mxu0 0.0
  %515 = vmatpush1.xpose.msra.mxu0 0.0
  %516 = vmatprep.subr.mxu0 0.0
  %517 = vmatpush1.xpose.msra.mxu0 0.0
  %518 = vmatprep.subr.mxu0 0.0
  %519 = vmatpush1.xpose.msra.mxu0 0.0
  %520 = vmatprep.subr.mxu0 0.0
  %521 = vmatpush1.xpose.msra.mxu0 0.0
  %522 = vmatprep.subr.mxu0 0.0
  %523 = vmatpush1.xpose.msra.mxu0 0.0
  %524 = vmatprep.subr.mxu0 0.0
  %525 = vmatpush1.xpose.msra.mxu0 0.0
  %526 = vmatprep.subr.mxu0 0.0
  %527 = vmatpush1.xpose.msra.mxu0 0.0
  %528 = vmatprep.subr.mxu0 0.0
  %529 = vmatpush1.xpose.msra.mxu0 0.0
  %530 = vmatprep.mubr.f32.mxu0 0.0
  %531 = vmatmul.mubr.f32.gmra.mrb[0].mxu0 %v458
  %v532 = vpop.f32.mrb[0].mxu0
  %v533 = vadd.f32 0.0, %v532
  %v534 = vpop.f32.mrb[0].mxu0
  %535 = vmatprep.mubr.f32.mxu0 0.0
  %536 = vmatmul.mubr.f32.gmra.mrb[0].mxu0 %v460
  %v537 = vpop.f32.mrb[0].mxu0
  %v538 = vadd.f32 0.0, %v537
  %v539 = vpop.f32.mrb[0].mxu0
  %540 = vdwg.mxu0
  %v541 = vmul.f32 %v272, 0.35355338
  %v542 = vmul.f32 %v277, 0.35355338
  %v543 = vmul.f32 %v359, 0.35355338
  %v544 = vmul.f32 %v364, 0.35355338
  %v545 = vmul.f32 %v446, 0.35355338
  %v546 = vmul.f32 %v451, 0.35355338
  %v547 = vmul.f32 %v533, 0.35355338
  %v548 = vmul.f32 %v538, 0.35355338
  %v549 = vadd.f32 %v541, %v70
  %v550 = vadd.f32 %v542, %v71
  %v551 = vadd.f32 %v543, %v70
  %v552 = vadd.f32 %v544, %v71
  %v553 = vadd.f32 %v545, %v70
  %v554 = vadd.f32 %v546, %v71
  %v555 = vadd.f32 %v547, %v70
  %v556 = vadd.f32 %v548, %v71
  %vm557 = vcmask 130048
  %v558 = vsel %vm557, %v549, -inf
  %559 = vmax.xlane.f32.xlu0 %v558
  %v560 = vpop.xlane.xlu0 %559
  %v561 = vsel %vm557, %v550, -inf
  %562 = vmax.xlane.f32.xlu0 %v561
  %v563 = vpop.xlane.xlu0 %562
  %v564 = vsel %vm557, %v551, -inf
  %565 = vmax.xlane.f32.xlu0 %v564
  %v566 = vpop.xlane.xlu0 %565
  %v567 = vsel %vm557, %v552, -inf
  %568 = vmax.xlane.f32.xlu0 %v567
  %v569 = vpop.xlane.xlu0 %568
  %v570 = vsel %vm557, %v553, -inf
  %571 = vmax.xlane.f32.xlu0 %v570
  %v572 = vpop.xlane.xlu0 %571
  %v573 = vsel %vm557, %v554, -inf
  %574 = vmax.xlane.f32.xlu0 %v573
  %v575 = vpop.xlane.xlu0 %574
  %v576 = vsel %vm557, %v555, -inf
  %577 = vmax.xlane.f32.xlu0 %v576
  %v578 = vpop.xlane.xlu0 %577
  %v579 = vsel %vm557, %v556, -inf
  %580 = vmax.xlane.f32.xlu0 %v579
  %v581 = vpop.xlane.xlu0 %580
  %v582 = vsub.f32 %v549, %v560
  %v583 = vsub.f32 %v550, %v563
  %v584 = vsub.f32 %v551, %v566
  %v585 = vsub.f32 %v552, %v569
  %v586 = vsub.f32 %v553, %v572
  %v587 = vsub.f32 %v554, %v575
  %v588 = vsub.f32 %v555, %v578
  %v589 = vsub.f32 %v556, %v581
  %v590 = vmul.f32 %v582, 1.442695
  %v591 = vpow.pop %v590
  %v592 = vmul.f32 %v583, 1.442695
  %v593 = vpow.pop %v592
  %v594 = vmul.f32 %v584, 1.442695
  %v595 = vpow.pop %v594
  %v596 = vmul.f32 %v585, 1.442695
  %v597 = vpow.pop %v596
  %v598 = vmul.f32 %v586, 1.442695
  %v599 = vpow.pop %v598
  %v600 = vmul.f32 %v587, 1.442695
  %v601 = vpow.pop %v600
  %v602 = vmul.f32 %v588, 1.442695
  %v603 = vpow.pop %v602
  %v604 = vmul.f32 %v589, 1.442695
  %v605 = vpow.pop %v604
  %v606 = vsel %vm557, %v591, 0.0
  %607 = vadd.xlane.f32.xlu0 %v606
  %v608 = vpop.xlane.xlu0 %607
  %v609 = vsel %vm557, %v593, 0.0
  %610 = vadd.xlane.f32.xlu0 %v609
  %v611 = vpop.xlane.xlu0 %610
  %v612 = vsel %vm557, %v595, 0.0
  %613 = vadd.xlane.f32.xlu0 %v612
  %v614 = vpop.xlane.xlu0 %613
  %v615 = vsel %vm557, %v597, 0.0
  %616 = vadd.xlane.f32.xlu0 %v615
  %v617 = vpop.xlane.xlu0 %616
  %v618 = vsel %vm557, %v599, 0.0
  %619 = vadd.xlane.f32.xlu0 %v618
  %v620 = vpop.xlane.xlu0 %619
  %v621 = vsel %vm557, %v601, 0.0
  %622 = vadd.xlane.f32.xlu0 %v621
  %v623 = vpop.xlane.xlu0 %622
  %v624 = vsel %vm557, %v603, 0.0
  %625 = vadd.xlane.f32.xlu0 %v624
  %v626 = vpop.xlane.xlu0 %625
  %v627 = vsel %vm557, %v605, 0.0
  %628 = vadd.xlane.f32.xlu0 %v627
  %v629 = vpop.xlane.xlu0 %628
  %v630 = vrcp.pop %v608
  %v631 = vrcp.pop %v611
  %v632 = vrcp.pop %v614
  %v633 = vrcp.pop %v617
  %v634 = vrcp.pop %v620
  %v635 = vrcp.pop %v623
  %v636 = vrcp.pop %v626
  %v637 = vrcp.pop %v629
  %v638 = vmul.f32 %v591, %v630
  %v639 = vmul.f32 %v593, %v631
  %v640 = vmul.f32 %v595, %v632
  %v641 = vmul.f32 %v597, %v633
  %v642 = vmul.f32 %v599, %v634
  %v643 = vmul.f32 %v601, %v635
  %v644 = vmul.f32 %v603, %v636
  %v645 = vmul.f32 %v605, %v637
  %646 = vrot.lane.b32.xlu0 %v170, 64
  %v647 = vpop.permute.xlu0 %646
  %648 = vrot.lane.b32.xlu0 %v175, 64
  %v649 = vpop.permute.xlu0 %648
  %v653 = vsel %vm557, %v638, 0
  %v656 = vsel %vm557, %v639, 0
  %658 = vmatprep.subr.mxu0 0.0
  %659 = vmatpush1.msra.mxu0 %v647
  %660 = vmatprep.subr.mxu0 0.0
  %661 = vmatpush1.msra.mxu0 %v649
  %662 = vmatprep.subr.mxu0 0.0
  %663 = vmatpush1.msra.mxu0 0.0
  %664 = vmatprep.subr.mxu0 0.0
  %665 = vmatpush1.msra.mxu0 0.0
  %666 = vmatprep.subr.mxu0 0.0
  %667 = vmatpush1.msra.mxu0 0.0
  %668 = vmatprep.subr.mxu0 0.0
  %669 = vmatpush1.msra.mxu0 0.0
  %670 = vmatprep.subr.mxu0 0.0
  %671 = vmatpush1.msra.mxu0 0.0
  %672 = vmatprep.subr.mxu0 0.0
  %673 = vmatpush1.msra.mxu0 0.0
  %674 = vmatprep.subr.mxu0 0.0
  %675 = vmatpush1.msra.mxu0 0.0
  %676 = vmatprep.subr.mxu0 0.0
  %677 = vmatpush1.msra.mxu0 0.0
  %678 = vmatprep.subr.mxu0 0.0
  %679 = vmatpush1.msra.mxu0 0.0
  %680 = vmatprep.subr.mxu0 0.0
  %681 = vmatpush1.msra.mxu0 0.0
  %682 = vmatprep.subr.mxu0 0.0
  %683 = vmatpush1.msra.mxu0 0.0
  %684 = vmatprep.subr.mxu0 0.0
  %685 = vmatpush1.msra.mxu0 0.0
  %686 = vmatprep.subr.mxu0 0.0
  %687 = vmatpush1.msra.mxu0 0.0
  %688 = vmatprep.subr.mxu0 0.0
  %689 = vmatpush1.msra.mxu0 0.0
  %690 = vmatprep.subr.mxu0 0.0
  %691 = vmatpush1.msra.mxu0 0.0
  %692 = vmatprep.subr.mxu0 0.0
  %693 = vmatpush1.msra.mxu0 0.0
  %694 = vmatprep.subr.mxu0 0.0
  %695 = vmatpush1.msra.mxu0 0.0
  %696 = vmatprep.subr.mxu0 0.0
  %697 = vmatpush1.msra.mxu0 0.0
  %698 = vmatprep.subr.mxu0 0.0
  %699 = vmatpush1.msra.mxu0 0.0
  %700 = vmatprep.subr.mxu0 0.0
  %701 = vmatpush1.msra.mxu0 0.0
  %702 = vmatprep.subr.mxu0 0.0
  %703 = vmatpush1.msra.mxu0 0.0
  %704 = vmatprep.subr.mxu0 0.0
  %705 = vmatpush1.msra.mxu0 0.0
  %706 = vmatprep.subr.mxu0 0.0
  %707 = vmatpush1.msra.mxu0 0.0
  %708 = vmatprep.subr.mxu0 0.0
  %709 = vmatpush1.msra.mxu0 0.0
  %710 = vmatprep.subr.mxu0 0.0
  %711 = vmatpush1.msra.mxu0 0.0
  %712 = vmatprep.subr.mxu0 0.0
  %713 = vmatpush1.msra.mxu0 0.0
  %714 = vmatprep.subr.mxu0 0.0
  %715 = vmatpush1.msra.mxu0 0.0
  %716 = vmatprep.subr.mxu0 0.0
  %717 = vmatpush1.msra.mxu0 0.0
  %718 = vmatprep.subr.mxu0 0.0
  %719 = vmatpush1.msra.mxu0 0.0
  %720 = vmatprep.subr.mxu0 0.0
  %721 = vmatpush1.msra.mxu0 0.0
  %722 = vmatprep.mubr.f32.mxu0 0.0
  %723 = vmatmul.mubr.f32.gmra.mrb[0].mxu0 %v653
  %v724 = vpop.f32.mrb[0].mxu0
  %v725 = vadd.f32 0.0, %v724
  %v726 = vpop.f32.mrb[0].mxu0
  %727 = vmatprep.mubr.f32.mxu0 0.0
  %728 = vmatmul.mubr.f32.gmra.mrb[0].mxu0 %v656
  %v729 = vpop.f32.mrb[0].mxu0
  %v730 = vadd.f32 0.0, %v729
  %v731 = vpop.f32.mrb[0].mxu0
  %732 = vdwg.mxu0
  %733 = vrot.lane.b32.xlu0 %v181, 64
  %v734 = vpop.permute.xlu0 %733
  %735 = vrot.lane.b32.xlu0 %v183, 64
  %v736 = vpop.permute.xlu0 %735
  %v740 = vsel %vm557, %v640, 0
  %v743 = vsel %vm557, %v641, 0
  %745 = vmatprep.subr.mxu0 0.0
  %746 = vmatpush1.msra.mxu0 %v734
  %747 = vmatprep.subr.mxu0 0.0
  %748 = vmatpush1.msra.mxu0 %v736
  %749 = vmatprep.subr.mxu0 0.0
  %750 = vmatpush1.msra.mxu0 0.0
  %751 = vmatprep.subr.mxu0 0.0
  %752 = vmatpush1.msra.mxu0 0.0
  %753 = vmatprep.subr.mxu0 0.0
  %754 = vmatpush1.msra.mxu0 0.0
  %755 = vmatprep.subr.mxu0 0.0
  %756 = vmatpush1.msra.mxu0 0.0
  %757 = vmatprep.subr.mxu0 0.0
  %758 = vmatpush1.msra.mxu0 0.0
  %759 = vmatprep.subr.mxu0 0.0
  %760 = vmatpush1.msra.mxu0 0.0
  %761 = vmatprep.subr.mxu0 0.0
  %762 = vmatpush1.msra.mxu0 0.0
  %763 = vmatprep.subr.mxu0 0.0
  %764 = vmatpush1.msra.mxu0 0.0
  %765 = vmatprep.subr.mxu0 0.0
  %766 = vmatpush1.msra.mxu0 0.0
  %767 = vmatprep.subr.mxu0 0.0
  %768 = vmatpush1.msra.mxu0 0.0
  %769 = vmatprep.subr.mxu0 0.0
  %770 = vmatpush1.msra.mxu0 0.0
  %771 = vmatprep.subr.mxu0 0.0
  %772 = vmatpush1.msra.mxu0 0.0
  %773 = vmatprep.subr.mxu0 0.0
  %774 = vmatpush1.msra.mxu0 0.0
  %775 = vmatprep.subr.mxu0 0.0
  %776 = vmatpush1.msra.mxu0 0.0
  %777 = vmatprep.subr.mxu0 0.0
  %778 = vmatpush1.msra.mxu0 0.0
  %779 = vmatprep.subr.mxu0 0.0
  %780 = vmatpush1.msra.mxu0 0.0
  %781 = vmatprep.subr.mxu0 0.0
  %782 = vmatpush1.msra.mxu0 0.0
  %783 = vmatprep.subr.mxu0 0.0
  %784 = vmatpush1.msra.mxu0 0.0
  %785 = vmatprep.subr.mxu0 0.0
  %786 = vmatpush1.msra.mxu0 0.0
  %787 = vmatprep.subr.mxu0 0.0
  %788 = vmatpush1.msra.mxu0 0.0
  %789 = vmatprep.subr.mxu0 0.0
  %790 = vmatpush1.msra.mxu0 0.0
  %791 = vmatprep.subr.mxu0 0.0
  %792 = vmatpush1.msra.mxu0 0.0
  %793 = vmatprep.subr.mxu0 0.0
  %794 = vmatpush1.msra.mxu0 0.0
  %795 = vmatprep.subr.mxu0 0.0
  %796 = vmatpush1.msra.mxu0 0.0
  %797 = vmatprep.subr.mxu0 0.0
  %798 = vmatpush1.msra.mxu0 0.0
  %799 = vmatprep.subr.mxu0 0.0
  %800 = vmatpush1.msra.mxu0 0.0
  %801 = vmatprep.subr.mxu0 0.0
  %802 = vmatpush1.msra.mxu0 0.0
  %803 = vmatprep.subr.mxu0 0.0
  %804 = vmatpush1.msra.mxu0 0.0
  %805 = vmatprep.subr.mxu0 0.0
  %806 = vmatpush1.msra.mxu0 0.0
  %807 = vmatprep.subr.mxu0 0.0
  %808 = vmatpush1.msra.mxu0 0.0
  %809 = vmatprep.mubr.f32.mxu0 0.0
  %810 = vmatmul.mubr.f32.gmra.mrb[0].mxu0 %v740
  %v811 = vpop.f32.mrb[0].mxu0
  %v812 = vadd.f32 0.0, %v811
  %v813 = vpop.f32.mrb[0].mxu0
  %814 = vmatprep.mubr.f32.mxu0 0.0
  %815 = vmatmul.mubr.f32.gmra.mrb[0].mxu0 %v743
  %v816 = vpop.f32.mrb[0].mxu0
  %v817 = vadd.f32 0.0, %v816
  %v818 = vpop.f32.mrb[0].mxu0
  %819 = vdwg.mxu0
  %820 = vrot.lane.b32.xlu0 %v185, 64
  %v821 = vpop.permute.xlu0 %820
  %822 = vrot.lane.b32.xlu0 %v187, 64
  %v823 = vpop.permute.xlu0 %822
  %v827 = vsel %vm557, %v642, 0
  %v830 = vsel %vm557, %v643, 0
  %832 = vmatprep.subr.mxu0 0.0
  %833 = vmatpush1.msra.mxu0 %v821
  %834 = vmatprep.subr.mxu0 0.0
  %835 = vmatpush1.msra.mxu0 %v823
  %836 = vmatprep.subr.mxu0 0.0
  %837 = vmatpush1.msra.mxu0 0.0
  %838 = vmatprep.subr.mxu0 0.0
  %839 = vmatpush1.msra.mxu0 0.0
  %840 = vmatprep.subr.mxu0 0.0
  %841 = vmatpush1.msra.mxu0 0.0
  %842 = vmatprep.subr.mxu0 0.0
  %843 = vmatpush1.msra.mxu0 0.0
  %844 = vmatprep.subr.mxu0 0.0
  %845 = vmatpush1.msra.mxu0 0.0
  %846 = vmatprep.subr.mxu0 0.0
  %847 = vmatpush1.msra.mxu0 0.0
  %848 = vmatprep.subr.mxu0 0.0
  %849 = vmatpush1.msra.mxu0 0.0
  %850 = vmatprep.subr.mxu0 0.0
  %851 = vmatpush1.msra.mxu0 0.0
  %852 = vmatprep.subr.mxu0 0.0
  %853 = vmatpush1.msra.mxu0 0.0
  %854 = vmatprep.subr.mxu0 0.0
  %855 = vmatpush1.msra.mxu0 0.0
  %856 = vmatprep.subr.mxu0 0.0
  %857 = vmatpush1.msra.mxu0 0.0
  %858 = vmatprep.subr.mxu0 0.0
  %859 = vmatpush1.msra.mxu0 0.0
  %860 = vmatprep.subr.mxu0 0.0
  %861 = vmatpush1.msra.mxu0 0.0
  %862 = vmatprep.subr.mxu0 0.0
  %863 = vmatpush1.msra.mxu0 0.0
  %864 = vmatprep.subr.mxu0 0.0
  %865 = vmatpush1.msra.mxu0 0.0
  %866 = vmatprep.subr.mxu0 0.0
  %867 = vmatpush1.msra.mxu0 0.0
  %868 = vmatprep.subr.mxu0 0.0
  %869 = vmatpush1.msra.mxu0 0.0
  %870 = vmatprep.subr.mxu0 0.0
  %871 = vmatpush1.msra.mxu0 0.0
  %872 = vmatprep.subr.mxu0 0.0
  %873 = vmatpush1.msra.mxu0 0.0
  %874 = vmatprep.subr.mxu0 0.0
  %875 = vmatpush1.msra.mxu0 0.0
  %876 = vmatprep.subr.mxu0 0.0
  %877 = vmatpush1.msra.mxu0 0.0
  %878 = vmatprep.subr.mxu0 0.0
  %879 = vmatpush1.msra.mxu0 0.0
  %880 = vmatprep.subr.mxu0 0.0
  %881 = vmatpush1.msra.mxu0 0.0
  %882 = vmatprep.subr.mxu0 0.0
  %883 = vmatpush1.msra.mxu0 0.0
  %884 = vmatprep.subr.mxu0 0.0
  %885 = vmatpush1.msra.mxu0 0.0
  %886 = vmatprep.subr.mxu0 0.0
  %887 = vmatpush1.msra.mxu0 0.0
  %888 = vmatprep.subr.mxu0 0.0
  %889 = vmatpush1.msra.mxu0 0.0
  %890 = vmatprep.subr.mxu0 0.0
  %891 = vmatpush1.msra.mxu0 0.0
  %892 = vmatprep.subr.mxu0 0.0
  %893 = vmatpush1.msra.mxu0 0.0
  %894 = vmatprep.subr.mxu0 0.0
  %895 = vmatpush1.msra.mxu0 0.0
  %896 = vmatprep.mubr.f32.mxu0 0.0
  %897 = vmatmul.mubr.f32.gmra.mrb[0].mxu0 %v827
  %v898 = vpop.f32.mrb[0].mxu0
  %v899 = vadd.f32 0.0, %v898
  %v900 = vpop.f32.mrb[0].mxu0
  %901 = vmatprep.mubr.f32.mxu0 0.0
  %902 = vmatmul.mubr.f32.gmra.mrb[0].mxu0 %v830
  %v903 = vpop.f32.mrb[0].mxu0
  %v904 = vadd.f32 0.0, %v903
  %v905 = vpop.f32.mrb[0].mxu0
  %906 = vdwg.mxu0
  %907 = vrot.lane.b32.xlu0 %v189, 64
  %v908 = vpop.permute.xlu0 %907
  %909 = vrot.lane.b32.xlu0 %v191, 64
  %v910 = vpop.permute.xlu0 %909
  %v914 = vsel %vm557, %v644, 0
  %v917 = vsel %vm557, %v645, 0
  %919 = vmatprep.subr.mxu0 0.0
  %920 = vmatpush1.msra.mxu0 %v908
  %921 = vmatprep.subr.mxu0 0.0
  %922 = vmatpush1.msra.mxu0 %v910
  %923 = vmatprep.subr.mxu0 0.0
  %924 = vmatpush1.msra.mxu0 0.0
  %925 = vmatprep.subr.mxu0 0.0
  %926 = vmatpush1.msra.mxu0 0.0
  %927 = vmatprep.subr.mxu0 0.0
  %928 = vmatpush1.msra.mxu0 0.0
  %929 = vmatprep.subr.mxu0 0.0
  %930 = vmatpush1.msra.mxu0 0.0
  %931 = vmatprep.subr.mxu0 0.0
  %932 = vmatpush1.msra.mxu0 0.0
  %933 = vmatprep.subr.mxu0 0.0
  %934 = vmatpush1.msra.mxu0 0.0
  %935 = vmatprep.subr.mxu0 0.0
  %936 = vmatpush1.msra.mxu0 0.0
  %937 = vmatprep.subr.mxu0 0.0
  %938 = vmatpush1.msra.mxu0 0.0
  %939 = vmatprep.subr.mxu0 0.0
  %940 = vmatpush1.msra.mxu0 0.0
  %941 = vmatprep.subr.mxu0 0.0
  %942 = vmatpush1.msra.mxu0 0.0
  %943 = vmatprep.subr.mxu0 0.0
  %944 = vmatpush1.msra.mxu0 0.0
  %945 = vmatprep.subr.mxu0 0.0
  %946 = vmatpush1.msra.mxu0 0.0
  %947 = vmatprep.subr.mxu0 0.0
  %948 = vmatpush1.msra.mxu0 0.0
  %949 = vmatprep.subr.mxu0 0.0
  %950 = vmatpush1.msra.mxu0 0.0
  %951 = vmatprep.subr.mxu0 0.0
  %952 = vmatpush1.msra.mxu0 0.0
  %953 = vmatprep.subr.mxu0 0.0
  %954 = vmatpush1.msra.mxu0 0.0
  %955 = vmatprep.subr.mxu0 0.0
  %956 = vmatpush1.msra.mxu0 0.0
  %957 = vmatprep.subr.mxu0 0.0
  %958 = vmatpush1.msra.mxu0 0.0
  %959 = vmatprep.subr.mxu0 0.0
  %960 = vmatpush1.msra.mxu0 0.0
  %961 = vmatprep.subr.mxu0 0.0
  %962 = vmatpush1.msra.mxu0 0.0
  %963 = vmatprep.subr.mxu0 0.0
  %964 = vmatpush1.msra.mxu0 0.0
  %965 = vmatprep.subr.mxu0 0.0
  %966 = vmatpush1.msra.mxu0 0.0
  %967 = vmatprep.subr.mxu0 0.0
  %968 = vmatpush1.msra.mxu0 0.0
  %969 = vmatprep.subr.mxu0 0.0
  %970 = vmatpush1.msra.mxu0 0.0
  %971 = vmatprep.subr.mxu0 0.0
  %972 = vmatpush1.msra.mxu0 0.0
  %973 = vmatprep.subr.mxu0 0.0
  %974 = vmatpush1.msra.mxu0 0.0
  %975 = vmatprep.subr.mxu0 0.0
  %976 = vmatpush1.msra.mxu0 0.0
  %977 = vmatprep.subr.mxu0 0.0
  %978 = vmatpush1.msra.mxu0 0.0
  %979 = vmatprep.subr.mxu0 0.0
  %980 = vmatpush1.msra.mxu0 0.0
  %981 = vmatprep.subr.mxu0 0.0
  %982 = vmatpush1.msra.mxu0 0.0
  %983 = vmatprep.mubr.f32.mxu0 0.0
  %984 = vmatmul.mubr.f32.gmra.mrb[0].mxu0 %v914
  %v985 = vpop.f32.mrb[0].mxu0
  %v986 = vadd.f32 0.0, %v985
  %v987 = vpop.f32.mrb[0].mxu0
  %988 = vmatprep.mubr.f32.mxu0 0.0
  %989 = vmatmul.mubr.f32.gmra.mrb[0].mxu0 %v917
  %v990 = vpop.f32.mrb[0].mxu0
  %v991 = vadd.f32 0.0, %v990
  %v992 = vpop.f32.mrb[0].mxu0
  %993 = vdwg.mxu0
  %v995 = vsel %vm196, %v812, 0
  %v998 = vsel %vm196, %v817, 0
  %1000 = vmatprep.subr.mxu0 0.0
  %1001 = vmatpush1.msra.mxu0 %v77
  %1002 = vmatprep.subr.mxu0 0.0
  %1003 = vmatpush1.msra.mxu0 0.0
  %1004 = vmatprep.subr.mxu0 0.0
  %1005 = vmatpush1.msra.mxu0 0.0
  %1006 = vmatprep.subr.mxu0 0.0
  %1007 = vmatpush1.msra.mxu0 0.0
  %1008 = vmatprep.subr.mxu0 0.0
  %1009 = vmatpush1.msra.mxu0 0.0
  %1010 = vmatprep.subr.mxu0 0.0
  %1011 = vmatpush1.msra.mxu0 0.0
  %1012 = vmatprep.subr.mxu0 0.0
  %1013 = vmatpush1.msra.mxu0 0.0
  %1014 = vmatprep.subr.mxu0 0.0
  %1015 = vmatpush1.msra.mxu0 0.0
  %1016 = vmatprep.subr.mxu0 0.0
  %1017 = vmatpush1.msra.mxu0 0.0
  %1018 = vmatprep.subr.mxu0 0.0
  %1019 = vmatpush1.msra.mxu0 0.0
  %1020 = vmatprep.subr.mxu0 0.0
  %1021 = vmatpush1.msra.mxu0 0.0
  %1022 = vmatprep.subr.mxu0 0.0
  %1023 = vmatpush1.msra.mxu0 0.0
  %1024 = vmatprep.subr.mxu0 0.0
  %1025 = vmatpush1.msra.mxu0 0.0
  %1026 = vmatprep.subr.mxu0 0.0
  %1027 = vmatpush1.msra.mxu0 0.0
  %1028 = vmatprep.subr.mxu0 0.0
  %1029 = vmatpush1.msra.mxu0 0.0
  %1030 = vmatprep.subr.mxu0 0.0
  %1031 = vmatpush1.msra.mxu0 0.0
  %1032 = vmatprep.subr.mxu0 0.0
  %1033 = vmatpush1.msra.mxu0 0.0
  %1034 = vmatprep.subr.mxu0 0.0
  %1035 = vmatpush1.msra.mxu0 0.0
  %1036 = vmatprep.subr.mxu0 0.0
  %1037 = vmatpush1.msra.mxu0 0.0
  %1038 = vmatprep.subr.mxu0 0.0
  %1039 = vmatpush1.msra.mxu0 0.0
  %1040 = vmatprep.subr.mxu0 0.0
  %1041 = vmatpush1.msra.mxu0 0.0
  %1042 = vmatprep.subr.mxu0 0.0
  %1043 = vmatpush1.msra.mxu0 0.0
  %1044 = vmatprep.subr.mxu0 0.0
  %1045 = vmatpush1.msra.mxu0 0.0
  %1046 = vmatprep.subr.mxu0 0.0
  %1047 = vmatpush1.msra.mxu0 0.0
  %1048 = vmatprep.subr.mxu0 0.0
  %1049 = vmatpush1.msra.mxu0 0.0
  %1050 = vmatprep.subr.mxu0 0.0
  %1051 = vmatpush1.msra.mxu0 0.0
  %1052 = vmatprep.subr.mxu0 0.0
  %1053 = vmatpush1.msra.mxu0 0.0
  %1054 = vmatprep.subr.mxu0 0.0
  %1055 = vmatpush1.msra.mxu0 0.0
  %1056 = vmatprep.subr.mxu0 0.0
  %1057 = vmatpush1.msra.mxu0 0.0
  %1058 = vmatprep.subr.mxu0 0.0
  %1059 = vmatpush1.msra.mxu0 0.0
  %1060 = vmatprep.subr.mxu0 0.0
  %1061 = vmatpush1.msra.mxu0 0.0
  %1062 = vmatprep.subr.mxu0 0.0
  %1063 = vmatpush1.msra.mxu0 0.0
  %1064 = vmatprep.mubr.f32.mxu0 0.0
  %1065 = vmatmul.mubr.f32.gmra.mrb[0].mxu0 %v995
  %v1066 = vpop.f32.mrb[0].mxu0
  %v1067 = vadd.f32 0.0, %v1066
  %v1068 = vpop.f32.mrb[0].mxu0
  %1069 = vmatprep.mubr.f32.mxu0 0.0
  %1070 = vmatmul.mubr.f32.gmra.mrb[0].mxu0 %v998
  %v1071 = vpop.f32.mrb[0].mxu0
  %v1072 = vadd.f32 0.0, %v1071
  %v1073 = vpop.f32.mrb[0].mxu0
  %1074 = vdwg.mxu0
  %v1076 = vsel %vm196, %v725, 0
  %v1079 = vsel %vm196, %v730, 0
  %1081 = vmatprep.subr.mxu0 0.0
  %1082 = vmatpush1.msra.mxu0 %v76
  %1083 = vmatprep.subr.mxu0 0.0
  %1084 = vmatpush1.msra.mxu0 0.0
  %1085 = vmatprep.subr.mxu0 0.0
  %1086 = vmatpush1.msra.mxu0 0.0
  %1087 = vmatprep.subr.mxu0 0.0
  %1088 = vmatpush1.msra.mxu0 0.0
  %1089 = vmatprep.subr.mxu0 0.0
  %1090 = vmatpush1.msra.mxu0 0.0
  %1091 = vmatprep.subr.mxu0 0.0
  %1092 = vmatpush1.msra.mxu0 0.0
  %1093 = vmatprep.subr.mxu0 0.0
  %1094 = vmatpush1.msra.mxu0 0.0
  %1095 = vmatprep.subr.mxu0 0.0
  %1096 = vmatpush1.msra.mxu0 0.0
  %1097 = vmatprep.subr.mxu0 0.0
  %1098 = vmatpush1.msra.mxu0 0.0
  %1099 = vmatprep.subr.mxu0 0.0
  %1100 = vmatpush1.msra.mxu0 0.0
  %1101 = vmatprep.subr.mxu0 0.0
  %1102 = vmatpush1.msra.mxu0 0.0
  %1103 = vmatprep.subr.mxu0 0.0
  %1104 = vmatpush1.msra.mxu0 0.0
  %1105 = vmatprep.subr.mxu0 0.0
  %1106 = vmatpush1.msra.mxu0 0.0
  %1107 = vmatprep.subr.mxu0 0.0
  %1108 = vmatpush1.msra.mxu0 0.0
  %1109 = vmatprep.subr.mxu0 0.0
  %1110 = vmatpush1.msra.mxu0 0.0
  %1111 = vmatprep.subr.mxu0 0.0
  %1112 = vmatpush1.msra.mxu0 0.0
  %1113 = vmatprep.subr.mxu0 0.0
  %1114 = vmatpush1.msra.mxu0 0.0
  %1115 = vmatprep.subr.mxu0 0.0
  %1116 = vmatpush1.msra.mxu0 0.0
  %1117 = vmatprep.subr.mxu0 0.0
  %1118 = vmatpush1.msra.mxu0 0.0
  %1119 = vmatprep.subr.mxu0 0.0
  %1120 = vmatpush1.msra.mxu0 0.0
  %1121 = vmatprep.subr.mxu0 0.0
  %1122 = vmatpush1.msra.mxu0 0.0
  %1123 = vmatprep.subr.mxu0 0.0
  %1124 = vmatpush1.msra.mxu0 0.0
  %1125 = vmatprep.subr.mxu0 0.0
  %1126 = vmatpush1.msra.mxu0 0.0
  %1127 = vmatprep.subr.mxu0 0.0
  %1128 = vmatpush1.msra.mxu0 0.0
  %1129 = vmatprep.subr.mxu0 0.0
  %1130 = vmatpush1.msra.mxu0 0.0
  %1131 = vmatprep.subr.mxu0 0.0
  %1132 = vmatpush1.msra.mxu0 0.0
  %1133 = vmatprep.subr.mxu0 0.0
  %1134 = vmatpush1.msra.mxu0 0.0
  %1135 = vmatprep.subr.mxu0 0.0
  %1136 = vmatpush1.msra.mxu0 0.0
  %1137 = vmatprep.subr.mxu0 0.0
  %1138 = vmatpush1.msra.mxu0 0.0
  %1139 = vmatprep.subr.mxu0 0.0
  %1140 = vmatpush1.msra.mxu0 0.0
  %1141 = vmatprep.subr.mxu0 0.0
  %1142 = vmatpush1.msra.mxu0 0.0
  %1143 = vmatprep.subr.mxu0 0.0
  %1144 = vmatpush1.msra.mxu0 0.0
  %1145 = vmatprep.mubr.f32.mxu0 0.0
  %1146 = vmatmul.mubr.f32.gmra.mrb[0].mxu0 %v1076
  %v1147 = vpop.f32.mrb[0].mxu0
  %v1148 = vadd.f32 %v1067, %v1147
  %v1149 = vpop.f32.mrb[0].mxu0
  %1150 = vmatprep.mubr.f32.mxu0 0.0
  %1151 = vmatmul.mubr.f32.gmra.mrb[0].mxu0 %v1079
  %v1152 = vpop.f32.mrb[0].mxu0
  %v1153 = vadd.f32 %v1072, %v1152
  %v1154 = vpop.f32.mrb[0].mxu0
  %1155 = vdwg.mxu0
  %v1157 = vsel %vm196, %v899, 0
  %v1160 = vsel %vm196, %v904, 0
  %1162 = vmatprep.subr.mxu0 0.0
  %1163 = vmatpush1.msra.mxu0 %v78
  %1164 = vmatprep.subr.mxu0 0.0
  %1165 = vmatpush1.msra.mxu0 0.0
  %1166 = vmatprep.subr.mxu0 0.0
  %1167 = vmatpush1.msra.mxu0 0.0
  %1168 = vmatprep.subr.mxu0 0.0
  %1169 = vmatpush1.msra.mxu0 0.0
  %1170 = vmatprep.subr.mxu0 0.0
  %1171 = vmatpush1.msra.mxu0 0.0
  %1172 = vmatprep.subr.mxu0 0.0
  %1173 = vmatpush1.msra.mxu0 0.0
  %1174 = vmatprep.subr.mxu0 0.0
  %1175 = vmatpush1.msra.mxu0 0.0
  %1176 = vmatprep.subr.mxu0 0.0
  %1177 = vmatpush1.msra.mxu0 0.0
  %1178 = vmatprep.subr.mxu0 0.0
  %1179 = vmatpush1.msra.mxu0 0.0
  %1180 = vmatprep.subr.mxu0 0.0
  %1181 = vmatpush1.msra.mxu0 0.0
  %1182 = vmatprep.subr.mxu0 0.0
  %1183 = vmatpush1.msra.mxu0 0.0
  %1184 = vmatprep.subr.mxu0 0.0
  %1185 = vmatpush1.msra.mxu0 0.0
  %1186 = vmatprep.subr.mxu0 0.0
  %1187 = vmatpush1.msra.mxu0 0.0
  %1188 = vmatprep.subr.mxu0 0.0
  %1189 = vmatpush1.msra.mxu0 0.0
  %1190 = vmatprep.subr.mxu0 0.0
  %1191 = vmatpush1.msra.mxu0 0.0
  %1192 = vmatprep.subr.mxu0 0.0
  %1193 = vmatpush1.msra.mxu0 0.0
  %1194 = vmatprep.subr.mxu0 0.0
  %1195 = vmatpush1.msra.mxu0 0.0
  %1196 = vmatprep.subr.mxu0 0.0
  %1197 = vmatpush1.msra.mxu0 0.0
  %1198 = vmatprep.subr.mxu0 0.0
  %1199 = vmatpush1.msra.mxu0 0.0
  %1200 = vmatprep.subr.mxu0 0.0
  %1201 = vmatpush1.msra.mxu0 0.0
  %1202 = vmatprep.subr.mxu0 0.0
  %1203 = vmatpush1.msra.mxu0 0.0
  %1204 = vmatprep.subr.mxu0 0.0
  %1205 = vmatpush1.msra.mxu0 0.0
  %1206 = vmatprep.subr.mxu0 0.0
  %1207 = vmatpush1.msra.mxu0 0.0
  %1208 = vmatprep.subr.mxu0 0.0
  %1209 = vmatpush1.msra.mxu0 0.0
  %1210 = vmatprep.subr.mxu0 0.0
  %1211 = vmatpush1.msra.mxu0 0.0
  %1212 = vmatprep.subr.mxu0 0.0
  %1213 = vmatpush1.msra.mxu0 0.0
  %1214 = vmatprep.subr.mxu0 0.0
  %1215 = vmatpush1.msra.mxu0 0.0
  %1216 = vmatprep.subr.mxu0 0.0
  %1217 = vmatpush1.msra.mxu0 0.0
  %1218 = vmatprep.subr.mxu0 0.0
  %1219 = vmatpush1.msra.mxu0 0.0
  %1220 = vmatprep.subr.mxu0 0.0
  %1221 = vmatpush1.msra.mxu0 0.0
  %1222 = vmatprep.subr.mxu0 0.0
  %1223 = vmatpush1.msra.mxu0 0.0
  %1224 = vmatprep.subr.mxu0 0.0
  %1225 = vmatpush1.msra.mxu0 0.0
  %1226 = vmatprep.mubr.f32.mxu0 0.0
  %1227 = vmatmul.mubr.f32.gmra.mrb[0].mxu0 %v1157
  %v1228 = vpop.f32.mrb[0].mxu0
  %v1229 = vadd.f32 0.0, %v1228
  %v1230 = vpop.f32.mrb[0].mxu0
  %1231 = vmatprep.mubr.f32.mxu0 0.0
  %1232 = vmatmul.mubr.f32.gmra.mrb[0].mxu0 %v1160
  %v1233 = vpop.f32.mrb[0].mxu0
  %v1234 = vadd.f32 0.0, %v1233
  %v1235 = vpop.f32.mrb[0].mxu0
  %1236 = vdwg.mxu0
  %v1237 = vadd.f32 %v1148, %v1229
  %v1238 = vadd.f32 %v1153, %v1234
  %v1240 = vsel %vm196, %v986, 0
  %v1243 = vsel %vm196, %v991, 0
  %1245 = vmatprep.subr.mxu0 0.0
  %1246 = vmatpush1.msra.mxu0 %v79
  %1247 = vmatprep.subr.mxu0 0.0
  %1248 = vmatpush1.msra.mxu0 0.0
  %1249 = vmatprep.subr.mxu0 0.0
  %1250 = vmatpush1.msra.mxu0 0.0
  %1251 = vmatprep.subr.mxu0 0.0
  %1252 = vmatpush1.msra.mxu0 0.0
  %1253 = vmatprep.subr.mxu0 0.0
  %1254 = vmatpush1.msra.mxu0 0.0
  %1255 = vmatprep.subr.mxu0 0.0
  %1256 = vmatpush1.msra.mxu0 0.0
  %1257 = vmatprep.subr.mxu0 0.0
  %1258 = vmatpush1.msra.mxu0 0.0
  %1259 = vmatprep.subr.mxu0 0.0
  %1260 = vmatpush1.msra.mxu0 0.0
  %1261 = vmatprep.subr.mxu0 0.0
  %1262 = vmatpush1.msra.mxu0 0.0
  %1263 = vmatprep.subr.mxu0 0.0
  %1264 = vmatpush1.msra.mxu0 0.0
  %1265 = vmatprep.subr.mxu0 0.0
  %1266 = vmatpush1.msra.mxu0 0.0
  %1267 = vmatprep.subr.mxu0 0.0
  %1268 = vmatpush1.msra.mxu0 0.0
  %1269 = vmatprep.subr.mxu0 0.0
  %1270 = vmatpush1.msra.mxu0 0.0
  %1271 = vmatprep.subr.mxu0 0.0
  %1272 = vmatpush1.msra.mxu0 0.0
  %1273 = vmatprep.subr.mxu0 0.0
  %1274 = vmatpush1.msra.mxu0 0.0
  %1275 = vmatprep.subr.mxu0 0.0
  %1276 = vmatpush1.msra.mxu0 0.0
  %1277 = vmatprep.subr.mxu0 0.0
  %1278 = vmatpush1.msra.mxu0 0.0
  %1279 = vmatprep.subr.mxu0 0.0
  %1280 = vmatpush1.msra.mxu0 0.0
  %1281 = vmatprep.subr.mxu0 0.0
  %1282 = vmatpush1.msra.mxu0 0.0
  %1283 = vmatprep.subr.mxu0 0.0
  %1284 = vmatpush1.msra.mxu0 0.0
  %1285 = vmatprep.subr.mxu0 0.0
  %1286 = vmatpush1.msra.mxu0 0.0
  %1287 = vmatprep.subr.mxu0 0.0
  %1288 = vmatpush1.msra.mxu0 0.0
  %1289 = vmatprep.subr.mxu0 0.0
  %1290 = vmatpush1.msra.mxu0 0.0
  %1291 = vmatprep.subr.mxu0 0.0
  %1292 = vmatpush1.msra.mxu0 0.0
  %1293 = vmatprep.subr.mxu0 0.0
  %1294 = vmatpush1.msra.mxu0 0.0
  %1295 = vmatprep.subr.mxu0 0.0
  %1296 = vmatpush1.msra.mxu0 0.0
  %1297 = vmatprep.subr.mxu0 0.0
  %1298 = vmatpush1.msra.mxu0 0.0
  %1299 = vmatprep.subr.mxu0 0.0
  %1300 = vmatpush1.msra.mxu0 0.0
  %1301 = vmatprep.subr.mxu0 0.0
  %1302 = vmatpush1.msra.mxu0 0.0
  %1303 = vmatprep.subr.mxu0 0.0
  %1304 = vmatpush1.msra.mxu0 0.0
  %1305 = vmatprep.subr.mxu0 0.0
  %1306 = vmatpush1.msra.mxu0 0.0
  %1307 = vmatprep.subr.mxu0 0.0
  %1308 = vmatpush1.msra.mxu0 0.0
  %1309 = vmatprep.mubr.f32.mxu0 0.0
  %1310 = vmatmul.mubr.f32.gmra.mrb[0].mxu0 %v1240
  %v1311 = vpop.f32.mrb[0].mxu0
  %v1312 = vadd.f32 0.0, %v1311
  %v1313 = vpop.f32.mrb[0].mxu0
  %1314 = vmatprep.mubr.f32.mxu0 0.0
  %1315 = vmatmul.mubr.f32.gmra.mrb[0].mxu0 %v1243
  %v1316 = vpop.f32.mrb[0].mxu0
  %v1317 = vadd.f32 0.0, %v1316
  %v1318 = vpop.f32.mrb[0].mxu0
  %1319 = vdwg.mxu0
  %v1320 = vadd.f32 %v1237, %v1312
  %v1321 = vadd.f32 %v1238, %v1317
  %v1322 = vld [vmem:[%s4 + $0x1] sm:$0x1]
  %v1323 = vlaneseq
  %v1324 = vshrl.u32 %v1323, 7
  %v1325 = vsub.s32 0, %v1324
  %v1326 = vrot.slane %v1322, %v1325
  %v1327 = vadd.f32 %v1320, %v1326
  %v1328 = vadd.f32 %v1321, %v1326
  %v1329 = vadd.f32 %v68, %v1327
  %v1330 = vadd.f32 %v69, %v1328
  %v1331 = vld [vmem:[%s4 + $0x2] sm:$0x1]
  %v1332 = vld [vmem:[%s4 + $0x3] sm:$0x1]
  %v1333 = vsel %vm30, %v1329, 0.0
  %1334 = vadd.xlane.f32.xlu0 %v1333
  %v1335 = vpop.xlane.xlu0 %1334
  %v1336 = vsel %vm30, %v1330, 0.0
  %1337 = vadd.xlane.f32.xlu0 %v1336
  %v1338 = vpop.xlane.xlu0 %1337
  %v1339 = vmul.f32 %v1335, %v37
  %v1340 = vmul.f32 %v1338, %v37
  %v1341 = vsub.f32 %v1329, %v1339
  %v1342 = vsub.f32 %v1330, %v1340
  %v1343 = vmul.f32 %v1341, %v1341
  %v1344 = vmul.f32 %v1342, %v1342
  %v1345 = vsel %vm30, %v1343, 0.0
  %1346 = vadd.xlane.f32.xlu0 %v1345
  %v1347 = vpop.xlane.xlu0 %1346
  %v1348 = vsel %vm30, %v1344, 0.0
  %1349 = vadd.xlane.f32.xlu0 %v1348
  %v1350 = vpop.xlane.xlu0 %1349
  %v1351 = vmul.f32 %v1347, %v37
  %v1352 = vmul.f32 %v1350, %v37
  %v1353 = vadd.f32 %v1351, 1e-12
  %v1354 = vadd.f32 %v1352, 1e-12
  %v1355 = vrsqrt.pop %v1353
  %v1356 = vrsqrt.pop %v1354
  %v1357 = vmul.f32 %v1341, %v1355
  %v1358 = vmul.f32 %v1342, %v1356
  %v1359 = vlaneseq
  %v1360 = vshrl.u32 %v1359, 7
  %v1361 = vsub.s32 0, %v1360
  %v1362 = vrot.slane %v1331, %v1361
  %v1363 = vmul.f32 %v1357, %v1362
  %v1364 = vmul.f32 %v1358, %v1362
  %v1365 = vlaneseq
  %v1366 = vshrl.u32 %v1365, 7
  %v1367 = vsub.s32 0, %v1366
  %v1368 = vrot.slane %v1332, %v1367
  %v1369 = vadd.f32 %v1363, %v1368
  %v1370 = vadd.f32 %v1364, %v1368
  %v1371 = vld [vmem:[%s4 + $0x4] sm:$0x1]
  %v1372 = vlaneseq
  %v1373 = vshrl.u32 %v1372, 7
  %v1374 = vsub.s32 0, %v1373
  %v1375 = vrot.slane %v1371, %v1374
  %v1377 = vsel %vm30, %v1369, 0
  %v1380 = vsel %vm30, %v1370, 0
  %1382 = vmatprep.subr.mxu0 0.0
  %1383 = vmatpush1.msra.mxu0 %v80
  %1384 = vmatprep.subr.mxu0 0.0
  %1385 = vmatpush1.msra.mxu0 %v81
  %1386 = vmatprep.subr.mxu0 0.0
  %1387 = vmatpush1.msra.mxu0 %v82
  %1388 = vmatprep.subr.mxu0 0.0
  %1389 = vmatpush1.msra.mxu0 %v83
  %1390 = vmatprep.subr.mxu0 0.0
  %1391 = vmatpush1.msra.mxu0 0.0
  %1392 = vmatprep.subr.mxu0 0.0
  %1393 = vmatpush1.msra.mxu0 0.0
  %1394 = vmatprep.subr.mxu0 0.0
  %1395 = vmatpush1.msra.mxu0 0.0
  %1396 = vmatprep.subr.mxu0 0.0
  %1397 = vmatpush1.msra.mxu0 0.0
  %1398 = vmatprep.subr.mxu0 0.0
  %1399 = vmatpush1.msra.mxu0 0.0
  %1400 = vmatprep.subr.mxu0 0.0
  %1401 = vmatpush1.msra.mxu0 0.0
  %1402 = vmatprep.subr.mxu0 0.0
  %1403 = vmatpush1.msra.mxu0 0.0
  %1404 = vmatprep.subr.mxu0 0.0
  %1405 = vmatpush1.msra.mxu0 0.0
  %1406 = vmatprep.subr.mxu0 0.0
  %1407 = vmatpush1.msra.mxu0 0.0
  %1408 = vmatprep.subr.mxu0 0.0
  %1409 = vmatpush1.msra.mxu0 0.0
  %1410 = vmatprep.subr.mxu0 0.0
  %1411 = vmatpush1.msra.mxu0 0.0
  %1412 = vmatprep.subr.mxu0 0.0
  %1413 = vmatpush1.msra.mxu0 0.0
  %1414 = vmatprep.subr.mxu0 0.0
  %1415 = vmatpush1.msra.mxu0 0.0
  %1416 = vmatprep.subr.mxu0 0.0
  %1417 = vmatpush1.msra.mxu0 0.0
  %1418 = vmatprep.subr.mxu0 0.0
  %1419 = vmatpush1.msra.mxu0 0.0
  %1420 = vmatprep.subr.mxu0 0.0
  %1421 = vmatpush1.msra.mxu0 0.0
  %1422 = vmatprep.subr.mxu0 0.0
  %1423 = vmatpush1.msra.mxu0 0.0
  %1424 = vmatprep.subr.mxu0 0.0
  %1425 = vmatpush1.msra.mxu0 0.0
  %1426 = vmatprep.subr.mxu0 0.0
  %1427 = vmatpush1.msra.mxu0 0.0
  %1428 = vmatprep.subr.mxu0 0.0
  %1429 = vmatpush1.msra.mxu0 0.0
  %1430 = vmatprep.subr.mxu0 0.0
  %1431 = vmatpush1.msra.mxu0 0.0
  %1432 = vmatprep.subr.mxu0 0.0
  %1433 = vmatpush1.msra.mxu0 0.0
  %1434 = vmatprep.subr.mxu0 0.0
  %1435 = vmatpush1.msra.mxu0 0.0
  %1436 = vmatprep.subr.mxu0 0.0
  %1437 = vmatpush1.msra.mxu0 0.0
  %1438 = vmatprep.subr.mxu0 0.0
  %1439 = vmatpush1.msra.mxu0 0.0
  %1440 = vmatprep.subr.mxu0 0.0
  %1441 = vmatpush1.msra.mxu0 0.0
  %1442 = vmatprep.subr.mxu0 0.0
  %1443 = vmatpush1.msra.mxu0 0.0
  %1444 = vmatprep.subr.mxu0 0.0
  %1445 = vmatpush1.msra.mxu0 0.0
  %1446 = vmatprep.mubr.f32.mxu0 0.0
  %1447 = vmatmul.mubr.f32.gmra.mrb[0].mxu0 %v1377
  %v1448 = vpop.f32.mrb[0].mxu0
  %v1449 = vadd.f32 %v1375, %v1448
  %v1450 = vpop.f32.mrb[0].mxu0
  %1451 = vmatprep.mubr.f32.mxu0 0.0
  %1452 = vmatmul.mubr.f32.gmra.mrb[0].mxu0 %v1380
  %v1453 = vpop.f32.mrb[0].mxu0
  %v1454 = vadd.f32 %v1375, %v1453
  %v1455 = vpop.f32.mrb[0].mxu0
  %1456 = vdwg.mxu0
  %v1457 = vmul.f32 %v1449, %v1449
  %v1458 = vmul.f32 %v1454, %v1454
  %v1459 = vmul.f32 %v1449, %v1457
  %v1460 = vmul.f32 %v1454, %v1458
  %v1461 = vmul.f32 %v1459, 0.044715
  %v1462 = vmul.f32 %v1460, 0.044715
  %v1463 = vadd.f32 %v1449, %v1461
  %v1464 = vadd.f32 %v1454, %v1462
  %v1465 = vmul.f32 %v1463, 0.7978846
  %v1466 = vmul.f32 %v1464, 0.7978846
  %v1467 = vtanh.pop %v1465
  %v1468 = vtanh.pop %v1466
  %v1469 = vadd.f32 %v1467, 1.0
  %v1470 = vadd.f32 %v1468, 1.0
  %v1471 = vmul.f32 %v1469, 0.5
  %v1472 = vmul.f32 %v1470, 0.5
  %v1473 = vmul.f32 %v1449, %v1471
  %v1474 = vmul.f32 %v1454, %v1472
  %v1475 = vld [vmem:[%s4 + $0x5] sm:$0x1]
  %v1476 = vlaneseq
  %v1477 = vshrl.u32 %v1476, 7
  %v1478 = vsub.s32 0, %v1477
  %v1479 = vrot.slane %v1475, %v1478
  %vm1480 = vcmask 523264
  %v1482 = vsel %vm1480, %v1473, 0
  %v1485 = vsel %vm1480, %v1474, 0
  %1487 = vmatprep.subr.mxu0 0.0
  %1488 = vmatpush1.msra.mxu0 %v84
  %1489 = vmatprep.subr.mxu0 0.0
  %1490 = vmatpush1.msra.mxu0 %v85
  %1491 = vmatprep.subr.mxu0 0.0
  %1492 = vmatpush1.msra.mxu0 %v86
  %1493 = vmatprep.subr.mxu0 0.0
  %1494 = vmatpush1.msra.mxu0 %v87
  %1495 = vmatprep.subr.mxu0 0.0
  %1496 = vmatpush1.msra.mxu0 %v88
  %1497 = vmatprep.subr.mxu0 0.0
  %1498 = vmatpush1.msra.mxu0 %v89
  %1499 = vmatprep.subr.mxu0 0.0
  %1500 = vmatpush1.msra.mxu0 %v90
  %1501 = vmatprep.subr.mxu0 0.0
  %1502 = vmatpush1.msra.mxu0 %v91
  %1503 = vmatprep.subr.mxu0 0.0
  %1504 = vmatpush1.msra.mxu0 0.0
  %1505 = vmatprep.subr.mxu0 0.0
  %1506 = vmatpush1.msra.mxu0 0.0
  %1507 = vmatprep.subr.mxu0 0.0
  %1508 = vmatpush1.msra.mxu0 0.0
  %1509 = vmatprep.subr.mxu0 0.0
  %1510 = vmatpush1.msra.mxu0 0.0
  %1511 = vmatprep.subr.mxu0 0.0
  %1512 = vmatpush1.msra.mxu0 0.0
  %1513 = vmatprep.subr.mxu0 0.0
  %1514 = vmatpush1.msra.mxu0 0.0
  %1515 = vmatprep.subr.mxu0 0.0
  %1516 = vmatpush1.msra.mxu0 0.0
  %1517 = vmatprep.subr.mxu0 0.0
  %1518 = vmatpush1.msra.mxu0 0.0
  %1519 = vmatprep.subr.mxu0 0.0
  %1520 = vmatpush1.msra.mxu0 0.0
  %1521 = vmatprep.subr.mxu0 0.0
  %1522 = vmatpush1.msra.mxu0 0.0
  %1523 = vmatprep.subr.mxu0 0.0
  %1524 = vmatpush1.msra.mxu0 0.0
  %1525 = vmatprep.subr.mxu0 0.0
  %1526 = vmatpush1.msra.mxu0 0.0
  %1527 = vmatprep.subr.mxu0 0.0
  %1528 = vmatpush1.msra.mxu0 0.0
  %1529 = vmatprep.subr.mxu0 0.0
  %1530 = vmatpush1.msra.mxu0 0.0
  %1531 = vmatprep.subr.mxu0 0.0
  %1532 = vmatpush1.msra.mxu0 0.0
  %1533 = vmatprep.subr.mxu0 0.0
  %1534 = vmatpush1.msra.mxu0 0.0
  %1535 = vmatprep.subr.mxu0 0.0
  %1536 = vmatpush1.msra.mxu0 0.0
  %1537 = vmatprep.subr.mxu0 0.0
  %1538 = vmatpush1.msra.mxu0 0.0
  %1539 = vmatprep.subr.mxu0 0.0
  %1540 = vmatpush1.msra.mxu0 0.0
  %1541 = vmatprep.subr.mxu0 0.0
  %1542 = vmatpush1.msra.mxu0 0.0
  %1543 = vmatprep.subr.mxu0 0.0
  %1544 = vmatpush1.msra.mxu0 0.0
  %1545 = vmatprep.subr.mxu0 0.0
  %1546 = vmatpush1.msra.mxu0 0.0
  %1547 = vmatprep.subr.mxu0 0.0
  %1548 = vmatpush1.msra.mxu0 0.0
  %1549 = vmatprep.subr.mxu0 0.0
  %1550 = vmatpush1.msra.mxu0 0.0
  %1551 = vmatprep.mubr.f32.mxu0 0.0
  %1552 = vmatmul.mubr.f32.gmra.mrb[0].mxu0 %v1482
  %v1553 = vpop.f32.mrb[0].mxu0
  %v1554 = vadd.f32 %v1479, %v1553
  %v1555 = vpop.f32.mrb[0].mxu0
  %1556 = vmatprep.mubr.f32.mxu0 0.0
  %1557 = vmatmul.mubr.f32.gmra.mrb[0].mxu0 %v1485
  %v1558 = vpop.f32.mrb[0].mxu0
  %v1559 = vadd.f32 %v1479, %v1558
  %v1560 = vpop.f32.mrb[0].mxu0
  %1561 = vdwg.mxu0
  %v1562 = vadd.f32 %v1369, %v1554
  %v1563 = vadd.f32 %v1370, %v1559
  %v1564 = vld [vmem:[%s4 + $0x6] sm:$0x1]
  %v1565 = vld [vmem:[%s4 + $0x7] sm:$0x1]
  %v1566 = vsel %vm30, %v1562, 0.0
  %1567 = vadd.xlane.f32.xlu0 %v1566
  %v1568 = vpop.xlane.xlu0 %1567
  %v1569 = vsel %vm30, %v1563, 0.0
  %1570 = vadd.xlane.f32.xlu0 %v1569
  %v1571 = vpop.xlane.xlu0 %1570
  %v1572 = vmul.f32 %v1568, %v37
  %v1573 = vmul.f32 %v1571, %v37
  %v1574 = vsub.f32 %v1562, %v1572
  %v1575 = vsub.f32 %v1563, %v1573
  %v1576 = vmul.f32 %v1574, %v1574
  %v1577 = vmul.f32 %v1575, %v1575
  %v1578 = vsel %vm30, %v1576, 0.0
  %1579 = vadd.xlane.f32.xlu0 %v1578
  %v1580 = vpop.xlane.xlu0 %1579
  %v1581 = vsel %vm30, %v1577, 0.0
  %1582 = vadd.xlane.f32.xlu0 %v1581
  %v1583 = vpop.xlane.xlu0 %1582
  %v1584 = vmul.f32 %v1580, %v37
  %v1585 = vmul.f32 %v1583, %v37
  %v1586 = vadd.f32 %v1584, 1e-12
  %v1587 = vadd.f32 %v1585, 1e-12
  %v1588 = vrsqrt.pop %v1586
  %v1589 = vrsqrt.pop %v1587
  %v1590 = vmul.f32 %v1574, %v1588
  %v1591 = vmul.f32 %v1575, %v1589
  %v1592 = vlaneseq
  %v1593 = vshrl.u32 %v1592, 7
  %v1594 = vsub.s32 0, %v1593
  %v1595 = vrot.slane %v1564, %v1594
  %v1596 = vmul.f32 %v1590, %v1595
  %v1597 = vmul.f32 %v1591, %v1595
  %v1598 = vlaneseq
  %v1599 = vshrl.u32 %v1598, 7
  %v1600 = vsub.s32 0, %v1599
  %v1601 = vrot.slane %v1565, %v1600
  %v1602 = vadd.f32 %v1596, %v1601
  %v1603 = vadd.f32 %v1597, %v1601
  %s1604 = scalar_lea.vmem %s2, 96
  %v1605 = vld [vmem:[%s1604] sm:$0xff]
  %v1606 = vld [vmem:[%s1604 + $0x18] sm:$0xff]
  %v1607 = vld [vmem:[%s1604 + $0x30] sm:$0xff]
  %v1608 = vld [vmem:[%s1604 + $0x48] sm:$0xff]
  %v1609 = vld [vmem:[%s1604 + $0x8] sm:$0xff]
  %v1610 = vld [vmem:[%s1604 + $0x20] sm:$0xff]
  %v1611 = vld [vmem:[%s1604 + $0x38] sm:$0xff]
  %v1612 = vld [vmem:[%s1604 + $0x50] sm:$0xff]
  %v1613 = vld [vmem:[%s1604 + $0x10] sm:$0xff]
  %v1614 = vld [vmem:[%s1604 + $0x28] sm:$0xff]
  %v1615 = vld [vmem:[%s1604 + $0x40] sm:$0xff]
  %v1616 = vld [vmem:[%s1604 + $0x58] sm:$0xff]
  %s1617 = scalar_lea.vmem %s3, 64
  %v1618 = vld [vmem:[%s1617] sm:$0xff]
  %v1619 = vld [vmem:[%s1617 + $0x8] sm:$0xff]
  %v1620 = vld [vmem:[%s1617 + $0x10] sm:$0xff]
  %v1621 = vld [vmem:[%s1617 + $0x18] sm:$0xff]
  %v1622 = vld [vmem:[%s1617 + $0x20] sm:$0xff]
  %v1623 = vld [vmem:[%s1617 + $0x28] sm:$0xff]
  %v1624 = vld [vmem:[%s1617 + $0x30] sm:$0xff]
  %v1625 = vld [vmem:[%s1617 + $0x38] sm:$0xff]
  %s1626 = scalar_lea.vmem %s4, 8
  %v1627 = vld [vmem:[%s1626] sm:$0x1]
  %v1628 = vlaneseq
  %v1629 = vshrl.u32 %v1628, 7
  %v1630 = vsub.s32 0, %v1629
  %v1631 = vrot.slane %v1627, %v1630
  %v1633 = vsel %vm30, %v1602, 0
  %v1636 = vsel %vm30, %v1603, 0
  %1638 = vmatprep.subr.mxu0 0.0
  %1639 = vmatpush1.msra.mxu0 %v1605
  %1640 = vmatprep.subr.mxu0 0.0
  %1641 = vmatpush1.msra.mxu0 %v1606
  %1642 = vmatprep.subr.mxu0 0.0
  %1643 = vmatpush1.msra.mxu0 %v1607
  %1644 = vmatprep.subr.mxu0 0.0
  %1645 = vmatpush1.msra.mxu0 %v1608
  %1646 = vmatprep.subr.mxu0 0.0
  %1647 = vmatpush1.msra.mxu0 0.0
  %1648 = vmatprep.subr.mxu0 0.0
  %1649 = vmatpush1.msra.mxu0 0.0
  %1650 = vmatprep.subr.mxu0 0.0
  %1651 = vmatpush1.msra.mxu0 0.0
  %1652 = vmatprep.subr.mxu0 0.0
  %1653 = vmatpush1.msra.mxu0 0.0
  %1654 = vmatprep.subr.mxu0 0.0
  %1655 = vmatpush1.msra.mxu0 0.0
  %1656 = vmatprep.subr.mxu0 0.0
  %1657 = vmatpush1.msra.mxu0 0.0
  %1658 = vmatprep.subr.mxu0 0.0
  %1659 = vmatpush1.msra.mxu0 0.0
  %1660 = vmatprep.subr.mxu0 0.0
  %1661 = vmatpush1.msra.mxu0 0.0
  %1662 = vmatprep.subr.mxu0 0.0
  %1663 = vmatpush1.msra.mxu0 0.0
  %1664 = vmatprep.subr.mxu0 0.0
  %1665 = vmatpush1.msra.mxu0 0.0
  %1666 = vmatprep.subr.mxu0 0.0
  %1667 = vmatpush1.msra.mxu0 0.0
  %1668 = vmatprep.subr.mxu0 0.0
  %1669 = vmatpush1.msra.mxu0 0.0
  %1670 = vmatprep.subr.mxu0 0.0
  %1671 = vmatpush1.msra.mxu0 0.0
  %1672 = vmatprep.subr.mxu0 0.0
  %1673 = vmatpush1.msra.mxu0 0.0
  %1674 = vmatprep.subr.mxu0 0.0
  %1675 = vmatpush1.msra.mxu0 0.0
  %1676 = vmatprep.subr.mxu0 0.0
  %1677 = vmatpush1.msra.mxu0 0.0
  %1678 = vmatprep.subr.mxu0 0.0
  %1679 = vmatpush1.msra.mxu0 0.0
  %1680 = vmatprep.subr.mxu0 0.0
  %1681 = vmatpush1.msra.mxu0 0.0
  %1682 = vmatprep.subr.mxu0 0.0
  %1683 = vmatpush1.msra.mxu0 0.0
  %1684 = vmatprep.subr.mxu0 0.0
  %1685 = vmatpush1.msra.mxu0 0.0
  %1686 = vmatprep.subr.mxu0 0.0
  %1687 = vmatpush1.msra.mxu0 0.0
  %1688 = vmatprep.subr.mxu0 0.0
  %1689 = vmatpush1.msra.mxu0 0.0
  %1690 = vmatprep.subr.mxu0 0.0
  %1691 = vmatpush1.msra.mxu0 0.0
  %1692 = vmatprep.subr.mxu0 0.0
  %1693 = vmatpush1.msra.mxu0 0.0
  %1694 = vmatprep.subr.mxu0 0.0
  %1695 = vmatpush1.msra.mxu0 0.0
  %1696 = vmatprep.subr.mxu0 0.0
  %1697 = vmatpush1.msra.mxu0 0.0
  %1698 = vmatprep.subr.mxu0 0.0
  %1699 = vmatpush1.msra.mxu0 0.0
  %1700 = vmatprep.subr.mxu0 0.0
  %1701 = vmatpush1.msra.mxu0 0.0
  %1702 = vmatprep.mubr.f32.mxu0 0.0
  %1703 = vmatmul.mubr.f32.gmra.mrb[0].mxu0 %v1633
  %v1704 = vpop.f32.mrb[0].mxu0
  %v1705 = vadd.f32 %v1631, %v1704
  %v1706 = vpop.f32.mrb[0].mxu0
  %1707 = vmatprep.mubr.f32.mxu0 0.0
  %1708 = vmatmul.mubr.f32.gmra.mrb[0].mxu0 %v1636
  %v1709 = vpop.f32.mrb[0].mxu0
  %v1710 = vadd.f32 %v1631, %v1709
  %v1711 = vpop.f32.mrb[0].mxu0
  %1712 = vdwg.mxu0
  %1715 = vrot.lane.b32.xlu0 %v1705, 120
  %v1716 = vpop.permute.xlu0 %1715
  %1717 = vrot.lane.b32.xlu0 %v1710, 120
  %v1718 = vpop.permute.xlu0 %1717
  %1719 = vrot.lane.b32.xlu0 %v1705, 112
  %v1720 = vpop.permute.xlu0 %1719
  %1721 = vrot.lane.b32.xlu0 %v1710, 112
  %v1722 = vpop.permute.xlu0 %1721
  %1723 = vrot.lane.b32.xlu0 %v1705, 104
  %v1724 = vpop.permute.xlu0 %1723
  %1725 = vrot.lane.b32.xlu0 %v1710, 104
  %v1726 = vpop.permute.xlu0 %1725
  %1727 = vrot.lane.b32.xlu0 %v1705, 96
  %v1728 = vpop.permute.xlu0 %1727
  %1729 = vrot.lane.b32.xlu0 %v1710, 96
  %v1730 = vpop.permute.xlu0 %1729
  %v1731 = vsel %vm196, %v1705, 0
  %v1733 = vsel %vm196, %v1710, 0
  %v1735 = vsel %vm196, %v1728, 0
  %v1737 = vsel %vm196, %v1730, 0
  %1739 = vmatprep.subr.mxu0 0.0
  %1740 = vmatpush1.xpose.msra.mxu0 %v1735
  %1741 = vmatprep.subr.mxu0 0.0
  %1742 = vmatpush1.xpose.msra.mxu0 %v1737
  %1743 = vmatprep.subr.mxu0 0.0
  %1744 = vmatpush1.xpose.msra.mxu0 0.0
  %1745 = vmatprep.subr.mxu0 0.0
  %1746 = vmatpush1.xpose.msra.mxu0 0.0
  %1747 = vmatprep.subr.mxu0 0.0
  %1748 = vmatpush1.xpose.msra.mxu0 0.0
  %1749 = vmatprep.subr.mxu0 0.0
  %1750 = vmatpush1.xpose.msra.mxu0 0.0
  %1751 = vmatprep.subr.mxu0 0.0
  %1752 = vmatpush1.xpose.msra.mxu0 0.0
  %1753 = vmatprep.subr.mxu0 0.0
  %1754 = vmatpush1.xpose.msra.mxu0 0.0
  %1755 = vmatprep.subr.mxu0 0.0
  %1756 = vmatpush1.xpose.msra.mxu0 0.0
  %1757 = vmatprep.subr.mxu0 0.0
  %1758 = vmatpush1.xpose.msra.mxu0 0.0
  %1759 = vmatprep.subr.mxu0 0.0
  %1760 = vmatpush1.xpose.msra.mxu0 0.0
  %1761 = vmatprep.subr.mxu0 0.0
  %1762 = vmatpush1.xpose.msra.mxu0 0.0
  %1763 = vmatprep.subr.mxu0 0.0
  %1764 = vmatpush1.xpose.msra.mxu0 0.0
  %1765 = vmatprep.subr.mxu0 0.0
  %1766 = vmatpush1.xpose.msra.mxu0 0.0
  %1767 = vmatprep.subr.mxu0 0.0
  %1768 = vmatpush1.xpose.msra.mxu0 0.0
  %1769 = vmatprep.subr.mxu0 0.0
  %1770 = vmatpush1.xpose.msra.mxu0 0.0
  %1771 = vmatprep.subr.mxu0 0.0
  %1772 = vmatpush1.xpose.msra.mxu0 0.0
  %1773 = vmatprep.subr.mxu0 0.0
  %1774 = vmatpush1.xpose.msra.mxu0 0.0
  %1775 = vmatprep.subr.mxu0 0.0
  %1776 = vmatpush1.xpose.msra.mxu0 0.0
  %1777 = vmatprep.subr.mxu0 0.0
  %1778 = vmatpush1.xpose.msra.mxu0 0.0
  %1779 = vmatprep.subr.mxu0 0.0
  %1780 = vmatpush1.xpose.msra.mxu0 0.0
  %1781 = vmatprep.subr.mxu0 0.0
  %1782 = vmatpush1.xpose.msra.mxu0 0.0
  %1783 = vmatprep.subr.mxu0 0.0
  %1784 = vmatpush1.xpose.msra.mxu0 0.0
  %1785 = vmatprep.subr.mxu0 0.0
  %1786 = vmatpush1.xpose.msra.mxu0 0.0
  %1787 = vmatprep.subr.mxu0 0.0
  %1788 = vmatpush1.xpose.msra.mxu0 0.0
  %1789 = vmatprep.subr.mxu0 0.0
  %1790 = vmatpush1.xpose.msra.mxu0 0.0
  %1791 = vmatprep.subr.mxu0 0.0
  %1792 = vmatpush1.xpose.msra.mxu0 0.0
  %1793 = vmatprep.subr.mxu0 0.0
  %1794 = vmatpush1.xpose.msra.mxu0 0.0
  %1795 = vmatprep.subr.mxu0 0.0
  %1796 = vmatpush1.xpose.msra.mxu0 0.0
  %1797 = vmatprep.subr.mxu0 0.0
  %1798 = vmatpush1.xpose.msra.mxu0 0.0
  %1799 = vmatprep.subr.mxu0 0.0
  %1800 = vmatpush1.xpose.msra.mxu0 0.0
  %1801 = vmatprep.subr.mxu0 0.0
  %1802 = vmatpush1.xpose.msra.mxu0 0.0
  %1803 = vmatprep.mubr.f32.mxu0 0.0
  %1804 = vmatmul.mubr.f32.gmra.mrb[0].mxu0 %v1731
  %v1805 = vpop.f32.mrb[0].mxu0
  %v1806 = vadd.f32 0.0, %v1805
  %v1807 = vpop.f32.mrb[0].mxu0
  %1808 = vmatprep.mubr.f32.mxu0 0.0
  %1809 = vmatmul.mubr.f32.gmra.mrb[0].mxu0 %v1733
  %v1810 = vpop.f32.mrb[0].mxu0
  %v1811 = vadd.f32 0.0, %v1810
  %v1812 = vpop.f32.mrb[0].mxu0
  %1813 = vdwg.mxu0
  %1814 = vrot.lane.b32.xlu0 %v1716, 96
  %v1815 = vpop.permute.xlu0 %1814
  %1816 = vrot.lane.b32.xlu0 %v1718, 96
  %v1817 = vpop.permute.xlu0 %1816
  %v1818 = vsel %vm196, %v1716, 0
  %v1820 = vsel %vm196, %v1718, 0
  %v1822 = vsel %vm196, %v1815, 0
  %v1824 = vsel %vm196, %v1817, 0
  %1826 = vmatprep.subr.mxu0 0.0
  %1827 = vmatpush1.xpose.msra.mxu0 %v1822
  %1828 = vmatprep.subr.mxu0 0.0
  %1829 = vmatpush1.xpose.msra.mxu0 %v1824
  %1830 = vmatprep.subr.mxu0 0.0
  %1831 = vmatpush1.xpose.msra.mxu0 0.0
  %1832 = vmatprep.subr.mxu0 0.0
  %1833 = vmatpush1.xpose.msra.mxu0 0.0
  %1834 = vmatprep.subr.mxu0 0.0
  %1835 = vmatpush1.xpose.msra.mxu0 0.0
  %1836 = vmatprep.subr.mxu0 0.0
  %1837 = vmatpush1.xpose.msra.mxu0 0.0
  %1838 = vmatprep.subr.mxu0 0.0
  %1839 = vmatpush1.xpose.msra.mxu0 0.0
  %1840 = vmatprep.subr.mxu0 0.0
  %1841 = vmatpush1.xpose.msra.mxu0 0.0
  %1842 = vmatprep.subr.mxu0 0.0
  %1843 = vmatpush1.xpose.msra.mxu0 0.0
  %1844 = vmatprep.subr.mxu0 0.0
  %1845 = vmatpush1.xpose.msra.mxu0 0.0
  %1846 = vmatprep.subr.mxu0 0.0
  %1847 = vmatpush1.xpose.msra.mxu0 0.0
  %1848 = vmatprep.subr.mxu0 0.0
  %1849 = vmatpush1.xpose.msra.mxu0 0.0
  %1850 = vmatprep.subr.mxu0 0.0
  %1851 = vmatpush1.xpose.msra.mxu0 0.0
  %1852 = vmatprep.subr.mxu0 0.0
  %1853 = vmatpush1.xpose.msra.mxu0 0.0
  %1854 = vmatprep.subr.mxu0 0.0
  %1855 = vmatpush1.xpose.msra.mxu0 0.0
  %1856 = vmatprep.subr.mxu0 0.0
  %1857 = vmatpush1.xpose.msra.mxu0 0.0
  %1858 = vmatprep.subr.mxu0 0.0
  %1859 = vmatpush1.xpose.msra.mxu0 0.0
  %1860 = vmatprep.subr.mxu0 0.0
  %1861 = vmatpush1.xpose.msra.mxu0 0.0
  %1862 = vmatprep.subr.mxu0 0.0
  %1863 = vmatpush1.xpose.msra.mxu0 0.0
  %1864 = vmatprep.subr.mxu0 0.0
  %1865 = vmatpush1.xpose.msra.mxu0 0.0
  %1866 = vmatprep.subr.mxu0 0.0
  %1867 = vmatpush1.xpose.msra.mxu0 0.0
  %1868 = vmatprep.subr.mxu0 0.0
  %1869 = vmatpush1.xpose.msra.mxu0 0.0
  %1870 = vmatprep.subr.mxu0 0.0
  %1871 = vmatpush1.xpose.msra.mxu0 0.0
  %1872 = vmatprep.subr.mxu0 0.0
  %1873 = vmatpush1.xpose.msra.mxu0 0.0
  %1874 = vmatprep.subr.mxu0 0.0
  %1875 = vmatpush1.xpose.msra.mxu0 0.0
  %1876 = vmatprep.subr.mxu0 0.0
  %1877 = vmatpush1.xpose.msra.mxu0 0.0
  %1878 = vmatprep.subr.mxu0 0.0
  %1879 = vmatpush1.xpose.msra.mxu0 0.0
  %1880 = vmatprep.subr.mxu0 0.0
  %1881 = vmatpush1.xpose.msra.mxu0 0.0
  %1882 = vmatprep.subr.mxu0 0.0
  %1883 = vmatpush1.xpose.msra.mxu0 0.0
  %1884 = vmatprep.subr.mxu0 0.0
  %1885 = vmatpush1.xpose.msra.mxu0 0.0
  %1886 = vmatprep.subr.mxu0 0.0
  %1887 = vmatpush1.xpose.msra.mxu0 0.0
  %1888 = vmatprep.subr.mxu0 0.0
  %1889 = vmatpush1.xpose.msra.mxu0 0.0
  %1890 = vmatprep.mubr.f32.mxu0 0.0
  %1891 = vmatmul.mubr.f32.gmra.mrb[0].mxu0 %v1818
  %v1892 = vpop.f32.mrb[0].mxu0
  %v1893 = vadd.f32 0.0, %v1892
  %v1894 = vpop.f32.mrb[0].mxu0
  %1895 = vmatprep.mubr.f32.mxu0 0.0
  %1896 = vmatmul.mubr.f32.gmra.mrb[0].mxu0 %v1820
  %v1897 = vpop.f32.mrb[0].mxu0
  %v1898 = vadd.f32 0.0, %v1897
  %v1899 = vpop.f32.mrb[0].mxu0
  %1900 = vdwg.mxu0
  %1901 = vrot.lane.b32.xlu0 %v1720, 96
  %v1902 = vpop.permute.xlu0 %1901
  %1903 = vrot.lane.b32.xlu0 %v1722, 96
  %v1904 = vpop.permute.xlu0 %1903
  %v1905 = vsel %vm196, %v1720, 0
  %v1907 = vsel %vm196, %v1722, 0
  %v1909 = vsel %vm196, %v1902, 0
  %v1911 = vsel %vm196, %v1904, 0
  %1913 = vmatprep.subr.mxu0 0.0
  %1914 = vmatpush1.xpose.msra.mxu0 %v1909
  %1915 = vmatprep.subr.mxu0 0.0
  %1916 = vmatpush1.xpose.msra.mxu0 %v1911
  %1917 = vmatprep.subr.mxu0 0.0
  %1918 = vmatpush1.xpose.msra.mxu0 0.0
  %1919 = vmatprep.subr.mxu0 0.0
  %1920 = vmatpush1.xpose.msra.mxu0 0.0
  %1921 = vmatprep.subr.mxu0 0.0
  %1922 = vmatpush1.xpose.msra.mxu0 0.0
  %1923 = vmatprep.subr.mxu0 0.0
  %1924 = vmatpush1.xpose.msra.mxu0 0.0
  %1925 = vmatprep.subr.mxu0 0.0
  %1926 = vmatpush1.xpose.msra.mxu0 0.0
  %1927 = vmatprep.subr.mxu0 0.0
  %1928 = vmatpush1.xpose.msra.mxu0 0.0
  %1929 = vmatprep.subr.mxu0 0.0
  %1930 = vmatpush1.xpose.msra.mxu0 0.0
  %1931 = vmatprep.subr.mxu0 0.0
  %1932 = vmatpush1.xpose.msra.mxu0 0.0
  %1933 = vmatprep.subr.mxu0 0.0
  %1934 = vmatpush1.xpose.msra.mxu0 0.0
  %1935 = vmatprep.subr.mxu0 0.0
  %1936 = vmatpush1.xpose.msra.mxu0 0.0
  %1937 = vmatprep.subr.mxu0 0.0
  %1938 = vmatpush1.xpose.msra.mxu0 0.0
  %1939 = vmatprep.subr.mxu0 0.0
  %1940 = vmatpush1.xpose.msra.mxu0 0.0
  %1941 = vmatprep.subr.mxu0 0.0
  %1942 = vmatpush1.xpose.msra.mxu0 0.0
  %1943 = vmatprep.subr.mxu0 0.0
  %1944 = vmatpush1.xpose.msra.mxu0 0.0
  %1945 = vmatprep.subr.mxu0 0.0
  %1946 = vmatpush1.xpose.msra.mxu0 0.0
  %1947 = vmatprep.subr.mxu0 0.0
  %1948 = vmatpush1.xpose.msra.mxu0 0.0
  %1949 = vmatprep.subr.mxu0 0.0
  %1950 = vmatpush1.xpose.msra.mxu0 0.0
  %1951 = vmatprep.subr.mxu0 0.0
  %1952 = vmatpush1.xpose.msra.mxu0 0.0
  %1953 = vmatprep.subr.mxu0 0.0
  %1954 = vmatpush1.xpose.msra.mxu0 0.0
  %1955 = vmatprep.subr.mxu0 0.0
  %1956 = vmatpush1.xpose.msra.mxu0 0.0
  %1957 = vmatprep.subr.mxu0 0.0
  %1958 = vmatpush1.xpose.msra.mxu0 0.0
  %1959 = vmatprep.subr.mxu0 0.0
  %1960 = vmatpush1.xpose.msra.mxu0 0.0
  %1961 = vmatprep.subr.mxu0 0.0
  %1962 = vmatpush1.xpose.msra.mxu0 0.0
  %1963 = vmatprep.subr.mxu0 0.0
  %1964 = vmatpush1.xpose.msra.mxu0 0.0
  %1965 = vmatprep.subr.mxu0 0.0
  %1966 = vmatpush1.xpose.msra.mxu0 0.0
  %1967 = vmatprep.subr.mxu0 0.0
  %1968 = vmatpush1.xpose.msra.mxu0 0.0
  %1969 = vmatprep.subr.mxu0 0.0
  %1970 = vmatpush1.xpose.msra.mxu0 0.0
  %1971 = vmatprep.subr.mxu0 0.0
  %1972 = vmatpush1.xpose.msra.mxu0 0.0
  %1973 = vmatprep.subr.mxu0 0.0
  %1974 = vmatpush1.xpose.msra.mxu0 0.0
  %1975 = vmatprep.subr.mxu0 0.0
  %1976 = vmatpush1.xpose.msra.mxu0 0.0
  %1977 = vmatprep.mubr.f32.mxu0 0.0
  %1978 = vmatmul.mubr.f32.gmra.mrb[0].mxu0 %v1905
  %v1979 = vpop.f32.mrb[0].mxu0
  %v1980 = vadd.f32 0.0, %v1979
  %v1981 = vpop.f32.mrb[0].mxu0
  %1982 = vmatprep.mubr.f32.mxu0 0.0
  %1983 = vmatmul.mubr.f32.gmra.mrb[0].mxu0 %v1907
  %v1984 = vpop.f32.mrb[0].mxu0
  %v1985 = vadd.f32 0.0, %v1984
  %v1986 = vpop.f32.mrb[0].mxu0
  %1987 = vdwg.mxu0
  %1988 = vrot.lane.b32.xlu0 %v1724, 96
  %v1989 = vpop.permute.xlu0 %1988
  %1990 = vrot.lane.b32.xlu0 %v1726, 96
  %v1991 = vpop.permute.xlu0 %1990
  %v1992 = vsel %vm196, %v1724, 0
  %v1994 = vsel %vm196, %v1726, 0
  %v1996 = vsel %vm196, %v1989, 0
  %v1998 = vsel %vm196, %v1991, 0
  %2000 = vmatprep.subr.mxu0 0.0
  %2001 = vmatpush1.xpose.msra.mxu0 %v1996
  %2002 = vmatprep.subr.mxu0 0.0
  %2003 = vmatpush1.xpose.msra.mxu0 %v1998
  %2004 = vmatprep.subr.mxu0 0.0
  %2005 = vmatpush1.xpose.msra.mxu0 0.0
  %2006 = vmatprep.subr.mxu0 0.0
  %2007 = vmatpush1.xpose.msra.mxu0 0.0
  %2008 = vmatprep.subr.mxu0 0.0
  %2009 = vmatpush1.xpose.msra.mxu0 0.0
  %2010 = vmatprep.subr.mxu0 0.0
  %2011 = vmatpush1.xpose.msra.mxu0 0.0
  %2012 = vmatprep.subr.mxu0 0.0
  %2013 = vmatpush1.xpose.msra.mxu0 0.0
  %2014 = vmatprep.subr.mxu0 0.0
  %2015 = vmatpush1.xpose.msra.mxu0 0.0
  %2016 = vmatprep.subr.mxu0 0.0
  %2017 = vmatpush1.xpose.msra.mxu0 0.0
  %2018 = vmatprep.subr.mxu0 0.0
  %2019 = vmatpush1.xpose.msra.mxu0 0.0
  %2020 = vmatprep.subr.mxu0 0.0
  %2021 = vmatpush1.xpose.msra.mxu0 0.0
  %2022 = vmatprep.subr.mxu0 0.0
  %2023 = vmatpush1.xpose.msra.mxu0 0.0
  %2024 = vmatprep.subr.mxu0 0.0
  %2025 = vmatpush1.xpose.msra.mxu0 0.0
  %2026 = vmatprep.subr.mxu0 0.0
  %2027 = vmatpush1.xpose.msra.mxu0 0.0
  %2028 = vmatprep.subr.mxu0 0.0
  %2029 = vmatpush1.xpose.msra.mxu0 0.0
  %2030 = vmatprep.subr.mxu0 0.0
  %2031 = vmatpush1.xpose.msra.mxu0 0.0
  %2032 = vmatprep.subr.mxu0 0.0
  %2033 = vmatpush1.xpose.msra.mxu0 0.0
  %2034 = vmatprep.subr.mxu0 0.0
  %2035 = vmatpush1.xpose.msra.mxu0 0.0
  %2036 = vmatprep.subr.mxu0 0.0
  %2037 = vmatpush1.xpose.msra.mxu0 0.0
  %2038 = vmatprep.subr.mxu0 0.0
  %2039 = vmatpush1.xpose.msra.mxu0 0.0
  %2040 = vmatprep.subr.mxu0 0.0
  %2041 = vmatpush1.xpose.msra.mxu0 0.0
  %2042 = vmatprep.subr.mxu0 0.0
  %2043 = vmatpush1.xpose.msra.mxu0 0.0
  %2044 = vmatprep.subr.mxu0 0.0
  %2045 = vmatpush1.xpose.msra.mxu0 0.0
  %2046 = vmatprep.subr.mxu0 0.0
  %2047 = vmatpush1.xpose.msra.mxu0 0.0
  %2048 = vmatprep.subr.mxu0 0.0
  %2049 = vmatpush1.xpose.msra.mxu0 0.0
  %2050 = vmatprep.subr.mxu0 0.0
  %2051 = vmatpush1.xpose.msra.mxu0 0.0
  %2052 = vmatprep.subr.mxu0 0.0
  %2053 = vmatpush1.xpose.msra.mxu0 0.0
  %2054 = vmatprep.subr.mxu0 0.0
  %2055 = vmatpush1.xpose.msra.mxu0 0.0
  %2056 = vmatprep.subr.mxu0 0.0
  %2057 = vmatpush1.xpose.msra.mxu0 0.0
  %2058 = vmatprep.subr.mxu0 0.0
  %2059 = vmatpush1.xpose.msra.mxu0 0.0
  %2060 = vmatprep.subr.mxu0 0.0
  %2061 = vmatpush1.xpose.msra.mxu0 0.0
  %2062 = vmatprep.subr.mxu0 0.0
  %2063 = vmatpush1.xpose.msra.mxu0 0.0
  %2064 = vmatprep.mubr.f32.mxu0 0.0
  %2065 = vmatmul.mubr.f32.gmra.mrb[0].mxu0 %v1992
  %v2066 = vpop.f32.mrb[0].mxu0
  %v2067 = vadd.f32 0.0, %v2066
  %v2068 = vpop.f32.mrb[0].mxu0
  %2069 = vmatprep.mubr.f32.mxu0 0.0
  %2070 = vmatmul.mubr.f32.gmra.mrb[0].mxu0 %v1994
  %v2071 = vpop.f32.mrb[0].mxu0
  %v2072 = vadd.f32 0.0, %v2071
  %v2073 = vpop.f32.mrb[0].mxu0
  %2074 = vdwg.mxu0
  %v2075 = vmul.f32 %v1806, 0.35355338
  %v2076 = vmul.f32 %v1811, 0.35355338
  %v2077 = vmul.f32 %v1893, 0.35355338
  %v2078 = vmul.f32 %v1898, 0.35355338
  %v2079 = vmul.f32 %v1980, 0.35355338
  %v2080 = vmul.f32 %v1985, 0.35355338
  %v2081 = vmul.f32 %v2067, 0.35355338
  %v2082 = vmul.f32 %v2072, 0.35355338
  %v2083 = vadd.f32 %v2075, %v70
  %v2084 = vadd.f32 %v2076, %v71
  %v2085 = vadd.f32 %v2077, %v70
  %v2086 = vadd.f32 %v2078, %v71
  %v2087 = vadd.f32 %v2079, %v70
  %v2088 = vadd.f32 %v2080, %v71
  %v2089 = vadd.f32 %v2081, %v70
  %v2090 = vadd.f32 %v2082, %v71
  %v2091 = vsel %vm557, %v2083, -inf
  %2092 = vmax.xlane.f32.xlu0 %v2091
  %v2093 = vpop.xlane.xlu0 %2092
  %v2094 = vsel %vm557, %v2084, -inf
  %2095 = vmax.xlane.f32.xlu0 %v2094
  %v2096 = vpop.xlane.xlu0 %2095
  %v2097 = vsel %vm557, %v2085, -inf
  %2098 = vmax.xlane.f32.xlu0 %v2097
  %v2099 = vpop.xlane.xlu0 %2098
  %v2100 = vsel %vm557, %v2086, -inf
  %2101 = vmax.xlane.f32.xlu0 %v2100
  %v2102 = vpop.xlane.xlu0 %2101
  %v2103 = vsel %vm557, %v2087, -inf
  %2104 = vmax.xlane.f32.xlu0 %v2103
  %v2105 = vpop.xlane.xlu0 %2104
  %v2106 = vsel %vm557, %v2088, -inf
  %2107 = vmax.xlane.f32.xlu0 %v2106
  %v2108 = vpop.xlane.xlu0 %2107
  %v2109 = vsel %vm557, %v2089, -inf
  %2110 = vmax.xlane.f32.xlu0 %v2109
  %v2111 = vpop.xlane.xlu0 %2110
  %v2112 = vsel %vm557, %v2090, -inf
  %2113 = vmax.xlane.f32.xlu0 %v2112
  %v2114 = vpop.xlane.xlu0 %2113
  %v2115 = vsub.f32 %v2083, %v2093
  %v2116 = vsub.f32 %v2084, %v2096
  %v2117 = vsub.f32 %v2085, %v2099
  %v2118 = vsub.f32 %v2086, %v2102
  %v2119 = vsub.f32 %v2087, %v2105
  %v2120 = vsub.f32 %v2088, %v2108
  %v2121 = vsub.f32 %v2089, %v2111
  %v2122 = vsub.f32 %v2090, %v2114
  %v2123 = vmul.f32 %v2115, 1.442695
  %v2124 = vpow.pop %v2123
  %v2125 = vmul.f32 %v2116, 1.442695
  %v2126 = vpow.pop %v2125
  %v2127 = vmul.f32 %v2117, 1.442695
  %v2128 = vpow.pop %v2127
  %v2129 = vmul.f32 %v2118, 1.442695
  %v2130 = vpow.pop %v2129
  %v2131 = vmul.f32 %v2119, 1.442695
  %v2132 = vpow.pop %v2131
  %v2133 = vmul.f32 %v2120, 1.442695
  %v2134 = vpow.pop %v2133
  %v2135 = vmul.f32 %v2121, 1.442695
  %v2136 = vpow.pop %v2135
  %v2137 = vmul.f32 %v2122, 1.442695
  %v2138 = vpow.pop %v2137
  %v2139 = vsel %vm557, %v2124, 0.0
  %2140 = vadd.xlane.f32.xlu0 %v2139
  %v2141 = vpop.xlane.xlu0 %2140
  %v2142 = vsel %vm557, %v2126, 0.0
  %2143 = vadd.xlane.f32.xlu0 %v2142
  %v2144 = vpop.xlane.xlu0 %2143
  %v2145 = vsel %vm557, %v2128, 0.0
  %2146 = vadd.xlane.f32.xlu0 %v2145
  %v2147 = vpop.xlane.xlu0 %2146
  %v2148 = vsel %vm557, %v2130, 0.0
  %2149 = vadd.xlane.f32.xlu0 %v2148
  %v2150 = vpop.xlane.xlu0 %2149
  %v2151 = vsel %vm557, %v2132, 0.0
  %2152 = vadd.xlane.f32.xlu0 %v2151
  %v2153 = vpop.xlane.xlu0 %2152
  %v2154 = vsel %vm557, %v2134, 0.0
  %2155 = vadd.xlane.f32.xlu0 %v2154
  %v2156 = vpop.xlane.xlu0 %2155
  %v2157 = vsel %vm557, %v2136, 0.0
  %2158 = vadd.xlane.f32.xlu0 %v2157
  %v2159 = vpop.xlane.xlu0 %2158
  %v2160 = vsel %vm557, %v2138, 0.0
  %2161 = vadd.xlane.f32.xlu0 %v2160
  %v2162 = vpop.xlane.xlu0 %2161
  %v2163 = vrcp.pop %v2141
  %v2164 = vrcp.pop %v2144
  %v2165 = vrcp.pop %v2147
  %v2166 = vrcp.pop %v2150
  %v2167 = vrcp.pop %v2153
  %v2168 = vrcp.pop %v2156
  %v2169 = vrcp.pop %v2159
  %v2170 = vrcp.pop %v2162
  %v2171 = vmul.f32 %v2124, %v2163
  %v2172 = vmul.f32 %v2126, %v2164
  %v2173 = vmul.f32 %v2128, %v2165
  %v2174 = vmul.f32 %v2130, %v2166
  %v2175 = vmul.f32 %v2132, %v2167
  %v2176 = vmul.f32 %v2134, %v2168
  %v2177 = vmul.f32 %v2136, %v2169
  %v2178 = vmul.f32 %v2138, %v2170
  %2179 = vrot.lane.b32.xlu0 %v1705, 64
  %v2180 = vpop.permute.xlu0 %2179
  %2181 = vrot.lane.b32.xlu0 %v1710, 64
  %v2182 = vpop.permute.xlu0 %2181
  %v2186 = vsel %vm557, %v2171, 0
  %v2189 = vsel %vm557, %v2172, 0
  %2191 = vmatprep.subr.mxu0 0.0
  %2192 = vmatpush1.msra.mxu0 %v2180
  %2193 = vmatprep.subr.mxu0 0.0
  %2194 = vmatpush1.msra.mxu0 %v2182
  %2195 = vmatprep.subr.mxu0 0.0
  %2196 = vmatpush1.msra.mxu0 0.0
  %2197 = vmatprep.subr.mxu0 0.0
  %2198 = vmatpush1.msra.mxu0 0.0
  %2199 = vmatprep.subr.mxu0 0.0
  %2200 = vmatpush1.msra.mxu0 0.0
  %2201 = vmatprep.subr.mxu0 0.0
  %2202 = vmatpush1.msra.mxu0 0.0
  %2203 = vmatprep.subr.mxu0 0.0
  %2204 = vmatpush1.msra.mxu0 0.0
  %2205 = vmatprep.subr.mxu0 0.0
  %2206 = vmatpush1.msra.mxu0 0.0
  %2207 = vmatprep.subr.mxu0 0.0
  %2208 = vmatpush1.msra.mxu0 0.0
  %2209 = vmatprep.subr.mxu0 0.0
  %2210 = vmatpush1.msra.mxu0 0.0
  %2211 = vmatprep.subr.mxu0 0.0
  %2212 = vmatpush1.msra.mxu0 0.0
  %2213 = vmatprep.subr.mxu0 0.0
  %2214 = vmatpush1.msra.mxu0 0.0
  %2215 = vmatprep.subr.mxu0 0.0
  %2216 = vmatpush1.msra.mxu0 0.0
  %2217 = vmatprep.subr.mxu0 0.0
  %2218 = vmatpush1.msra.mxu0 0.0
  %2219 = vmatprep.subr.mxu0 0.0
  %2220 = vmatpush1.msra.mxu0 0.0
  %2221 = vmatprep.subr.mxu0 0.0
  %2222 = vmatpush1.msra.mxu0 0.0
  %2223 = vmatprep.subr.mxu0 0.0
  %2224 = vmatpush1.msra.mxu0 0.0
  %2225 = vmatprep.subr.mxu0 0.0
  %2226 = vmatpush1.msra.mxu0 0.0
  %2227 = vmatprep.subr.mxu0 0.0
  %2228 = vmatpush1.msra.mxu0 0.0
  %2229 = vmatprep.subr.mxu0 0.0
  %2230 = vmatpush1.msra.mxu0 0.0
  %2231 = vmatprep.subr.mxu0 0.0
  %2232 = vmatpush1.msra.mxu0 0.0
  %2233 = vmatprep.subr.mxu0 0.0
  %2234 = vmatpush1.msra.mxu0 0.0
  %2235 = vmatprep.subr.mxu0 0.0
  %2236 = vmatpush1.msra.mxu0 0.0
  %2237 = vmatprep.subr.mxu0 0.0
  %2238 = vmatpush1.msra.mxu0 0.0
  %2239 = vmatprep.subr.mxu0 0.0
  %2240 = vmatpush1.msra.mxu0 0.0
  %2241 = vmatprep.subr.mxu0 0.0
  %2242 = vmatpush1.msra.mxu0 0.0
  %2243 = vmatprep.subr.mxu0 0.0
  %2244 = vmatpush1.msra.mxu0 0.0
  %2245 = vmatprep.subr.mxu0 0.0
  %2246 = vmatpush1.msra.mxu0 0.0
  %2247 = vmatprep.subr.mxu0 0.0
  %2248 = vmatpush1.msra.mxu0 0.0
  %2249 = vmatprep.subr.mxu0 0.0
  %2250 = vmatpush1.msra.mxu0 0.0
  %2251 = vmatprep.subr.mxu0 0.0
  %2252 = vmatpush1.msra.mxu0 0.0
  %2253 = vmatprep.subr.mxu0 0.0
  %2254 = vmatpush1.msra.mxu0 0.0
  %2255 = vmatprep.mubr.f32.mxu0 0.0
  %2256 = vmatmul.mubr.f32.gmra.mrb[0].mxu0 %v2186
  %v2257 = vpop.f32.mrb[0].mxu0
  %v2258 = vadd.f32 0.0, %v2257
  %v2259 = vpop.f32.mrb[0].mxu0
  %2260 = vmatprep.mubr.f32.mxu0 0.0
  %2261 = vmatmul.mubr.f32.gmra.mrb[0].mxu0 %v2189
  %v2262 = vpop.f32.mrb[0].mxu0
  %v2263 = vadd.f32 0.0, %v2262
  %v2264 = vpop.f32.mrb[0].mxu0
  %2265 = vdwg.mxu0
  %2266 = vrot.lane.b32.xlu0 %v1716, 64
  %v2267 = vpop.permute.xlu0 %2266
  %2268 = vrot.lane.b32.xlu0 %v1718, 64
  %v2269 = vpop.permute.xlu0 %2268
  %v2273 = vsel %vm557, %v2173, 0
  %v2276 = vsel %vm557, %v2174, 0
  %2278 = vmatprep.subr.mxu0 0.0
  %2279 = vmatpush1.msra.mxu0 %v2267
  %2280 = vmatprep.subr.mxu0 0.0
  %2281 = vmatpush1.msra.mxu0 %v2269
  %2282 = vmatprep.subr.mxu0 0.0
  %2283 = vmatpush1.msra.mxu0 0.0
  %2284 = vmatprep.subr.mxu0 0.0
  %2285 = vmatpush1.msra.mxu0 0.0
  %2286 = vmatprep.subr.mxu0 0.0
  %2287 = vmatpush1.msra.mxu0 0.0
  %2288 = vmatprep.subr.mxu0 0.0
  %2289 = vmatpush1.msra.mxu0 0.0
  %2290 = vmatprep.subr.mxu0 0.0
  %2291 = vmatpush1.msra.mxu0 0.0
  %2292 = vmatprep.subr.mxu0 0.0
  %2293 = vmatpush1.msra.mxu0 0.0
  %2294 = vmatprep.subr.mxu0 0.0
  %2295 = vmatpush1.msra.mxu0 0.0
  %2296 = vmatprep.subr.mxu0 0.0
  %2297 = vmatpush1.msra.mxu0 0.0
  %2298 = vmatprep.subr.mxu0 0.0
  %2299 = vmatpush1.msra.mxu0 0.0
  %2300 = vmatprep.subr.mxu0 0.0
  %2301 = vmatpush1.msra.mxu0 0.0
  %2302 = vmatprep.subr.mxu0 0.0
  %2303 = vmatpush1.msra.mxu0 0.0
  %2304 = vmatprep.subr.mxu0 0.0
  %2305 = vmatpush1.msra.mxu0 0.0
  %2306 = vmatprep.subr.mxu0 0.0
  %2307 = vmatpush1.msra.mxu0 0.0
  %2308 = vmatprep.subr.mxu0 0.0
  %2309 = vmatpush1.msra.mxu0 0.0
  %2310 = vmatprep.subr.mxu0 0.0
  %2311 = vmatpush1.msra.mxu0 0.0
  %2312 = vmatprep.subr.mxu0 0.0
  %2313 = vmatpush1.msra.mxu0 0.0
  %2314 = vmatprep.subr.mxu0 0.0
  %2315 = vmatpush1.msra.mxu0 0.0
  %2316 = vmatprep.subr.mxu0 0.0
  %2317 = vmatpush1.msra.mxu0 0.0
  %2318 = vmatprep.subr.mxu0 0.0
  %2319 = vmatpush1.msra.mxu0 0.0
  %2320 = vmatprep.subr.mxu0 0.0
  %2321 = vmatpush1.msra.mxu0 0.0
  %2322 = vmatprep.subr.mxu0 0.0
  %2323 = vmatpush1.msra.mxu0 0.0
  %2324 = vmatprep.subr.mxu0 0.0
  %2325 = vmatpush1.msra.mxu0 0.0
  %2326 = vmatprep.subr.mxu0 0.0
  %2327 = vmatpush1.msra.mxu0 0.0
  %2328 = vmatprep.subr.mxu0 0.0
  %2329 = vmatpush1.msra.mxu0 0.0
  %2330 = vmatprep.subr.mxu0 0.0
  %2331 = vmatpush1.msra.mxu0 0.0
  %2332 = vmatprep.subr.mxu0 0.0
  %2333 = vmatpush1.msra.mxu0 0.0
  %2334 = vmatprep.subr.mxu0 0.0
  %2335 = vmatpush1.msra.mxu0 0.0
  %2336 = vmatprep.subr.mxu0 0.0
  %2337 = vmatpush1.msra.mxu0 0.0
  %2338 = vmatprep.subr.mxu0 0.0
  %2339 = vmatpush1.msra.mxu0 0.0
  %2340 = vmatprep.subr.mxu0 0.0
  %2341 = vmatpush1.msra.mxu0 0.0
  %2342 = vmatprep.mubr.f32.mxu0 0.0
  %2343 = vmatmul.mubr.f32.gmra.mrb[0].mxu0 %v2273
  %v2344 = vpop.f32.mrb[0].mxu0
  %v2345 = vadd.f32 0.0, %v2344
  %v2346 = vpop.f32.mrb[0].mxu0
  %2347 = vmatprep.mubr.f32.mxu0 0.0
  %2348 = vmatmul.mubr.f32.gmra.mrb[0].mxu0 %v2276
  %v2349 = vpop.f32.mrb[0].mxu0
  %v2350 = vadd.f32 0.0, %v2349
  %v2351 = vpop.f32.mrb[0].mxu0
  %2352 = vdwg.mxu0
  %2353 = vrot.lane.b32.xlu0 %v1720, 64
  %v2354 = vpop.permute.xlu0 %2353
  %2355 = vrot.lane.b32.xlu0 %v1722, 64
  %v2356 = vpop.permute.xlu0 %2355
  %v2360 = vsel %vm557, %v2175, 0
  %v2363 = vsel %vm557, %v2176, 0
  %2365 = vmatprep.subr.mxu0 0.0
  %2366 = vmatpush1.msra.mxu0 %v2354
  %2367 = vmatprep.subr.mxu0 0.0
  %2368 = vmatpush1.msra.mxu0 %v2356
  %2369 = vmatprep.subr.mxu0 0.0
  %2370 = vmatpush1.msra.mxu0 0.0
  %2371 = vmatprep.subr.mxu0 0.0
  %2372 = vmatpush1.msra.mxu0 0.0
  %2373 = vmatprep.subr.mxu0 0.0
  %2374 = vmatpush1.msra.mxu0 0.0
  %2375 = vmatprep.subr.mxu0 0.0
  %2376 = vmatpush1.msra.mxu0 0.0
  %2377 = vmatprep.subr.mxu0 0.0
  %2378 = vmatpush1.msra.mxu0 0.0
  %2379 = vmatprep.subr.mxu0 0.0
  %2380 = vmatpush1.msra.mxu0 0.0
  %2381 = vmatprep.subr.mxu0 0.0
  %2382 = vmatpush1.msra.mxu0 0.0
  %2383 = vmatprep.subr.mxu0 0.0
  %2384 = vmatpush1.msra.mxu0 0.0
  %2385 = vmatprep.subr.mxu0 0.0
  %2386 = vmatpush1.msra.mxu0 0.0
  %2387 = vmatprep.subr.mxu0 0.0
  %2388 = vmatpush1.msra.mxu0 0.0
  %2389 = vmatprep.subr.mxu0 0.0
  %2390 = vmatpush1.msra.mxu0 0.0
  %2391 = vmatprep.subr.mxu0 0.0
  %2392 = vmatpush1.msra.mxu0 0.0
  %2393 = vmatprep.subr.mxu0 0.0
  %2394 = vmatpush1.msra.mxu0 0.0
  %2395 = vmatprep.subr.mxu0 0.0
  %2396 = vmatpush1.msra.mxu0 0.0
  %2397 = vmatprep.subr.mxu0 0.0
  %2398 = vmatpush1.msra.mxu0 0.0
  %2399 = vmatprep.subr.mxu0 0.0
  %2400 = vmatpush1.msra.mxu0 0.0
  %2401 = vmatprep.subr.mxu0 0.0
  %2402 = vmatpush1.msra.mxu0 0.0
  %2403 = vmatprep.subr.mxu0 0.0
  %2404 = vmatpush1.msra.mxu0 0.0
  %2405 = vmatprep.subr.mxu0 0.0
  %2406 = vmatpush1.msra.mxu0 0.0
  %2407 = vmatprep.subr.mxu0 0.0
  %2408 = vmatpush1.msra.mxu0 0.0
  %2409 = vmatprep.subr.mxu0 0.0
  %2410 = vmatpush1.msra.mxu0 0.0
  %2411 = vmatprep.subr.mxu0 0.0
  %2412 = vmatpush1.msra.mxu0 0.0
  %2413 = vmatprep.subr.mxu0 0.0
  %2414 = vmatpush1.msra.mxu0 0.0
  %2415 = vmatprep.subr.mxu0 0.0
  %2416 = vmatpush1.msra.mxu0 0.0
  %2417 = vmatprep.subr.mxu0 0.0
  %2418 = vmatpush1.msra.mxu0 0.0
  %2419 = vmatprep.subr.mxu0 0.0
  %2420 = vmatpush1.msra.mxu0 0.0
  %2421 = vmatprep.subr.mxu0 0.0
  %2422 = vmatpush1.msra.mxu0 0.0
  %2423 = vmatprep.subr.mxu0 0.0
  %2424 = vmatpush1.msra.mxu0 0.0
  %2425 = vmatprep.subr.mxu0 0.0
  %2426 = vmatpush1.msra.mxu0 0.0
  %2427 = vmatprep.subr.mxu0 0.0
  %2428 = vmatpush1.msra.mxu0 0.0
  %2429 = vmatprep.mubr.f32.mxu0 0.0
  %2430 = vmatmul.mubr.f32.gmra.mrb[0].mxu0 %v2360
  %v2431 = vpop.f32.mrb[0].mxu0
  %v2432 = vadd.f32 0.0, %v2431
  %v2433 = vpop.f32.mrb[0].mxu0
  %2434 = vmatprep.mubr.f32.mxu0 0.0
  %2435 = vmatmul.mubr.f32.gmra.mrb[0].mxu0 %v2363
  %v2436 = vpop.f32.mrb[0].mxu0
  %v2437 = vadd.f32 0.0, %v2436
  %v2438 = vpop.f32.mrb[0].mxu0
  %2439 = vdwg.mxu0
  %2440 = vrot.lane.b32.xlu0 %v1724, 64
  %v2441 = vpop.permute.xlu0 %2440
  %2442 = vrot.lane.b32.xlu0 %v1726, 64
  %v2443 = vpop.permute.xlu0 %2442
  %v2447 = vsel %vm557, %v2177, 0
  %v2450 = vsel %vm557, %v2178, 0
  %2452 = vmatprep.subr.mxu0 0.0
  %2453 = vmatpush1.msra.mxu0 %v2441
  %2454 = vmatprep.subr.mxu0 0.0
  %2455 = vmatpush1.msra.mxu0 %v2443
  %2456 = vmatprep.subr.mxu0 0.0
  %2457 = vmatpush1.msra.mxu0 0.0
  %2458 = vmatprep.subr.mxu0 0.0
  %2459 = vmatpush1.msra.mxu0 0.0
  %2460 = vmatprep.subr.mxu0 0.0
  %2461 = vmatpush1.msra.mxu0 0.0
  %2462 = vmatprep.subr.mxu0 0.0
  %2463 = vmatpush1.msra.mxu0 0.0
  %2464 = vmatprep.subr.mxu0 0.0
  %2465 = vmatpush1.msra.mxu0 0.0
  %2466 = vmatprep.subr.mxu0 0.0
  %2467 = vmatpush1.msra.mxu0 0.0
  %2468 = vmatprep.subr.mxu0 0.0
  %2469 = vmatpush1.msra.mxu0 0.0
  %2470 = vmatprep.subr.mxu0 0.0
  %2471 = vmatpush1.msra.mxu0 0.0
  %2472 = vmatprep.subr.mxu0 0.0
  %2473 = vmatpush1.msra.mxu0 0.0
  %2474 = vmatprep.subr.mxu0 0.0
  %2475 = vmatpush1.msra.mxu0 0.0
  %2476 = vmatprep.subr.mxu0 0.0
  %2477 = vmatpush1.msra.mxu0 0.0
  %2478 = vmatprep.subr.mxu0 0.0
  %2479 = vmatpush1.msra.mxu0 0.0
  %2480 = vmatprep.subr.mxu0 0.0
  %2481 = vmatpush1.msra.mxu0 0.0
  %2482 = vmatprep.subr.mxu0 0.0
  %2483 = vmatpush1.msra.mxu0 0.0
  %2484 = vmatprep.subr.mxu0 0.0
  %2485 = vmatpush1.msra.mxu0 0.0
  %2486 = vmatprep.subr.mxu0 0.0
  %2487 = vmatpush1.msra.mxu0 0.0
  %2488 = vmatprep.subr.mxu0 0.0
  %2489 = vmatpush1.msra.mxu0 0.0
  %2490 = vmatprep.subr.mxu0 0.0
  %2491 = vmatpush1.msra.mxu0 0.0
  %2492 = vmatprep.subr.mxu0 0.0
  %2493 = vmatpush1.msra.mxu0 0.0
  %2494 = vmatprep.subr.mxu0 0.0
  %2495 = vmatpush1.msra.mxu0 0.0
  %2496 = vmatprep.subr.mxu0 0.0
  %2497 = vmatpush1.msra.mxu0 0.0
  %2498 = vmatprep.subr.mxu0 0.0
  %2499 = vmatpush1.msra.mxu0 0.0
  %2500 = vmatprep.subr.mxu0 0.0
  %2501 = vmatpush1.msra.mxu0 0.0
  %2502 = vmatprep.subr.mxu0 0.0
  %2503 = vmatpush1.msra.mxu0 0.0
  %2504 = vmatprep.subr.mxu0 0.0
  %2505 = vmatpush1.msra.mxu0 0.0
  %2506 = vmatprep.subr.mxu0 0.0
  %2507 = vmatpush1.msra.mxu0 0.0
  %2508 = vmatprep.subr.mxu0 0.0
  %2509 = vmatpush1.msra.mxu0 0.0
  %2510 = vmatprep.subr.mxu0 0.0
  %2511 = vmatpush1.msra.mxu0 0.0
  %2512 = vmatprep.subr.mxu0 0.0
  %2513 = vmatpush1.msra.mxu0 0.0
  %2514 = vmatprep.subr.mxu0 0.0
  %2515 = vmatpush1.msra.mxu0 0.0
  %2516 = vmatprep.mubr.f32.mxu0 0.0
  %2517 = vmatmul.mubr.f32.gmra.mrb[0].mxu0 %v2447
  %v2518 = vpop.f32.mrb[0].mxu0
  %v2519 = vadd.f32 0.0, %v2518
  %v2520 = vpop.f32.mrb[0].mxu0
  %2521 = vmatprep.mubr.f32.mxu0 0.0
  %2522 = vmatmul.mubr.f32.gmra.mrb[0].mxu0 %v2450
  %v2523 = vpop.f32.mrb[0].mxu0
  %v2524 = vadd.f32 0.0, %v2523
  %v2525 = vpop.f32.mrb[0].mxu0
  %2526 = vdwg.mxu0
  %v2528 = vsel %vm196, %v2345, 0
  %v2531 = vsel %vm196, %v2350, 0
  %2533 = vmatprep.subr.mxu0 0.0
  %2534 = vmatpush1.msra.mxu0 %v1610
  %2535 = vmatprep.subr.mxu0 0.0
  %2536 = vmatpush1.msra.mxu0 0.0
  %2537 = vmatprep.subr.mxu0 0.0
  %2538 = vmatpush1.msra.mxu0 0.0
  %2539 = vmatprep.subr.mxu0 0.0
  %2540 = vmatpush1.msra.mxu0 0.0
  %2541 = vmatprep.subr.mxu0 0.0
  %2542 = vmatpush1.msra.mxu0 0.0
  %2543 = vmatprep.subr.mxu0 0.0
  %2544 = vmatpush1.msra.mxu0 0.0
  %2545 = vmatprep.subr.mxu0 0.0
  %2546 = vmatpush1.msra.mxu0 0.0
  %2547 = vmatprep.subr.mxu0 0.0
  %2548 = vmatpush1.msra.mxu0 0.0
  %2549 = vmatprep.subr.mxu0 0.0
  %2550 = vmatpush1.msra.mxu0 0.0
  %2551 = vmatprep.subr.mxu0 0.0
  %2552 = vmatpush1.msra.mxu0 0.0
  %2553 = vmatprep.subr.mxu0 0.0
  %2554 = vmatpush1.msra.mxu0 0.0
  %2555 = vmatprep.subr.mxu0 0.0
  %2556 = vmatpush1.msra.mxu0 0.0
  %2557 = vmatprep.subr.mxu0 0.0
  %2558 = vmatpush1.msra.mxu0 0.0
  %2559 = vmatprep.subr.mxu0 0.0
  %2560 = vmatpush1.msra.mxu0 0.0
  %2561 = vmatprep.subr.mxu0 0.0
  %2562 = vmatpush1.msra.mxu0 0.0
  %2563 = vmatprep.subr.mxu0 0.0
  %2564 = vmatpush1.msra.mxu0 0.0
  %2565 = vmatprep.subr.mxu0 0.0
  %2566 = vmatpush1.msra.mxu0 0.0
  %2567 = vmatprep.subr.mxu0 0.0
  %2568 = vmatpush1.msra.mxu0 0.0
  %2569 = vmatprep.subr.mxu0 0.0
  %2570 = vmatpush1.msra.mxu0 0.0
  %2571 = vmatprep.subr.mxu0 0.0
  %2572 = vmatpush1.msra.mxu0 0.0
  %2573 = vmatprep.subr.mxu0 0.0
  %2574 = vmatpush1.msra.mxu0 0.0
  %2575 = vmatprep.subr.mxu0 0.0
  %2576 = vmatpush1.msra.mxu0 0.0
  %2577 = vmatprep.subr.mxu0 0.0
  %2578 = vmatpush1.msra.mxu0 0.0
  %2579 = vmatprep.subr.mxu0 0.0
  %2580 = vmatpush1.msra.mxu0 0.0
  %2581 = vmatprep.subr.mxu0 0.0
  %2582 = vmatpush1.msra.mxu0 0.0
  %2583 = vmatprep.subr.mxu0 0.0
  %2584 = vmatpush1.msra.mxu0 0.0
  %2585 = vmatprep.subr.mxu0 0.0
  %2586 = vmatpush1.msra.mxu0 0.0
  %2587 = vmatprep.subr.mxu0 0.0
  %2588 = vmatpush1.msra.mxu0 0.0
  %2589 = vmatprep.subr.mxu0 0.0
  %2590 = vmatpush1.msra.mxu0 0.0
  %2591 = vmatprep.subr.mxu0 0.0
  %2592 = vmatpush1.msra.mxu0 0.0
  %2593 = vmatprep.subr.mxu0 0.0
  %2594 = vmatpush1.msra.mxu0 0.0
  %2595 = vmatprep.subr.mxu0 0.0
  %2596 = vmatpush1.msra.mxu0 0.0
  %2597 = vmatprep.mubr.f32.mxu0 0.0
  %2598 = vmatmul.mubr.f32.gmra.mrb[0].mxu0 %v2528
  %v2599 = vpop.f32.mrb[0].mxu0
  %v2600 = vadd.f32 0.0, %v2599
  %v2601 = vpop.f32.mrb[0].mxu0
  %2602 = vmatprep.mubr.f32.mxu0 0.0
  %2603 = vmatmul.mubr.f32.gmra.mrb[0].mxu0 %v2531
  %v2604 = vpop.f32.mrb[0].mxu0
  %v2605 = vadd.f32 0.0, %v2604
  %v2606 = vpop.f32.mrb[0].mxu0
  %2607 = vdwg.mxu0
  %v2609 = vsel %vm196, %v2258, 0
  %v2612 = vsel %vm196, %v2263, 0
  %2614 = vmatprep.subr.mxu0 0.0
  %2615 = vmatpush1.msra.mxu0 %v1609
  %2616 = vmatprep.subr.mxu0 0.0
  %2617 = vmatpush1.msra.mxu0 0.0
  %2618 = vmatprep.subr.mxu0 0.0
  %2619 = vmatpush1.msra.mxu0 0.0
  %2620 = vmatprep.subr.mxu0 0.0
  %2621 = vmatpush1.msra.mxu0 0.0
  %2622 = vmatprep.subr.mxu0 0.0
  %2623 = vmatpush1.msra.mxu0 0.0
  %2624 = vmatprep.subr.mxu0 0.0
  %2625 = vmatpush1.msra.mxu0 0.0
  %2626 = vmatprep.subr.mxu0 0.0
  %2627 = vmatpush1.msra.mxu0 0.0
  %2628 = vmatprep.subr.mxu0 0.0
  %2629 = vmatpush1.msra.mxu0 0.0
  %2630 = vmatprep.subr.mxu0 0.0
  %2631 = vmatpush1.msra.mxu0 0.0
  %2632 = vmatprep.subr.mxu0 0.0
  %2633 = vmatpush1.msra.mxu0 0.0
  %2634 = vmatprep.subr.mxu0 0.0
  %2635 = vmatpush1.msra.mxu0 0.0
  %2636 = vmatprep.subr.mxu0 0.0
  %2637 = vmatpush1.msra.mxu0 0.0
  %2638 = vmatprep.subr.mxu0 0.0
  %2639 = vmatpush1.msra.mxu0 0.0
  %2640 = vmatprep.subr.mxu0 0.0
  %2641 = vmatpush1.msra.mxu0 0.0
  %2642 = vmatprep.subr.mxu0 0.0
  %2643 = vmatpush1.msra.mxu0 0.0
  %2644 = vmatprep.subr.mxu0 0.0
  %2645 = vmatpush1.msra.mxu0 0.0
  %2646 = vmatprep.subr.mxu0 0.0
  %2647 = vmatpush1.msra.mxu0 0.0
  %2648 = vmatprep.subr.mxu0 0.0
  %2649 = vmatpush1.msra.mxu0 0.0
  %2650 = vmatprep.subr.mxu0 0.0
  %2651 = vmatpush1.msra.mxu0 0.0
  %2652 = vmatprep.subr.mxu0 0.0
  %2653 = vmatpush1.msra.mxu0 0.0
  %2654 = vmatprep.subr.mxu0 0.0
  %2655 = vmatpush1.msra.mxu0 0.0
  %2656 = vmatprep.subr.mxu0 0.0
  %2657 = vmatpush1.msra.mxu0 0.0
  %2658 = vmatprep.subr.mxu0 0.0
  %2659 = vmatpush1.msra.mxu0 0.0
  %2660 = vmatprep.subr.mxu0 0.0
  %2661 = vmatpush1.msra.mxu0 0.0
  %2662 = vmatprep.subr.mxu0 0.0
  %2663 = vmatpush1.msra.mxu0 0.0
  %2664 = vmatprep.subr.mxu0 0.0
  %2665 = vmatpush1.msra.mxu0 0.0
  %2666 = vmatprep.subr.mxu0 0.0
  %2667 = vmatpush1.msra.mxu0 0.0
  %2668 = vmatprep.subr.mxu0 0.0
  %2669 = vmatpush1.msra.mxu0 0.0
  %2670 = vmatprep.subr.mxu0 0.0
  %2671 = vmatpush1.msra.mxu0 0.0
  %2672 = vmatprep.subr.mxu0 0.0
  %2673 = vmatpush1.msra.mxu0 0.0
  %2674 = vmatprep.subr.mxu0 0.0
  %2675 = vmatpush1.msra.mxu0 0.0
  %2676 = vmatprep.subr.mxu0 0.0
  %2677 = vmatpush1.msra.mxu0 0.0
  %2678 = vmatprep.mubr.f32.mxu0 0.0
  %2679 = vmatmul.mubr.f32.gmra.mrb[0].mxu0 %v2609
  %v2680 = vpop.f32.mrb[0].mxu0
  %v2681 = vadd.f32 %v2600, %v2680
  %v2682 = vpop.f32.mrb[0].mxu0
  %2683 = vmatprep.mubr.f32.mxu0 0.0
  %2684 = vmatmul.mubr.f32.gmra.mrb[0].mxu0 %v2612
  %v2685 = vpop.f32.mrb[0].mxu0
  %v2686 = vadd.f32 %v2605, %v2685
  %v2687 = vpop.f32.mrb[0].mxu0
  %2688 = vdwg.mxu0
  %v2690 = vsel %vm196, %v2432, 0
  %v2693 = vsel %vm196, %v2437, 0
  %2695 = vmatprep.subr.mxu0 0.0
  %2696 = vmatpush1.msra.mxu0 %v1611
  %2697 = vmatprep.subr.mxu0 0.0
  %2698 = vmatpush1.msra.mxu0 0.0
  %2699 = vmatprep.subr.mxu0 0.0
  %2700 = vmatpush1.msra.mxu0 0.0
  %2701 = vmatprep.subr.mxu0 0.0
  %2702 = vmatpush1.msra.mxu0 0.0
  %2703 = vmatprep.subr.mxu0 0.0
  %2704 = vmatpush1.msra.mxu0 0.0
  %2705 = vmatprep.subr.mxu0 0.0
  %2706 = vmatpush1.msra.mxu0 0.0
  %2707 = vmatprep.subr.mxu0 0.0
  %2708 = vmatpush1.msra.mxu0 0.0
  %2709 = vmatprep.subr.mxu0 0.0
  %2710 = vmatpush1.msra.mxu0 0.0
  %2711 = vmatprep.subr.mxu0 0.0
  %2712 = vmatpush1.msra.mxu0 0.0
  %2713 = vmatprep.subr.mxu0 0.0
  %2714 = vmatpush1.msra.mxu0 0.0
  %2715 = vmatprep.subr.mxu0 0.0
  %2716 = vmatpush1.msra.mxu0 0.0
  %2717 = vmatprep.subr.mxu0 0.0
  %2718 = vmatpush1.msra.mxu0 0.0
  %2719 = vmatprep.subr.mxu0 0.0
  %2720 = vmatpush1.msra.mxu0 0.0
  %2721 = vmatprep.subr.mxu0 0.0
  %2722 = vmatpush1.msra.mxu0 0.0
  %2723 = vmatprep.subr.mxu0 0.0
  %2724 = vmatpush1.msra.mxu0 0.0
  %2725 = vmatprep.subr.mxu0 0.0
  %2726 = vmatpush1.msra.mxu0 0.0
  %2727 = vmatprep.subr.mxu0 0.0
  %2728 = vmatpush1.msra.mxu0 0.0
  %2729 = vmatprep.subr.mxu0 0.0
  %2730 = vmatpush1.msra.mxu0 0.0
  %2731 = vmatprep.subr.mxu0 0.0
  %2732 = vmatpush1.msra.mxu0 0.0
  %2733 = vmatprep.subr.mxu0 0.0
  %2734 = vmatpush1.msra.mxu0 0.0
  %2735 = vmatprep.subr.mxu0 0.0
  %2736 = vmatpush1.msra.mxu0 0.0
  %2737 = vmatprep.subr.mxu0 0.0
  %2738 = vmatpush1.msra.mxu0 0.0
  %2739 = vmatprep.subr.mxu0 0.0
  %2740 = vmatpush1.msra.mxu0 0.0
  %2741 = vmatprep.subr.mxu0 0.0
  %2742 = vmatpush1.msra.mxu0 0.0
  %2743 = vmatprep.subr.mxu0 0.0
  %2744 = vmatpush1.msra.mxu0 0.0
  %2745 = vmatprep.subr.mxu0 0.0
  %2746 = vmatpush1.msra.mxu0 0.0
  %2747 = vmatprep.subr.mxu0 0.0
  %2748 = vmatpush1.msra.mxu0 0.0
  %2749 = vmatprep.subr.mxu0 0.0
  %2750 = vmatpush1.msra.mxu0 0.0
  %2751 = vmatprep.subr.mxu0 0.0
  %2752 = vmatpush1.msra.mxu0 0.0
  %2753 = vmatprep.subr.mxu0 0.0
  %2754 = vmatpush1.msra.mxu0 0.0
  %2755 = vmatprep.subr.mxu0 0.0
  %2756 = vmatpush1.msra.mxu0 0.0
  %2757 = vmatprep.subr.mxu0 0.0
  %2758 = vmatpush1.msra.mxu0 0.0
  %2759 = vmatprep.mubr.f32.mxu0 0.0
  %2760 = vmatmul.mubr.f32.gmra.mrb[0].mxu0 %v2690
  %v2761 = vpop.f32.mrb[0].mxu0
  %v2762 = vadd.f32 0.0, %v2761
  %v2763 = vpop.f32.mrb[0].mxu0
  %2764 = vmatprep.mubr.f32.mxu0 0.0
  %2765 = vmatmul.mubr.f32.gmra.mrb[0].mxu0 %v2693
  %v2766 = vpop.f32.mrb[0].mxu0
  %v2767 = vadd.f32 0.0, %v2766
  %v2768 = vpop.f32.mrb[0].mxu0
  %2769 = vdwg.mxu0
  %v2770 = vadd.f32 %v2681, %v2762
  %v2771 = vadd.f32 %v2686, %v2767
  %v2773 = vsel %vm196, %v2519, 0
  %v2776 = vsel %vm196, %v2524, 0
  %2778 = vmatprep.subr.mxu0 0.0
  %2779 = vmatpush1.msra.mxu0 %v1612
  %2780 = vmatprep.subr.mxu0 0.0
  %2781 = vmatpush1.msra.mxu0 0.0
  %2782 = vmatprep.subr.mxu0 0.0
  %2783 = vmatpush1.msra.mxu0 0.0
  %2784 = vmatprep.subr.mxu0 0.0
  %2785 = vmatpush1.msra.mxu0 0.0
  %2786 = vmatprep.subr.mxu0 0.0
  %2787 = vmatpush1.msra.mxu0 0.0
  %2788 = vmatprep.subr.mxu0 0.0
  %2789 = vmatpush1.msra.mxu0 0.0
  %2790 = vmatprep.subr.mxu0 0.0
  %2791 = vmatpush1.msra.mxu0 0.0
  %2792 = vmatprep.subr.mxu0 0.0
  %2793 = vmatpush1.msra.mxu0 0.0
  %2794 = vmatprep.subr.mxu0 0.0
  %2795 = vmatpush1.msra.mxu0 0.0
  %2796 = vmatprep.subr.mxu0 0.0
  %2797 = vmatpush1.msra.mxu0 0.0
  %2798 = vmatprep.subr.mxu0 0.0
  %2799 = vmatpush1.msra.mxu0 0.0
  %2800 = vmatprep.subr.mxu0 0.0
  %2801 = vmatpush1.msra.mxu0 0.0
  %2802 = vmatprep.subr.mxu0 0.0
  %2803 = vmatpush1.msra.mxu0 0.0
  %2804 = vmatprep.subr.mxu0 0.0
  %2805 = vmatpush1.msra.mxu0 0.0
  %2806 = vmatprep.subr.mxu0 0.0
  %2807 = vmatpush1.msra.mxu0 0.0
  %2808 = vmatprep.subr.mxu0 0.0
  %2809 = vmatpush1.msra.mxu0 0.0
  %2810 = vmatprep.subr.mxu0 0.0
  %2811 = vmatpush1.msra.mxu0 0.0
  %2812 = vmatprep.subr.mxu0 0.0
  %2813 = vmatpush1.msra.mxu0 0.0
  %2814 = vmatprep.subr.mxu0 0.0
  %2815 = vmatpush1.msra.mxu0 0.0
  %2816 = vmatprep.subr.mxu0 0.0
  %2817 = vmatpush1.msra.mxu0 0.0
  %2818 = vmatprep.subr.mxu0 0.0
  %2819 = vmatpush1.msra.mxu0 0.0
  %2820 = vmatprep.subr.mxu0 0.0
  %2821 = vmatpush1.msra.mxu0 0.0
  %2822 = vmatprep.subr.mxu0 0.0
  %2823 = vmatpush1.msra.mxu0 0.0
  %2824 = vmatprep.subr.mxu0 0.0
  %2825 = vmatpush1.msra.mxu0 0.0
  %2826 = vmatprep.subr.mxu0 0.0
  %2827 = vmatpush1.msra.mxu0 0.0
  %2828 = vmatprep.subr.mxu0 0.0
  %2829 = vmatpush1.msra.mxu0 0.0
  %2830 = vmatprep.subr.mxu0 0.0
  %2831 = vmatpush1.msra.mxu0 0.0
  %2832 = vmatprep.subr.mxu0 0.0
  %2833 = vmatpush1.msra.mxu0 0.0
  %2834 = vmatprep.subr.mxu0 0.0
  %2835 = vmatpush1.msra.mxu0 0.0
  %2836 = vmatprep.subr.mxu0 0.0
  %2837 = vmatpush1.msra.mxu0 0.0
  %2838 = vmatprep.subr.mxu0 0.0
  %2839 = vmatpush1.msra.mxu0 0.0
  %2840 = vmatprep.subr.mxu0 0.0
  %2841 = vmatpush1.msra.mxu0 0.0
  %2842 = vmatprep.mubr.f32.mxu0 0.0
  %2843 = vmatmul.mubr.f32.gmra.mrb[0].mxu0 %v2773
  %v2844 = vpop.f32.mrb[0].mxu0
  %v2845 = vadd.f32 0.0, %v2844
  %v2846 = vpop.f32.mrb[0].mxu0
  %2847 = vmatprep.mubr.f32.mxu0 0.0
  %2848 = vmatmul.mubr.f32.gmra.mrb[0].mxu0 %v2776
  %v2849 = vpop.f32.mrb[0].mxu0
  %v2850 = vadd.f32 0.0, %v2849
  %v2851 = vpop.f32.mrb[0].mxu0
  %2852 = vdwg.mxu0
  %v2853 = vadd.f32 %v2770, %v2845
  %v2854 = vadd.f32 %v2771, %v2850
  %v2855 = vld [vmem:[%s1626 + $0x1] sm:$0x1]
  %v2856 = vlaneseq
  %v2857 = vshrl.u32 %v2856, 7
  %v2858 = vsub.s32 0, %v2857
  %v2859 = vrot.slane %v2855, %v2858
  %v2860 = vadd.f32 %v2853, %v2859
  %v2861 = vadd.f32 %v2854, %v2859
  %v2862 = vadd.f32 %v1602, %v2860
  %v2863 = vadd.f32 %v1603, %v2861
  %v2864 = vld [vmem:[%s1626 + $0x2] sm:$0x1]
  %v2865 = vld [vmem:[%s1626 + $0x3] sm:$0x1]
  %v2866 = vsel %vm30, %v2862, 0.0
  %2867 = vadd.xlane.f32.xlu0 %v2866
  %v2868 = vpop.xlane.xlu0 %2867
  %v2869 = vsel %vm30, %v2863, 0.0
  %2870 = vadd.xlane.f32.xlu0 %v2869
  %v2871 = vpop.xlane.xlu0 %2870
  %v2872 = vmul.f32 %v2868, %v37
  %v2873 = vmul.f32 %v2871, %v37
  %v2874 = vsub.f32 %v2862, %v2872
  %v2875 = vsub.f32 %v2863, %v2873
  %v2876 = vmul.f32 %v2874, %v2874
  %v2877 = vmul.f32 %v2875, %v2875
  %v2878 = vsel %vm30, %v2876, 0.0
  %2879 = vadd.xlane.f32.xlu0 %v2878
  %v2880 = vpop.xlane.xlu0 %2879
  %v2881 = vsel %vm30, %v2877, 0.0
  %2882 = vadd.xlane.f32.xlu0 %v2881
  %v2883 = vpop.xlane.xlu0 %2882
  %v2884 = vmul.f32 %v2880, %v37
  %v2885 = vmul.f32 %v2883, %v37
  %v2886 = vadd.f32 %v2884, 1e-12
  %v2887 = vadd.f32 %v2885, 1e-12
  %v2888 = vrsqrt.pop %v2886
  %v2889 = vrsqrt.pop %v2887
  %v2890 = vmul.f32 %v2874, %v2888
  %v2891 = vmul.f32 %v2875, %v2889
  %v2892 = vlaneseq
  %v2893 = vshrl.u32 %v2892, 7
  %v2894 = vsub.s32 0, %v2893
  %v2895 = vrot.slane %v2864, %v2894
  %v2896 = vmul.f32 %v2890, %v2895
  %v2897 = vmul.f32 %v2891, %v2895
  %v2898 = vlaneseq
  %v2899 = vshrl.u32 %v2898, 7
  %v2900 = vsub.s32 0, %v2899
  %v2901 = vrot.slane %v2865, %v2900
  %v2902 = vadd.f32 %v2896, %v2901
  %v2903 = vadd.f32 %v2897, %v2901
  %v2904 = vld [vmem:[%s1626 + $0x4] sm:$0x1]
  %v2905 = vlaneseq
  %v2906 = vshrl.u32 %v2905, 7
  %v2907 = vsub.s32 0, %v2906
  %v2908 = vrot.slane %v2904, %v2907
  %v2910 = vsel %vm30, %v2902, 0
  %v2913 = vsel %vm30, %v2903, 0
  %2915 = vmatprep.subr.mxu0 0.0
  %2916 = vmatpush1.msra.mxu0 %v1613
  %2917 = vmatprep.subr.mxu0 0.0
  %2918 = vmatpush1.msra.mxu0 %v1614
  %2919 = vmatprep.subr.mxu0 0.0
  %2920 = vmatpush1.msra.mxu0 %v1615
  %2921 = vmatprep.subr.mxu0 0.0
  %2922 = vmatpush1.msra.mxu0 %v1616
  %2923 = vmatprep.subr.mxu0 0.0
  %2924 = vmatpush1.msra.mxu0 0.0
  %2925 = vmatprep.subr.mxu0 0.0
  %2926 = vmatpush1.msra.mxu0 0.0
  %2927 = vmatprep.subr.mxu0 0.0
  %2928 = vmatpush1.msra.mxu0 0.0
  %2929 = vmatprep.subr.mxu0 0.0
  %2930 = vmatpush1.msra.mxu0 0.0
  %2931 = vmatprep.subr.mxu0 0.0
  %2932 = vmatpush1.msra.mxu0 0.0
  %2933 = vmatprep.subr.mxu0 0.0
  %2934 = vmatpush1.msra.mxu0 0.0
  %2935 = vmatprep.subr.mxu0 0.0
  %2936 = vmatpush1.msra.mxu0 0.0
  %2937 = vmatprep.subr.mxu0 0.0
  %2938 = vmatpush1.msra.mxu0 0.0
  %2939 = vmatprep.subr.mxu0 0.0
  %2940 = vmatpush1.msra.mxu0 0.0
  %2941 = vmatprep.subr.mxu0 0.0
  %2942 = vmatpush1.msra.mxu0 0.0
  %2943 = vmatprep.subr.mxu0 0.0
  %2944 = vmatpush1.msra.mxu0 0.0
  %2945 = vmatprep.subr.mxu0 0.0
  %2946 = vmatpush1.msra.mxu0 0.0
  %2947 = vmatprep.subr.mxu0 0.0
  %2948 = vmatpush1.msra.mxu0 0.0
  %2949 = vmatprep.subr.mxu0 0.0
  %2950 = vmatpush1.msra.mxu0 0.0
  %2951 = vmatprep.subr.mxu0 0.0
  %2952 = vmatpush1.msra.mxu0 0.0
  %2953 = vmatprep.subr.mxu0 0.0
  %2954 = vmatpush1.msra.mxu0 0.0
  %2955 = vmatprep.subr.mxu0 0.0
  %2956 = vmatpush1.msra.mxu0 0.0
  %2957 = vmatprep.subr.mxu0 0.0
  %2958 = vmatpush1.msra.mxu0 0.0
  %2959 = vmatprep.subr.mxu0 0.0
  %2960 = vmatpush1.msra.mxu0 0.0
  %2961 = vmatprep.subr.mxu0 0.0
  %2962 = vmatpush1.msra.mxu0 0.0
  %2963 = vmatprep.subr.mxu0 0.0
  %2964 = vmatpush1.msra.mxu0 0.0
  %2965 = vmatprep.subr.mxu0 0.0
  %2966 = vmatpush1.msra.mxu0 0.0
  %2967 = vmatprep.subr.mxu0 0.0
  %2968 = vmatpush1.msra.mxu0 0.0
  %2969 = vmatprep.subr.mxu0 0.0
  %2970 = vmatpush1.msra.mxu0 0.0
  %2971 = vmatprep.subr.mxu0 0.0
  %2972 = vmatpush1.msra.mxu0 0.0
  %2973 = vmatprep.subr.mxu0 0.0
  %2974 = vmatpush1.msra.mxu0 0.0
  %2975 = vmatprep.subr.mxu0 0.0
  %2976 = vmatpush1.msra.mxu0 0.0
  %2977 = vmatprep.subr.mxu0 0.0
  %2978 = vmatpush1.msra.mxu0 0.0
  %2979 = vmatprep.mubr.f32.mxu0 0.0
  %2980 = vmatmul.mubr.f32.gmra.mrb[0].mxu0 %v2910
  %v2981 = vpop.f32.mrb[0].mxu0
  %v2982 = vadd.f32 %v2908, %v2981
  %v2983 = vpop.f32.mrb[0].mxu0
  %2984 = vmatprep.mubr.f32.mxu0 0.0
  %2985 = vmatmul.mubr.f32.gmra.mrb[0].mxu0 %v2913
  %v2986 = vpop.f32.mrb[0].mxu0
  %v2987 = vadd.f32 %v2908, %v2986
  %v2988 = vpop.f32.mrb[0].mxu0
  %2989 = vdwg.mxu0
  %v2990 = vmul.f32 %v2982, %v2982
  %v2991 = vmul.f32 %v2987, %v2987
  %v2992 = vmul.f32 %v2982, %v2990
  %v2993 = vmul.f32 %v2987, %v2991
  %v2994 = vmul.f32 %v2992, 0.044715
  %v2995 = vmul.f32 %v2993, 0.044715
  %v2996 = vadd.f32 %v2982, %v2994
  %v2997 = vadd.f32 %v2987, %v2995
  %v2998 = vmul.f32 %v2996, 0.7978846
  %v2999 = vmul.f32 %v2997, 0.7978846
  %v3000 = vtanh.pop %v2998
  %v3001 = vtanh.pop %v2999
  %v3002 = vadd.f32 %v3000, 1.0
  %v3003 = vadd.f32 %v3001, 1.0
  %v3004 = vmul.f32 %v3002, 0.5
  %v3005 = vmul.f32 %v3003, 0.5
  %v3006 = vmul.f32 %v2982, %v3004
  %v3007 = vmul.f32 %v2987, %v3005
  %v3008 = vld [vmem:[%s1626 + $0x5] sm:$0x1]
  %v3009 = vlaneseq
  %v3010 = vshrl.u32 %v3009, 7
  %v3011 = vsub.s32 0, %v3010
  %v3012 = vrot.slane %v3008, %v3011
  %v3014 = vsel %vm1480, %v3006, 0
  %v3017 = vsel %vm1480, %v3007, 0
  %3019 = vmatprep.subr.mxu0 0.0
  %3020 = vmatpush1.msra.mxu0 %v1618
  %3021 = vmatprep.subr.mxu0 0.0
  %3022 = vmatpush1.msra.mxu0 %v1619
  %3023 = vmatprep.subr.mxu0 0.0
  %3024 = vmatpush1.msra.mxu0 %v1620
  %3025 = vmatprep.subr.mxu0 0.0
  %3026 = vmatpush1.msra.mxu0 %v1621
  %3027 = vmatprep.subr.mxu0 0.0
  %3028 = vmatpush1.msra.mxu0 %v1622
  %3029 = vmatprep.subr.mxu0 0.0
  %3030 = vmatpush1.msra.mxu0 %v1623
  %3031 = vmatprep.subr.mxu0 0.0
  %3032 = vmatpush1.msra.mxu0 %v1624
  %3033 = vmatprep.subr.mxu0 0.0
  %3034 = vmatpush1.msra.mxu0 %v1625
  %3035 = vmatprep.subr.mxu0 0.0
  %3036 = vmatpush1.msra.mxu0 0.0
  %3037 = vmatprep.subr.mxu0 0.0
  %3038 = vmatpush1.msra.mxu0 0.0
  %3039 = vmatprep.subr.mxu0 0.0
  %3040 = vmatpush1.msra.mxu0 0.0
  %3041 = vmatprep.subr.mxu0 0.0
  %3042 = vmatpush1.msra.mxu0 0.0
  %3043 = vmatprep.subr.mxu0 0.0
  %3044 = vmatpush1.msra.mxu0 0.0
  %3045 = vmatprep.subr.mxu0 0.0
  %3046 = vmatpush1.msra.mxu0 0.0
  %3047 = vmatprep.subr.mxu0 0.0
  %3048 = vmatpush1.msra.mxu0 0.0
  %3049 = vmatprep.subr.mxu0 0.0
  %3050 = vmatpush1.msra.mxu0 0.0
  %3051 = vmatprep.subr.mxu0 0.0
  %3052 = vmatpush1.msra.mxu0 0.0
  %3053 = vmatprep.subr.mxu0 0.0
  %3054 = vmatpush1.msra.mxu0 0.0
  %3055 = vmatprep.subr.mxu0 0.0
  %3056 = vmatpush1.msra.mxu0 0.0
  %3057 = vmatprep.subr.mxu0 0.0
  %3058 = vmatpush1.msra.mxu0 0.0
  %3059 = vmatprep.subr.mxu0 0.0
  %3060 = vmatpush1.msra.mxu0 0.0
  %3061 = vmatprep.subr.mxu0 0.0
  %3062 = vmatpush1.msra.mxu0 0.0
  %3063 = vmatprep.subr.mxu0 0.0
  %3064 = vmatpush1.msra.mxu0 0.0
  %3065 = vmatprep.subr.mxu0 0.0
  %3066 = vmatpush1.msra.mxu0 0.0
  %3067 = vmatprep.subr.mxu0 0.0
  %3068 = vmatpush1.msra.mxu0 0.0
  %3069 = vmatprep.subr.mxu0 0.0
  %3070 = vmatpush1.msra.mxu0 0.0
  %3071 = vmatprep.subr.mxu0 0.0
  %3072 = vmatpush1.msra.mxu0 0.0
  %3073 = vmatprep.subr.mxu0 0.0
  %3074 = vmatpush1.msra.mxu0 0.0
  %3075 = vmatprep.subr.mxu0 0.0
  %3076 = vmatpush1.msra.mxu0 0.0
  %3077 = vmatprep.subr.mxu0 0.0
  %3078 = vmatpush1.msra.mxu0 0.0
  %3079 = vmatprep.subr.mxu0 0.0
  %3080 = vmatpush1.msra.mxu0 0.0
  %3081 = vmatprep.subr.mxu0 0.0
  %3082 = vmatpush1.msra.mxu0 0.0
  %3083 = vmatprep.mubr.f32.mxu0 0.0
  %3084 = vmatmul.mubr.f32.gmra.mrb[0].mxu0 %v3014
  %v3085 = vpop.f32.mrb[0].mxu0
  %v3086 = vadd.f32 %v3012, %v3085
  %v3087 = vpop.f32.mrb[0].mxu0
  %3088 = vmatprep.mubr.f32.mxu0 0.0
  %3089 = vmatmul.mubr.f32.gmra.mrb[0].mxu0 %v3017
  %v3090 = vpop.f32.mrb[0].mxu0
  %v3091 = vadd.f32 %v3012, %v3090
  %v3092 = vpop.f32.mrb[0].mxu0
  %3093 = vdwg.mxu0
  %v3094 = vadd.f32 %v2902, %v3086
  %v3095 = vadd.f32 %v2903, %v3091
  %v3096 = vld [vmem:[%s1626 + $0x6] sm:$0x1]
  %v3097 = vld [vmem:[%s1626 + $0x7] sm:$0x1]
  %v3098 = vsel %vm30, %v3094, 0.0
  %3099 = vadd.xlane.f32.xlu0 %v3098
  %v3100 = vpop.xlane.xlu0 %3099
  %v3101 = vsel %vm30, %v3095, 0.0
  %3102 = vadd.xlane.f32.xlu0 %v3101
  %v3103 = vpop.xlane.xlu0 %3102
  %v3104 = vmul.f32 %v3100, %v37
  %v3105 = vmul.f32 %v3103, %v37
  %v3106 = vsub.f32 %v3094, %v3104
  %v3107 = vsub.f32 %v3095, %v3105
  %v3108 = vmul.f32 %v3106, %v3106
  %v3109 = vmul.f32 %v3107, %v3107
  %v3110 = vsel %vm30, %v3108, 0.0
  %3111 = vadd.xlane.f32.xlu0 %v3110
  %v3112 = vpop.xlane.xlu0 %3111
  %v3113 = vsel %vm30, %v3109, 0.0
  %3114 = vadd.xlane.f32.xlu0 %v3113
  %v3115 = vpop.xlane.xlu0 %3114
  %v3116 = vmul.f32 %v3112, %v37
  %v3117 = vmul.f32 %v3115, %v37
  %v3118 = vadd.f32 %v3116, 1e-12
  %v3119 = vadd.f32 %v3117, 1e-12
  %v3120 = vrsqrt.pop %v3118
  %v3121 = vrsqrt.pop %v3119
  %v3122 = vmul.f32 %v3106, %v3120
  %v3123 = vmul.f32 %v3107, %v3121
  %v3124 = vlaneseq
  %v3125 = vshrl.u32 %v3124, 7
  %v3126 = vsub.s32 0, %v3125
  %v3127 = vrot.slane %v3096, %v3126
  %v3128 = vmul.f32 %v3122, %v3127
  %v3129 = vmul.f32 %v3123, %v3127
  %v3130 = vlaneseq
  %v3131 = vshrl.u32 %v3130, 7
  %v3132 = vsub.s32 0, %v3131
  %v3133 = vrot.slane %v3097, %v3132
  %v3134 = vadd.f32 %v3128, %v3133
  %v3135 = vadd.f32 %v3129, %v3133
  %v3136 = vld [vmem:[%s5] sm:$0xff]
  %v3137 = vld [vmem:[%s5 + $0x10] sm:$0xff]
  %v3138 = vld [vmem:[%s5 + $0x20] sm:$0xff]
  %v3139 = vld [vmem:[%s5 + $0x30] sm:$0xff]
  %v3140 = vld [vmem:[%s6 + $0x2] sm:$0x1]
  %v3141 = vlaneseq
  %v3142 = vshrl.u32 %v3141, 7
  %v3143 = vsub.s32 0, %v3142
  %v3144 = vrot.slane %v3140, %v3143
  %v3146 = vsel %vm30, %v3134, 0
  %v3149 = vsel %vm30, %v3135, 0
  %3151 = vmatprep.subr.mxu0 0.0
  %3152 = vmatpush1.msra.mxu0 %v3136
  %3153 = vmatprep.subr.mxu0 0.0
  %3154 = vmatpush1.msra.mxu0 %v3137
  %3155 = vmatprep.subr.mxu0 0.0
  %3156 = vmatpush1.msra.mxu0 %v3138
  %3157 = vmatprep.subr.mxu0 0.0
  %3158 = vmatpush1.msra.mxu0 %v3139
  %3159 = vmatprep.subr.mxu0 0.0
  %3160 = vmatpush1.msra.mxu0 0.0
  %3161 = vmatprep.subr.mxu0 0.0
  %3162 = vmatpush1.msra.mxu0 0.0
  %3163 = vmatprep.subr.mxu0 0.0
  %3164 = vmatpush1.msra.mxu0 0.0
  %3165 = vmatprep.subr.mxu0 0.0
  %3166 = vmatpush1.msra.mxu0 0.0
  %3167 = vmatprep.subr.mxu0 0.0
  %3168 = vmatpush1.msra.mxu0 0.0
  %3169 = vmatprep.subr.mxu0 0.0
  %3170 = vmatpush1.msra.mxu0 0.0
  %3171 = vmatprep.subr.mxu0 0.0
  %3172 = vmatpush1.msra.mxu0 0.0
  %3173 = vmatprep.subr.mxu0 0.0
  %3174 = vmatpush1.msra.mxu0 0.0
  %3175 = vmatprep.subr.mxu0 0.0
  %3176 = vmatpush1.msra.mxu0 0.0
  %3177 = vmatprep.subr.mxu0 0.0
  %3178 = vmatpush1.msra.mxu0 0.0
  %3179 = vmatprep.subr.mxu0 0.0
  %3180 = vmatpush1.msra.mxu0 0.0
  %3181 = vmatprep.subr.mxu0 0.0
  %3182 = vmatpush1.msra.mxu0 0.0
  %3183 = vmatprep.subr.mxu0 0.0
  %3184 = vmatpush1.msra.mxu0 0.0
  %3185 = vmatprep.subr.mxu0 0.0
  %3186 = vmatpush1.msra.mxu0 0.0
  %3187 = vmatprep.subr.mxu0 0.0
  %3188 = vmatpush1.msra.mxu0 0.0
  %3189 = vmatprep.subr.mxu0 0.0
  %3190 = vmatpush1.msra.mxu0 0.0
  %3191 = vmatprep.subr.mxu0 0.0
  %3192 = vmatpush1.msra.mxu0 0.0
  %3193 = vmatprep.subr.mxu0 0.0
  %3194 = vmatpush1.msra.mxu0 0.0
  %3195 = vmatprep.subr.mxu0 0.0
  %3196 = vmatpush1.msra.mxu0 0.0
  %3197 = vmatprep.subr.mxu0 0.0
  %3198 = vmatpush1.msra.mxu0 0.0
  %3199 = vmatprep.subr.mxu0 0.0
  %3200 = vmatpush1.msra.mxu0 0.0
  %3201 = vmatprep.subr.mxu0 0.0
  %3202 = vmatpush1.msra.mxu0 0.0
  %3203 = vmatprep.subr.mxu0 0.0
  %3204 = vmatpush1.msra.mxu0 0.0
  %3205 = vmatprep.subr.mxu0 0.0
  %3206 = vmatpush1.msra.mxu0 0.0
  %3207 = vmatprep.subr.mxu0 0.0
  %3208 = vmatpush1.msra.mxu0 0.0
  %3209 = vmatprep.subr.mxu0 0.0
  %3210 = vmatpush1.msra.mxu0 0.0
  %3211 = vmatprep.subr.mxu0 0.0
  %3212 = vmatpush1.msra.mxu0 0.0
  %3213 = vmatprep.subr.mxu0 0.0
  %3214 = vmatpush1.msra.mxu0 0.0
  %3215 = vmatprep.mubr.f32.mxu0 0.0
  %3216 = vmatmul.mubr.f32.gmra.mrb[0].mxu0 %v3146
  %v3217 = vpop.f32.mrb[0].mxu0
  %v3218 = vadd.f32 %v3144, %v3217
  %v3219 = vpop.f32.mrb[0].mxu0
  %3220 = vmatprep.mubr.f32.mxu0 0.0
  %3221 = vmatmul.mubr.f32.gmra.mrb[0].mxu0 %v3149
  %v3222 = vpop.f32.mrb[0].mxu0
  %v3223 = vadd.f32 %v3144, %v3222
  %v3224 = vpop.f32.mrb[0].mxu0
  %3225 = vdwg.mxu0
  %v3226 = vtanh.pop %v3218
  %v3227 = vtanh.pop %v3223
  %v3228 = vld [vmem:[%s5 + $0x8] sm:$0xff]
  %v3229 = vld [vmem:[%s5 + $0x18] sm:$0xff]
  %v3230 = vld [vmem:[%s5 + $0x28] sm:$0xff]
  %v3231 = vld [vmem:[%s5 + $0x38] sm:$0xff]
  %v3232 = vld [vmem:[%s6 + $0x3] sm:$0x1]
  %v3233 = vlaneseq
  %v3234 = vshrl.u32 %v3233, 7
  %v3235 = vsub.s32 0, %v3234
  %v3236 = vrot.slane %v3232, %v3235
  %v3238 = vsel %vm30, %v3226, 0
  %v3241 = vsel %vm30, %v3227, 0
  %3243 = vmatprep.subr.mxu0 0.0
  %3244 = vmatpush1.msra.mxu0 %v3228
  %3245 = vmatprep.subr.mxu0 0.0
  %3246 = vmatpush1.msra.mxu0 %v3229
  %3247 = vmatprep.subr.mxu0 0.0
  %3248 = vmatpush1.msra.mxu0 %v3230
  %3249 = vmatprep.subr.mxu0 0.0
  %3250 = vmatpush1.msra.mxu0 %v3231
  %3251 = vmatprep.subr.mxu0 0.0
  %3252 = vmatpush1.msra.mxu0 0.0
  %3253 = vmatprep.subr.mxu0 0.0
  %3254 = vmatpush1.msra.mxu0 0.0
  %3255 = vmatprep.subr.mxu0 0.0
  %3256 = vmatpush1.msra.mxu0 0.0
  %3257 = vmatprep.subr.mxu0 0.0
  %3258 = vmatpush1.msra.mxu0 0.0
  %3259 = vmatprep.subr.mxu0 0.0
  %3260 = vmatpush1.msra.mxu0 0.0
  %3261 = vmatprep.subr.mxu0 0.0
  %3262 = vmatpush1.msra.mxu0 0.0
  %3263 = vmatprep.subr.mxu0 0.0
  %3264 = vmatpush1.msra.mxu0 0.0
  %3265 = vmatprep.subr.mxu0 0.0
  %3266 = vmatpush1.msra.mxu0 0.0
  %3267 = vmatprep.subr.mxu0 0.0
  %3268 = vmatpush1.msra.mxu0 0.0
  %3269 = vmatprep.subr.mxu0 0.0
  %3270 = vmatpush1.msra.mxu0 0.0
  %3271 = vmatprep.subr.mxu0 0.0
  %3272 = vmatpush1.msra.mxu0 0.0
  %3273 = vmatprep.subr.mxu0 0.0
  %3274 = vmatpush1.msra.mxu0 0.0
  %3275 = vmatprep.subr.mxu0 0.0
  %3276 = vmatpush1.msra.mxu0 0.0
  %3277 = vmatprep.subr.mxu0 0.0
  %3278 = vmatpush1.msra.mxu0 0.0
  %3279 = vmatprep.subr.mxu0 0.0
  %3280 = vmatpush1.msra.mxu0 0.0
  %3281 = vmatprep.subr.mxu0 0.0
  %3282 = vmatpush1.msra.mxu0 0.0
  %3283 = vmatprep.subr.mxu0 0.0
  %3284 = vmatpush1.msra.mxu0 0.0
  %3285 = vmatprep.subr.mxu0 0.0
  %3286 = vmatpush1.msra.mxu0 0.0
  %3287 = vmatprep.subr.mxu0 0.0
  %3288 = vmatpush1.msra.mxu0 0.0
  %3289 = vmatprep.subr.mxu0 0.0
  %3290 = vmatpush1.msra.mxu0 0.0
  %3291 = vmatprep.subr.mxu0 0.0
  %3292 = vmatpush1.msra.mxu0 0.0
  %3293 = vmatprep.subr.mxu0 0.0
  %3294 = vmatpush1.msra.mxu0 0.0
  %3295 = vmatprep.subr.mxu0 0.0
  %3296 = vmatpush1.msra.mxu0 0.0
  %3297 = vmatprep.subr.mxu0 0.0
  %3298 = vmatpush1.msra.mxu0 0.0
  %3299 = vmatprep.subr.mxu0 0.0
  %3300 = vmatpush1.msra.mxu0 0.0
  %3301 = vmatprep.subr.mxu0 0.0
  %3302 = vmatpush1.msra.mxu0 0.0
  %3303 = vmatprep.subr.mxu0 0.0
  %3304 = vmatpush1.msra.mxu0 0.0
  %3305 = vmatprep.subr.mxu0 0.0
  %3306 = vmatpush1.msra.mxu0 0.0
  %3307 = vmatprep.mubr.f32.mxu0 0.0
  %3308 = vmatmul.mubr.f32.gmra.mrb[0].mxu0 %v3238
  %v3309 = vpop.f32.mrb[0].mxu0
  %v3310 = vadd.f32 %v3236, %v3309
  %v3311 = vpop.f32.mrb[0].mxu0
  %3312 = vmatprep.mubr.f32.mxu0 0.0
  %3313 = vmatmul.mubr.f32.gmra.mrb[0].mxu0 %v3241
  %v3314 = vpop.f32.mrb[0].mxu0
  %v3315 = vadd.f32 %v3236, %v3314
  %v3316 = vpop.f32.mrb[0].mxu0
  %3317 = vdwg.mxu0
  %3318 = vst [vmem:[%s7] sm:$0xff] %v3310
  %3319 = vst [vmem:[%s7 + $0x8] sm:$0xff] %v3315
  // Predicated region
  $region30: #{bert_classifier_forward.1} parent=0 // pred_check
    _
  $region31: #{bert_classifier_forward.1} parent=0 // pred_check_branch
    %3321 = sbr.rel (0) target = $region33
  $region32: #{bert_classifier_forward.1} parent=0 // pred_region
    _
  $region33: #{bert_classifier_forward.1} parent=0 // pred_fallthru
    _
  // Predicated region
  $region34: #{bert_classifier_forward.1} parent=0 // pred_check
    _
  $region35: #{bert_classifier_forward.1} parent=0 // pred_check_branch
    %3323 = sbr.rel (0) target = $region37
  $region36: #{bert_classifier_forward.1} parent=0 // pred_region
    _
  $region37: #{bert_classifier_forward.1} parent=0 // pred_fallthru
    _

</llo_original>
